<compile_context>
chip_gen: v7x
topology: tpu7x:2x2x1
jax: 0.10.0
libtpu: 0.0.40
codegen_flags: <defaults>
</compile_context>

<pallas_src>
import functools

import jax
import jax.numpy as jnp
from jax.experimental import pallas as pl
from jax.experimental.pallas import tpu as pltpu

BN_EPS = 1e-5


def _round_up(x, m):
    return (x + m - 1) // m * m


def _vmem_limit_bytes():
    # ~96 MiB on v5e/v6e (128 MiB physical VMEM), ~48 MiB on v7x (64 MiB).
    try:
        cap = int(pltpu.get_tpu_info().vmem_capacity_bytes)
    except Exception:
        cap = 64 * 1024 * 1024
    return min(96 * 1024 * 1024, (cap * 3) // 4)


def _pick_tm(m):
    # Prefer a large row tile that divides M (no row padding / slicing).
    for tm in (512, 384, 256, 128):
        if m % tm == 0:
            return tm
    if m <= 512:
        return _round_up(m, 8)
    return 256


def _pick_tn(cp):
    # 256-wide output tiles match the 256-wide MXU on v6e/v7x; fall back to
    # 128 (still lane-dense) when Cout pad is only 128.
    return 256 if cp % 256 == 0 else 128


# ---------------------------------------------------------------------------
# Single-K-tile fused matmul kernels:  y = act(x @ w + bias [+ res | + x2@w2])
# ---------------------------------------------------------------------------
def _mm_kernel(x_ref, w_ref, b_ref, o_ref, *, relu):
    y = jnp.dot(x_ref[...], w_ref[...], preferred_element_type=jnp.float32)
    y = y + b_ref[...]
    if relu:
        y = jnp.maximum(y, 0.0)
    o_ref[...] = y.astype(o_ref.dtype)


def _mm_res_kernel(x_ref, w_ref, r_ref, b_ref, o_ref, *, relu):
    y = jnp.dot(x_ref[...], w_ref[...], preferred_element_type=jnp.float32)
    y = y + b_ref[...] + r_ref[...].astype(jnp.float32)
    if relu:
        y = jnp.maximum(y, 0.0)
    o_ref[...] = y.astype(o_ref.dtype)


def _mm_dual_kernel(x_ref, w_ref, x2_ref, w2_ref, b_ref, o_ref, *, relu):
    y = jnp.dot(x_ref[...], w_ref[...], preferred_element_type=jnp.float32)
    y = y + jnp.dot(x2_ref[...], w2_ref[...], preferred_element_type=jnp.float32)
    y = y + b_ref[...]
    if relu:
        y = jnp.maximum(y, 0.0)
    o_ref[...] = y.astype(o_ref.dtype)


def fused_matmul_bias_act(x, w, bias, *, residual=None, x2=None, w2=None,
                          relu=True, out_dtype=jnp.bfloat16):
    """y = act(x @ w + bias [+ residual | + x2 @ w2]).

    x:(M,K) w:(K,C) bias:(1,C) residual:(M,Cr<=C) x2:(M,K2) w2:(K2,C).
    Inputs stream in bf16 (MXU native); accumulation + epilogue are fp32.
    Returns (M, Cp) with C zero-padded to a multiple of 128; padded output
    channels are exact zeros (zero weights/bias + ReLU), so downstream stages
    can consume the padded layout directly.
    """
    M, K = x.shape
    C = w.shape[1]
    assert w.shape[0] == K
    Cp = _round_up(C, 128)
    tn = _pick_tn(Cp)
    tm = _pick_tm(M)
    Mp = _round_up(M, tm)
    # Single full-K tile: ResNet bottleneck K values (<= 4608) fit VMEM easily.
    # TODO(synk): add a K-tiled fp32-scratch accumulator variant for K >~ 8192.

    xb = x.astype(jnp.bfloat16)
    if Mp > M:
        xb = jnp.pad(xb, ((0, Mp - M), (0, 0)))
    wb = jnp.pad(w.astype(jnp.bfloat16), ((0, 0), (0, Cp - C)))
    bb = jnp.pad(bias.astype(jnp.float32), ((0, 0), (0, Cp - C)))

    x_spec = pl.BlockSpec((tm, K), lambda i, j: (i, 0))
    w_spec = pl.BlockSpec((K, tn), lambda i, j: (0, j))
    b_spec = pl.BlockSpec((1, tn), lambda i, j: (0, j))
    o_spec = pl.BlockSpec((tm, tn), lambda i, j: (i, j))

    grid = (Mp // tm, Cp // tn)
    cparams = pltpu.CompilerParams(
        dimension_semantics=("parallel", "parallel"),
        vmem_limit_bytes=_vmem_limit_bytes())
    out_shape = jax.ShapeDtypeStruct((Mp, Cp), out_dtype)
    out_bytes = Mp * Cp * jnp.dtype(out_dtype).itemsize
    flops = 2 * Mp * K * Cp
    nbytes = xb.size * 2 + wb.size * 2 + bb.size * 4 + out_bytes

    if residual is not None:
        rb = jnp.pad(residual.astype(jnp.bfloat16),
                     ((0, Mp - M), (0, Cp - residual.shape[1])))
        r_spec = pl.BlockSpec((tm, tn), lambda i, j: (i, j))
        y = pl.pallas_call(
            functools.partial(_mm_res_kernel, relu=relu),
            out_shape=out_shape, grid=grid,
            in_specs=[x_spec, w_spec, r_spec, b_spec],
            out_specs=o_spec, compiler_params=cparams,
            cost_estimate=pl.CostEstimate(flops=flops, transcendentals=0,
                                          bytes_accessed=nbytes + rb.size * 2),
        )(xb, wb, rb, bb)
    elif x2 is not None:
        K2 = x2.shape[1]
        assert w2 is not None and w2.shape == (K2, C)
        x2b = x2.astype(jnp.bfloat16)
        if Mp > M:
            x2b = jnp.pad(x2b, ((0, Mp - M), (0, 0)))
        w2b = jnp.pad(w2.astype(jnp.bfloat16), ((0, 0), (0, Cp - C)))
        x2_spec = pl.BlockSpec((tm, K2), lambda i, j: (i, 0))
        w2_spec = pl.BlockSpec((K2, tn), lambda i, j: (0, j))
        y = pl.pallas_call(
            functools.partial(_mm_dual_kernel, relu=relu),
            out_shape=out_shape, grid=grid,
            in_specs=[x_spec, w_spec, x2_spec, w2_spec, b_spec],
            out_specs=o_spec, compiler_params=cparams,
            cost_estimate=pl.CostEstimate(
                flops=flops + 2 * Mp * K2 * Cp, transcendentals=0,
                bytes_accessed=nbytes + x2b.size * 2 + w2b.size * 2),
        )(xb, wb, x2b, w2b, bb)
    else:
        y = pl.pallas_call(
            functools.partial(_mm_kernel, relu=relu),
            out_shape=out_shape, grid=grid,
            in_specs=[x_spec, w_spec, b_spec],
            out_specs=o_spec, compiler_params=cparams,
            cost_estimate=pl.CostEstimate(flops=flops, transcendentals=0,
                                          bytes_accessed=nbytes),
        )(xb, wb, bb)

    return y[:M] if Mp > M else y


# ---------------------------------------------------------------------------
# Fused 3x3 conv (pad 1, stride) + BN + ReLU with in-kernel 9-tap accumulation
# ---------------------------------------------------------------------------
def _conv3x3_kernel(xph_ref, w_ref, b_ref, o_ref, *, ho, wo, stride, cin_p):
    # xph_ref: (stride*stride, hq, wq, cin_p)  phase planes of the padded image
    # w_ref:   (9, cin_p, tn)   tap-major folded-BN weights
    acc = None
    for t in range(9):
        dy, dx = divmod(t, 3)
        ph = (dy % stride) * stride + (dx % stride)
        patch = xph_ref[ph, pl.ds(dy // stride, ho), pl.ds(dx // stride, wo), :]
        d = jnp.dot(patch.reshape(ho * wo, cin_p), w_ref[t],
                    preferred_element_type=jnp.float32)
        acc = d if acc is None else acc + d
    y = jnp.maximum(acc + b_ref[...], 0.0)
    o_ref[0] = y.astype(o_ref.dtype)


def conv3x3_bn_relu(h_nhwc, w_oihw, scale, shift, stride):
    """3x3 conv (pad 1, stride) + folded BN + ReLU.

    h_nhwc: (n, H, W, cin_p) bf16, channel-padded (padded channels are zero).
    Returns (n, ho*wo, cout_p) bf16, channel-padded with zeros.
    """
    n, H, W, cin_p = h_nhwc.shape
    cout, cin = w_oihw.shape[0], w_oihw.shape[1]
    cout_p = _round_up(cout, 128)
    tn = _pick_tn(cout_p)
    s = stride
    ho = (H - 1) // s + 1
    wo = (W - 1) // s + 1
    off = 2 // s                              # max tap offset within a phase
    hq, wq = ho + off, wo + off

    # One cheap XLA pass: zero-pad spatially and split into s*s phase planes
    # (identity for stride 1):  plane[py,px][b,i,j,:] = xp[b, i*s+py, j*s+px, :]
    xp = jnp.pad(h_nhwc, ((0, 0), (1, 1), (1, 1), (0, 0)))
    planes = []
    for py in range(s):
        for px in range(s):
            p = xp[:, py::s, px::s, :][:, :hq, :wq, :]
            p = jnp.pad(p, ((0, 0), (0, hq - p.shape[1]),
                            (0, wq - p.shape[2]), (0, 0)))
            planes.append(p)
    xph = jnp.stack(planes, axis=1).reshape(n * s * s, hq, wq, cin_p)

    # Weights: (O, I, 3, 3) -> (9, cin, cout), BN scale folded, zero-padded.
    w9 = jnp.transpose(w_oihw, (2, 3, 1, 0)).reshape(9, cin, cout)
    w9 = (w9 * scale[None, None, :]).astype(jnp.bfloat16)
    w9 = jnp.pad(w9, ((0, 0), (0, cin_p - cin), (0, cout_p - cout)))
    bb = jnp.pad(shift.astype(jnp.float32)[None, :], ((0, 0), (0, cout_p - cout)))

    flops = 2 * n * ho * wo * 9 * cin_p * cout_p
    nbytes = xph.size * 2 + w9.size * 2 + bb.size * 4 + n * ho * wo * cout_p * 2

    # TODO(synk): for very large images, tile the output rows (halo'd row
    # blocks) instead of keeping the full per-batch phase block in VMEM.
    return pl.pallas_call(
        functools.partial(_conv3x3_kernel, ho=ho, wo=wo, stride=s, cin_p=cin_p),
        out_shape=jax.ShapeDtypeStruct((n, ho * wo, cout_p), jnp.bfloat16),
        grid=(n, cout_p // tn),
        in_specs=[
            pl.BlockSpec((s * s, hq, wq, cin_p), lambda b, j: (b, 0, 0, 0)),
            pl.BlockSpec((9, cin_p, tn), lambda b, j: (0, 0, j)),
            pl.BlockSpec((1, tn), lambda b, j: (0, j)),
        ],
        out_specs=pl.BlockSpec((1, ho * wo, tn), lambda b, j: (b, 0, j)),
        compiler_params=pltpu.CompilerParams(
            dimension_semantics=("parallel", "parallel"),
            vmem_limit_bytes=_vmem_limit_bytes()),
        cost_estimate=pl.CostEstimate(flops=flops, transcendentals=0,
                                      bytes_accessed=nbytes),
    )(xph, w9, bb)


# ---------------------------------------------------------------------------
# Parameter setup (deterministic, synthetic)
# ---------------------------------------------------------------------------
def _bn_params(key, c):
    k1, k2, k3, k4 = jax.random.split(key, 4)
    gamma = 1.0 + 0.1 * jax.random.normal(k1, (c,), jnp.float32)
    beta = 0.1 * jax.random.normal(k2, (c,), jnp.float32)
    mean = 0.1 * jax.random.normal(k3, (c,), jnp.float32)
    var = jax.random.uniform(k4, (c,), jnp.float32, minval=0.5, maxval=1.5)
    return dict(gamma=gamma, beta=beta, mean=mean, var=var)


def init_bottleneck_params(key, cin, out, stride, expand=4):
    mid = out // expand
    ks = jax.random.split(key, 8)
    p = {
        "w1": 0.1 * jax.random.normal(ks[0], (mid, cin, 1, 1), jnp.float32),
        "bn1": _bn_params(ks[1], mid),
        "w2": 0.1 * jax.random.normal(ks[2], (mid, mid, 3, 3), jnp.float32),
        "bn2": _bn_params(ks[3], mid),
        "w3": 0.1 * jax.random.normal(ks[4], (out, mid, 1, 1), jnp.float32),
        "bn3": _bn_params(ks[5], out),
    }
    if cin == out and stride == 1:
        p["w_sc"] = None
    else:
        p["w_sc"] = 0.1 * jax.random.normal(ks[6], (out, cin, 1, 1), jnp.float32)
        p["bn_sc"] = _bn_params(ks[7], out)
    return p


def _fold_bn(bn):
    scale = bn["gamma"] / jnp.sqrt(bn["var"] + BN_EPS)
    shift = bn["beta"] - bn["mean"] * scale
    return scale, shift


def _w_to_mat(w_oihw):
    cout, cin, kh, kw = w_oihw.shape
    return jnp.transpose(w_oihw, (2, 3, 1, 0)).reshape(kh * kw * cin, cout)


# ---------------------------------------------------------------------------
# Bottleneck forward (NCHW in / NCHW out)
# ---------------------------------------------------------------------------
def bottleneck_forward(x_nchw, params, stride):
    n, cin, h, w = x_nchw.shape
    mid = params["w1"].shape[0]
    out_c = params["w3"].shape[0]
    ho = (h - 1) // stride + 1
    wo = (w - 1) // stride + 1

    x = jnp.transpose(x_nchw, (0, 2, 3, 1))           # boundary-only NHWC
    x2d = x.reshape(n * h * w, cin)

    # conv1: 1x1 + BN + ReLU (BN folded; channel-padded bf16 output carried)
    s1, b1 = _fold_bn(params["bn1"])
    w1m = _w_to_mat(params["w1"]) * s1[None, :]
    h1 = fused_matmul_bias_act(x2d, w1m, b1[None, :], relu=True,
                               out_dtype=jnp.bfloat16)
    mid_p = h1.shape[-1]
    h1 = h1.reshape(n, h, w, mid_p)

    # conv2: 3x3, stride, pad 1 + BN + ReLU; im2col folded into the kernel.
    s2, b2 = _fold_bn(params["bn2"])
    h2 = conv3x3_bn_relu(h1, params["w2"], s2, b2, stride)
    h2 = h2.reshape(n * ho * wo, mid_p)

    # conv3 + BN3 (+ shortcut conv + BNsc) + add + ReLU in one fused call.
    s3, b3 = _fold_bn(params["bn3"])
    w3m = jnp.pad(_w_to_mat(params["w3"]) * s3[None, :],
                  ((0, mid_p - mid), (0, 0)))
    if params["w_sc"] is None:
        # identity shortcut: bf16 residual fed straight into the epilogue
        y = fused_matmul_bias_act(h2, w3m, b3[None, :], residual=x2d,
                                  relu=True, out_dtype=jnp.float32)
    else:
        # conv shortcut fused as a second in-kernel matmul (no K-concat copy)
        ssc, bsc = _fold_bn(params["bn_sc"])
        wscm = _w_to_mat(params["w_sc"]) * ssc[None, :]
        xs = x[:, ::stride, ::stride, :].reshape(n * ho * wo, cin)
        y = fused_matmul_bias_act(h2, w3m, (b3 + bsc)[None, :],
                                  x2=xs, w2=wscm,
                                  relu=True, out_dtype=jnp.float32)

    y = y[:, :out_c].reshape(n, ho, wo, out_c)
    return jnp.transpose(y, (0, 3, 1, 2))             # -> NCHW


# ---------------------------------------------------------------------------
# Pure-JAX reference (NCHW, lax.conv) for verification
# ---------------------------------------------------------------------------
def _ref_conv_bn(x, w, bn, stride, padding, relu):
    y = jax.lax.conv_general_dilated(
        x, w, (stride, stride), [(padding, padding)] * 2,
        dimension_numbers=("NCHW", "OIHW", "NCHW"))
    scale = bn["gamma"] / jnp.sqrt(bn["var"] + BN_EPS)
    shift = bn["beta"] - bn["mean"] * scale
    y = y * scale[None, :, None, None] + shift[None, :, None, None]
    return jnp.maximum(y, 0.0) if relu else y


def bottleneck_reference(x, params, stride):
    h = _ref_conv_bn(x, params["w1"], params["bn1"], 1, 0, True)
    h = _ref_conv_bn(h, params["w2"], params["bn2"], stride, 1, True)
    h = _ref_conv_bn(h, params["w3"], params["bn3"], 1, 0, False)
    if params["w_sc"] is None:
        sc = x
    else:
        sc = _ref_conv_bn(x, params["w_sc"], params["bn_sc"], stride, 0, False)
    return jnp.maximum(h + sc, 0.0)


# ---------------------------------------------------------------------------
if __name__ == "__main__":
    key = jax.random.PRNGKey(0)
    kx, kp1, kp2 = jax.random.split(key, 3)

    fwd = jax.jit(bottleneck_forward, static_argnums=2)

    # Case 1: downsampling bottleneck (cin != out, stride 2) -> conv shortcut
    n, cin, h, w = 2, 8, 16, 16
    out_c, stride = 16, 2
    x = jax.random.normal(kx, (n, cin, h, w), jnp.float32)
    params = init_bottleneck_params(kp1, cin, out_c, stride)
    y = jax.block_until_ready(fwd(x, params, stride))
    y_ref = bottleneck_reference(x, params, stride)
    assert y.shape == (n, out_c, h // stride, w // stride)
    assert jnp.allclose(y, y_ref, rtol=2e-2, atol=2e-2), "mismatch (downsample case)"

    # Case 2: identity shortcut (cin == out, stride 1)
    params2 = init_bottleneck_params(kp2, out_c, out_c, 1)
    x2 = jax.random.normal(jax.random.PRNGKey(1), (n, out_c, h, w), jnp.float32)
    y2 = jax.block_until_ready(fwd(x2, params2, 1))
    y2_ref = bottleneck_reference(x2, params2, 1)
    assert y2.shape == (n, out_c, h, w)
    assert jnp.allclose(y2, y2_ref, rtol=2e-2, atol=2e-2), "mismatch (identity case)"

    print("KERNEL_OK")
</pallas_src>

<mosaic_0001>
module attributes {stable_mosaic.version = 11 : i64} {
  func.func @_mm_kernel(%arg0: i32, %arg1: i32, %arg2: memref<512x8xbf16, #tpu.memory_space<vmem>>, %arg3: memref<8x128xbf16, #tpu.memory_space<vmem>>, %arg4: memref<1x128xf32, #tpu.memory_space<vmem>>, %arg5: memref<512x128xbf16, #tpu.memory_space<vmem>>) attributes {dimension_semantics = [#tpu.dimension_semantics<parallel>, #tpu.dimension_semantics<parallel>], iteration_bounds = array<i64: 1, 1>, scalar_prefetch = 0 : i64, scratch_operands = 0 : i64, tpu.core_type = #tpu.core_type<tc>, window_params = [{transform_indices = @transform_0, window_bounds = array<i64: 512, 8>}, {transform_indices = @transform_1, window_bounds = array<i64: 8, 128>}, {transform_indices = @transform_2, window_bounds = array<i64: 1, 128>}, {transform_indices = @transform_3, window_bounds = array<i64: 512, 128>}]} {
    %c0 = arith.constant 0 : index
    %c0_0 = arith.constant 0 : index
    %0 = vector.load %arg2[%c0, %c0_0] : memref<512x8xbf16, #tpu.memory_space<vmem>>, vector<512x8xbf16>
    %c0_1 = arith.constant 0 : index
    %c0_2 = arith.constant 0 : index
    %1 = vector.load %arg3[%c0_1, %c0_2] : memref<8x128xbf16, #tpu.memory_space<vmem>>, vector<8x128xbf16>
    %cst = arith.constant dense<0.000000e+00> : vector<512x128xf32>
    %2 = tpu.matmul %0, %1, %cst {dimension_numbers = #tpu.dot_dimension_numbers<[1], [0], [0], [1], [0, 0, 1, 1], [], []>} : vector<512x8xbf16>, vector<8x128xbf16>, vector<512x128xf32> -> vector<512x128xf32>
    %c0_3 = arith.constant 0 : index
    %c0_4 = arith.constant 0 : index
    %3 = vector.load %arg4[%c0_3, %c0_4] : memref<1x128xf32, #tpu.memory_space<vmem>>, vector<1x128xf32>
    %4 = vector.broadcast %3 : vector<1x128xf32> to vector<512x128xf32>
    %5 = arith.addf %2, %4 : vector<512x128xf32>
    %cst_5 = arith.constant 0.000000e+00 : f32
    %6 = vector.broadcast %cst_5 : f32 to vector<512x128xf32>
    %7 = arith.maximumf %5, %6 : vector<512x128xf32>
    %8 = arith.truncf %7 : vector<512x128xf32> to vector<512x128xbf16>
    %c0_6 = arith.constant 0 : index
    %c0_7 = arith.constant 0 : index
    %9 = vector.load %arg5[%c0_6, %c0_7] : memref<512x128xbf16, #tpu.memory_space<vmem>>, vector<512x128xbf16>
    tpu.vector_store %arg5[%c0_6, %c0_7], %8 {strides = array<i32>} : memref<512x128xbf16, #tpu.memory_space<vmem>>, vector<512x128xbf16>,
    return
  }
  func.func @transform_0(%arg0: i32, %arg1: i32) -> (i32, i32) {
    %c0_i32 = arith.constant 0 : i32
    %c0_i32_0 = arith.constant 0 : i32
    return %arg0, %c0_i32 : i32, i32
  }
  func.func @transform_1(%arg0: i32, %arg1: i32) -> (i32, i32) {
    %c0_i32 = arith.constant 0 : i32
    %c0_i32_0 = arith.constant 0 : i32
    return %c0_i32, %arg1 : i32, i32
  }
  func.func @transform_2(%arg0: i32, %arg1: i32) -> (i32, i32) {
    %c0_i32 = arith.constant 0 : i32
    %c0_i32_0 = arith.constant 0 : i32
    return %c0_i32, %arg1 : i32, i32
  }
  func.func @transform_3(%arg0: i32, %arg1: i32) -> (i32, i32) {
    %c0_i32 = arith.constant 0 : i32
    return %arg0, %arg1 : i32, i32
  }
}

module attributes {stable_mosaic.version = 11 : i64} {
  func.func @_conv3x3_kernel(%arg0: i32, %arg1: i32, %arg2: memref<4x9x9x128xbf16, #tpu.memory_space<vmem>>, %arg3: memref<9x128x128xbf16, #tpu.memory_space<vmem>>, %arg4: memref<1x128xf32, #tpu.memory_space<vmem>>, %arg5: memref<1x64x128xbf16, #tpu.memory_space<vmem>>) attributes {dimension_semantics = [#tpu.dimension_semantics<parallel>, #tpu.dimension_semantics<parallel>], iteration_bounds = array<i64: 2, 1>, scalar_prefetch = 0 : i64, scratch_operands = 0 : i64, tpu.core_type = #tpu.core_type<tc>, window_params = [{transform_indices = @transform_0, window_bounds = array<i64: 4, 9, 9, 128>}, {transform_indices = @transform_1, window_bounds = array<i64: 9, 128, 128>}, {transform_indices = @transform_2, window_bounds = array<i64: 1, 128>}, {transform_indices = @transform_3, window_bounds = array<i64: 1, 64, 128>}]} {
    %c0 = arith.constant 0 : index
    %c0_0 = arith.constant 0 : index
    %c0_1 = arith.constant 0 : index
    %c0_2 = arith.constant 0 : index
    %0 = vector.load %arg2[%c0, %c0_0, %c0_1, %c0_2] : memref<4x9x9x128xbf16, #tpu.memory_space<vmem>>, vector<1x8x8x128xbf16>
    %1 = vector.shape_cast %0 : vector<1x8x8x128xbf16> to vector<8x8x128xbf16>
    %2 = vector.shape_cast %1 : vector<8x8x128xbf16> to vector<64x128xbf16>
    %c0_3 = arith.constant 0 : index
    %c0_4 = arith.constant 0 : index
    %c0_5 = arith.constant 0 : index
    %3 = vector.load %arg3[%c0_3, %c0_4, %c0_5] : memref<9x128x128xbf16, #tpu.memory_space<vmem>>, vector<1x128x128xbf16>
    %4 = vector.shape_cast %3 : vector<1x128x128xbf16> to vector<128x128xbf16>
    %cst = arith.constant dense<0.000000e+00> : vector<64x128xf32>
    %5 = tpu.matmul %2, %4, %cst {dimension_numbers = #tpu.dot_dimension_numbers<[1], [0], [0], [1], [0, 0, 1, 1], [], []>} : vector<64x128xbf16>, vector<128x128xbf16>, vector<64x128xf32> -> vector<64x128xf32>
    %c1 = arith.constant 1 : index
    %c0_6 = arith.constant 0 : index
    %c0_7 = arith.constant 0 : index
    %c0_8 = arith.constant 0 : index
    %6 = vector.load %arg2[%c1, %c0_6, %c0_7, %c0_8] : memref<4x9x9x128xbf16, #tpu.memory_space<vmem>>, vector<1x8x8x128xbf16>
    %7 = vector.shape_cast %6 : vector<1x8x8x128xbf16> to vector<8x8x128xbf16>
    %8 = vector.shape_cast %7 : vector<8x8x128xbf16> to vector<64x128xbf16>
    %c1_9 = arith.constant 1 : index
    %c0_10 = arith.constant 0 : index
    %c0_11 = arith.constant 0 : index
    %9 = vector.load %arg3[%c1_9, %c0_10, %c0_11] : memref<9x128x128xbf16, #tpu.memory_space<vmem>>, vector<1x128x128xbf16>
    %10 = vector.shape_cast %9 : vector<1x128x128xbf16> to vector<128x128xbf16>
    %cst_12 = arith.constant dense<0.000000e+00> : vector<64x128xf32>
    %11 = tpu.matmul %8, %10, %cst_12 {dimension_numbers = #tpu.dot_dimension_numbers<[1], [0], [0], [1], [0, 0, 1, 1], [], []>} : vector<64x128xbf16>, vector<128x128xbf16>, vector<64x128xf32> -> vector<64x128xf32>
    %12 = arith.addf %5, %11 : vector<64x128xf32>
    %c0_13 = arith.constant 0 : index
    %c0_14 = arith.constant 0 : index
    %c1_15 = arith.constant 1 : index
    %c0_16 = arith.constant 0 : index
    %13 = vector.load %arg2[%c0_13, %c0_14, %c1_15, %c0_16] : memref<4x9x9x128xbf16, #tpu.memory_space<vmem>>, vector<1x8x8x128xbf16>
    %14 = vector.shape_cast %13 : vector<1x8x8x128xbf16> to vector<8x8x128xbf16>
    %15 = vector.shape_cast %14 : vector<8x8x128xbf16> to vector<64x128xbf16>
    %c2 = arith.constant 2 : index
    %c0_17 = arith.constant 0 : index
    %c0_18 = arith.constant 0 : index
    %16 = vector.load %arg3[%c2, %c0_17, %c0_18] : memref<9x128x128xbf16, #tpu.memory_space<vmem>>, vector<1x128x128xbf16>
    %17 = vector.shape_cast %16 : vector<1x128x128xbf16> to vector<128x128xbf16>
    %cst_19 = arith.constant dense<0.000000e+00> : vector<64x128xf32>
    %18 = tpu.matmul %15, %17, %cst_19 {dimension_numbers = #tpu.dot_dimension_numbers<[1], [0], [0], [1], [0, 0, 1, 1], [], []>} : vector<64x128xbf16>, vector<128x128xbf16>, vector<64x128xf32> -> vector<64x128xf32>
    %19 = arith.addf %12, %18 : vector<64x128xf32>
    %c2_20 = arith.constant 2 : index
    %c0_21 = arith.constant 0 : index
    %c0_22 = arith.constant 0 : index
    %c0_23 = arith.constant 0 : index
    %20 = vector.load %arg2[%c2_20, %c0_21, %c0_22, %c0_23] : memref<4x9x9x128xbf16, #tpu.memory_space<vmem>>, vector<1x8x8x128xbf16>
    %21 = vector.shape_cast %20 : vector<1x8x8x128xbf16> to vector<8x8x128xbf16>
    %22 = vector.shape_cast %21 : vector<8x8x128xbf16> to vector<64x128xbf16>
    %c3 = arith.constant 3 : index
    %c0_24 = arith.constant 0 : index
    %c0_25 = arith.constant 0 : index
    %23 = vector.load %arg3[%c3, %c0_24, %c0_25] : memref<9x128x128xbf16, #tpu.memory_space<vmem>>, vector<1x128x128xbf16>
    %24 = vector.shape_cast %23 : vector<1x128x128xbf16> to vector<128x128xbf16>
    %cst_26 = arith.constant dense<0.000000e+00> : vector<64x128xf32>
    %25 = tpu.matmul %22, %24, %cst_26 {dimension_numbers = #tpu.dot_dimension_numbers<[1], [0], [0], [1], [0, 0, 1, 1], [], []>} : vector<64x128xbf16>, vector<128x128xbf16>, vector<64x128xf32> -> vector<64x128xf32>
    %26 = arith.addf %19, %25 : vector<64x128xf32>
    %c3_27 = arith.constant 3 : index
    %c0_28 = arith.constant 0 : index
    %c0_29 = arith.constant 0 : index
    %c0_30 = arith.constant 0 : index
    %27 = vector.load %arg2[%c3_27, %c0_28, %c0_29, %c0_30] : memref<4x9x9x128xbf16, #tpu.memory_space<vmem>>, vector<1x8x8x128xbf16>
    %28 = vector.shape_cast %27 : vector<1x8x8x128xbf16> to vector<8x8x128xbf16>
    %29 = vector.shape_cast %28 : vector<8x8x128xbf16> to vector<64x128xbf16>
    %c4 = arith.constant 4 : index
    %c0_31 = arith.constant 0 : index
    %c0_32 = arith.constant 0 : index
    %30 = vector.load %arg3[%c4, %c0_31, %c0_32] : memref<9x128x128xbf16, #tpu.memory_space<vmem>>, vector<1x128x128xbf16>
    %31 = vector.shape_cast %30 : vector<1x128x128xbf16> to vector<128x128xbf16>
    %cst_33 = arith.constant dense<0.000000e+00> : vector<64x128xf32>
    %32 = tpu.matmul %29, %31, %cst_33 {dimension_numbers = #tpu.dot_dimension_numbers<[1], [0], [0], [1], [0, 0, 1, 1], [], []>} : vector<64x128xbf16>, vector<128x128xbf16>, vector<64x128xf32> -> vector<64x128xf32>
    %33 = arith.addf %26, %32 : vector<64x128xf32>
    %c2_34 = arith.constant 2 : index
    %c0_35 = arith.constant 0 : index
    %c1_36 = arith.constant 1 : index
    %c0_37 = arith.constant 0 : index
    %34 = vector.load %arg2[%c2_34, %c0_35, %c1_36, %c0_37] : memref<4x9x9x128xbf16, #tpu.memory_space<vmem>>, vector<1x8x8x128xbf16>
    %35 = vector.shape_cast %34 : vector<1x8x8x128xbf16> to vector<8x8x128xbf16>
    %36 = vector.shape_cast %35 : vector<8x8x128xbf16> to vector<64x128xbf16>
    %c5 = arith.constant 5 : index
    %c0_38 = arith.constant 0 : index
    %c0_39 = arith.constant 0 : index
    %37 = vector.load %arg3[%c5, %c0_38, %c0_39] : memref<9x128x128xbf16, #tpu.memory_space<vmem>>, vector<1x128x128xbf16>
    %38 = vector.shape_cast %37 : vector<1x128x128xbf16> to vector<128x128xbf16>
    %cst_40 = arith.constant dense<0.000000e+00> : vector<64x128xf32>
    %39 = tpu.matmul %36, %38, %cst_40 {dimension_numbers = #tpu.dot_dimension_numbers<[1], [0], [0], [1], [0, 0, 1, 1], [], []>} : vector<64x128xbf16>, vector<128x128xbf16>, vector<64x128xf32> -> vector<64x128xf32>
    %40 = arith.addf %33, %39 : vector<64x128xf32>
    %c0_41 = arith.constant 0 : index
    %c1_42 = arith.constant 1 : index
    %c0_43 = arith.constant 0 : index
    %c0_44 = arith.constant 0 : index
    %41 = vector.load %arg2[%c0_41, %c1_42, %c0_43, %c0_44] : memref<4x9x9x128xbf16, #tpu.memory_space<vmem>>, vector<1x8x8x128xbf16>
    %42 = vector.shape_cast %41 : vector<1x8x8x128xbf16> to vector<8x8x128xbf16>
    %43 = vector.shape_cast %42 : vector<8x8x128xbf16> to vector<64x128xbf16>
    %c6 = arith.constant 6 : index
    %c0_45 = arith.constant 0 : index
    %c0_46 = arith.constant 0 : index
    %44 = vector.load %arg3[%c6, %c0_45, %c0_46] : memref<9x128x128xbf16, #tpu.memory_space<vmem>>, vector<1x128x128xbf16>
    %45 = vector.shape_cast %44 : vector<1x128x128xbf16> to vector<128x128xbf16>
    %cst_47 = arith.constant dense<0.000000e+00> : vector<64x128xf32>
    %46 = tpu.matmul %43, %45, %cst_47 {dimension_numbers = #tpu.dot_dimension_numbers<[1], [0], [0], [1], [0, 0, 1, 1], [], []>} : vector<64x128xbf16>, vector<128x128xbf16>, vector<64x128xf32> -> vector<64x128xf32>
    %47 = arith.addf %40, %46 : vector<64x128xf32>
    %c1_48 = arith.constant 1 : index
    %c1_49 = arith.constant 1 : index
    %c0_50 = arith.constant 0 : index
    %c0_51 = arith.constant 0 : index
    %48 = vector.load %arg2[%c1_48, %c1_49, %c0_50, %c0_51] : memref<4x9x9x128xbf16, #tpu.memory_space<vmem>>, vector<1x8x8x128xbf16>
    %49 = vector.shape_cast %48 : vector<1x8x8x128xbf16> to vector<8x8x128xbf16>
    %50 = vector.shape_cast %49 : vector<8x8x128xbf16> to vector<64x128xbf16>
    %c7 = arith.constant 7 : index
    %c0_52 = arith.constant 0 : index
    %c0_53 = arith.constant 0 : index
    %51 = vector.load %arg3[%c7, %c0_52, %c0_53] : memref<9x128x128xbf16, #tpu.memory_space<vmem>>, vector<1x128x128xbf16>
    %52 = vector.shape_cast %51 : vector<1x128x128xbf16> to vector<128x128xbf16>
    %cst_54 = arith.constant dense<0.000000e+00> : vector<64x128xf32>
    %53 = tpu.matmul %50, %52, %cst_54 {dimension_numbers = #tpu.dot_dimension_numbers<[1], [0], [0], [1], [0, 0, 1, 1], [], []>} : vector<64x128xbf16>, vector<128x128xbf16>, vector<64x128xf32> -> vector<64x128xf32>
    %54 = arith.addf %47, %53 : vector<64x128xf32>
    %c0_55 = arith.constant 0 : index
    %c1_56 = arith.constant 1 : index
    %c1_57 = arith.constant 1 : index
    %c0_58 = arith.constant 0 : index
    %55 = vector.load %arg2[%c0_55, %c1_56, %c1_57, %c0_58] : memref<4x9x9x128xbf16, #tpu.memory_space<vmem>>, vector<1x8x8x128xbf16>
    %56 = vector.shape_cast %55 : vector<1x8x8x128xbf16> to vector<8x8x128xbf16>
    %57 = vector.shape_cast %56 : vector<8x8x128xbf16> to vector<64x128xbf16>
    %c8 = arith.constant 8 : index
    %c0_59 = arith.constant 0 : index
    %c0_60 = arith.constant 0 : index
    %58 = vector.load %arg3[%c8, %c0_59, %c0_60] : memref<9x128x128xbf16, #tpu.memory_space<vmem>>, vector<1x128x128xbf16>
    %59 = vector.shape_cast %58 : vector<1x128x128xbf16> to vector<128x128xbf16>
    %cst_61 = arith.constant dense<0.000000e+00> : vector<64x128xf32>
    %60 = tpu.matmul %57, %59, %cst_61 {dimension_numbers = #tpu.dot_dimension_numbers<[1], [0], [0], [1], [0, 0, 1, 1], [], []>} : vector<64x128xbf16>, vector<128x128xbf16>, vector<64x128xf32> -> vector<64x128xf32>
    %61 = arith.addf %54, %60 : vector<64x128xf32>
    %c0_62 = arith.constant 0 : index
    %c0_63 = arith.constant 0 : index
    %62 = vector.load %arg4[%c0_62, %c0_63] : memref<1x128xf32, #tpu.memory_space<vmem>>, vector<1x128xf32>
    %63 = vector.broadcast %62 : vector<1x128xf32> to vector<64x128xf32>
    %64 = arith.addf %61, %63 : vector<64x128xf32>
    %cst_64 = arith.constant 0.000000e+00 : f32
    %65 = vector.broadcast %cst_64 : f32 to vector<64x128xf32>
    %66 = arith.maximumf %64, %65 : vector<64x128xf32>
    %67 = arith.truncf %66 : vector<64x128xf32> to vector<64x128xbf16>
    %c0_65 = arith.constant 0 : index
    %c0_66 = arith.constant 0 : index
    %c0_67 = arith.constant 0 : index
    %68 = vector.load %arg5[%c0_65, %c0_66, %c0_67] : memref<1x64x128xbf16, #tpu.memory_space<vmem>>, vector<1x64x128xbf16>
    %69 = vector.shape_cast %68 : vector<1x64x128xbf16> to vector<64x128xbf16>
    %70 = vector.shape_cast %67 : vector<64x128xbf16> to vector<1x64x128xbf16>
    tpu.vector_store %arg5[%c0_65, %c0_66, %c0_67], %70 {strides = array<i32>} : memref<1x64x128xbf16, #tpu.memory_space<vmem>>, vector<1x64x128xbf16>,
    return
  }
  func.func @transform_0(%arg0: i32, %arg1: i32) -> (i32, i32, i32, i32) {
    %c0_i32 = arith.constant 0 : i32
    %c0_i32_0 = arith.constant 0 : i32
    %c0_i32_1 = arith.constant 0 : i32
    %c0_i32_2 = arith.constant 0 : i32
    return %arg0, %c0_i32, %c0_i32_0, %c0_i32_1 : i32, i32, i32, i32
  }
  func.func @transform_1(%arg0: i32, %arg1: i32) -> (i32, i32, i32) {
    %c0_i32 = arith.constant 0 : i32
    %c0_i32_0 = arith.constant 0 : i32
    %c0_i32_1 = arith.constant 0 : i32
    return %c0_i32, %c0_i32_0, %arg1 : i32, i32, i32
  }
  func.func @transform_2(%arg0: i32, %arg1: i32) -> (i32, i32) {
    %c0_i32 = arith.constant 0 : i32
    %c0_i32_0 = arith.constant 0 : i32
    return %c0_i32, %arg1 : i32, i32
  }
  func.func @transform_3(%arg0: i32, %arg1: i32) -> (i32, i32, i32) {
    %c0_i32 = arith.constant 0 : i32
    %c0_i32_0 = arith.constant 0 : i32
    return %arg0, %c0_i32, %arg1 : i32, i32, i32
  }
}

module attributes {stable_mosaic.version = 11 : i64} {
  func.func @_mm_dual_kernel(%arg0: i32, %arg1: i32, %arg2: memref<128x128xbf16, #tpu.memory_space<vmem>>, %arg3: memref<128x128xbf16, #tpu.memory_space<vmem>>, %arg4: memref<128x8xbf16, #tpu.memory_space<vmem>>, %arg5: memref<8x128xbf16, #tpu.memory_space<vmem>>, %arg6: memref<1x128xf32, #tpu.memory_space<vmem>>, %arg7: memref<128x128xf32, #tpu.memory_space<vmem>>) attributes {dimension_semantics = [#tpu.dimension_semantics<parallel>, #tpu.dimension_semantics<parallel>], iteration_bounds = array<i64: 1, 1>, scalar_prefetch = 0 : i64, scratch_operands = 0 : i64, tpu.core_type = #tpu.core_type<tc>, window_params = [{transform_indices = @transform_0, window_bounds = array<i64: 128, 128>}, {transform_indices = @transform_1, window_bounds = array<i64: 128, 128>}, {transform_indices = @transform_2, window_bounds = array<i64: 128, 8>}, {transform_indices = @transform_3, window_bounds = array<i64: 8, 128>}, {transform_indices = @transform_4, window_bounds = array<i64: 1, 128>}, {transform_indices = @transform_5, window_bounds = array<i64: 128, 128>}]} {
    %c0 = arith.constant 0 : index
    %c0_0 = arith.constant 0 : index
    %0 = vector.load %arg2[%c0, %c0_0] : memref<128x128xbf16, #tpu.memory_space<vmem>>, vector<128x128xbf16>
    %c0_1 = arith.constant 0 : index
    %c0_2 = arith.constant 0 : index
    %1 = vector.load %arg3[%c0_1, %c0_2] : memref<128x128xbf16, #tpu.memory_space<vmem>>, vector<128x128xbf16>
    %cst = arith.constant dense<0.000000e+00> : vector<128x128xf32>
    %2 = tpu.matmul %0, %1, %cst {dimension_numbers = #tpu.dot_dimension_numbers<[1], [0], [0], [1], [0, 0, 1, 1], [], []>} : vector<128x128xbf16>, vector<128x128xbf16>, vector<128x128xf32> -> vector<128x128xf32>
    %c0_3 = arith.constant 0 : index
    %c0_4 = arith.constant 0 : index
    %3 = vector.load %arg4[%c0_3, %c0_4] : memref<128x8xbf16, #tpu.memory_space<vmem>>, vector<128x8xbf16>
    %c0_5 = arith.constant 0 : index
    %c0_6 = arith.constant 0 : index
    %4 = vector.load %arg5[%c0_5, %c0_6] : memref<8x128xbf16, #tpu.memory_space<vmem>>, vector<8x128xbf16>
    %cst_7 = arith.constant dense<0.000000e+00> : vector<128x128xf32>
    %5 = tpu.matmul %3, %4, %cst_7 {dimension_numbers = #tpu.dot_dimension_numbers<[1], [0], [0], [1], [0, 0, 1, 1], [], []>} : vector<128x8xbf16>, vector<8x128xbf16>, vector<128x128xf32> -> vector<128x128xf32>
    %6 = arith.addf %2, %5 : vector<128x128xf32>
    %c0_8 = arith.constant 0 : index
    %c0_9 = arith.constant 0 : index
    %7 = vector.load %arg6[%c0_8, %c0_9] : memref<1x128xf32, #tpu.memory_space<vmem>>, vector<1x128xf32>
    %8 = vector.broadcast %7 : vector<1x128xf32> to vector<128x128xf32>
    %9 = arith.addf %6, %8 : vector<128x128xf32>
    %cst_10 = arith.constant 0.000000e+00 : f32
    %10 = vector.broadcast %cst_10 : f32 to vector<128x128xf32>
    %11 = arith.maximumf %9, %10 : vector<128x128xf32>
    %c0_11 = arith.constant 0 : index
    %c0_12 = arith.constant 0 : index
    %12 = vector.load %arg7[%c0_11, %c0_12] : memref<128x128xf32, #tpu.memory_space<vmem>>, vector<128x128xf32>
    tpu.vector_store %arg7[%c0_11, %c0_12], %11 {strides = array<i32>} : memref<128x128xf32, #tpu.memory_space<vmem>>, vector<128x128xf32>,
    return
  }
  func.func @transform_0(%arg0: i32, %arg1: i32) -> (i32, i32) {
    %c0_i32 = arith.constant 0 : i32
    %c0_i32_0 = arith.constant 0 : i32
    return %arg0, %c0_i32 : i32, i32
  }
  func.func @transform_1(%arg0: i32, %arg1: i32) -> (i32, i32) {
    %c0_i32 = arith.constant 0 : i32
    %c0_i32_0 = arith.constant 0 : i32
    return %c0_i32, %arg1 : i32, i32
  }
  func.func @transform_2(%arg0: i32, %arg1: i32) -> (i32, i32) {
    %c0_i32 = arith.constant 0 : i32
    %c0_i32_0 = arith.constant 0 : i32
    return %arg0, %c0_i32 : i32, i32
  }
  func.func @transform_3(%arg0: i32, %arg1: i32) -> (i32, i32) {
    %c0_i32 = arith.constant 0 : i32
    %c0_i32_0 = arith.constant 0 : i32
    return %c0_i32, %arg1 : i32, i32
  }
  func.func @transform_4(%arg0: i32, %arg1: i32) -> (i32, i32) {
    %c0_i32 = arith.constant 0 : i32
    %c0_i32_0 = arith.constant 0 : i32
    return %c0_i32, %arg1 : i32, i32
  }
  func.func @transform_5(%arg0: i32, %arg1: i32) -> (i32, i32) {
    %c0_i32 = arith.constant 0 : i32
    return %arg0, %arg1 : i32, i32
  }
}

</mosaic_0001>

<llo_original>
// kernel: bottleneck_forward.3
$region0: #{bottleneck_forward.3}
  #allocation0 [shape = 'u32[]', space=smem, size = 0x4, offset = 0x4, fixed_abs, tag = 'smem constant byte address 0x4 - core index']
  #allocation1 [shape = 'u32[144,128]{1,0:T(1,128)}', space=vmem, size = 0x12000, scoped, tag = 'internal scratch']
  %s0 = inlined_call_operand.vmem [shape: bf16[512,8], index: 0, kind: input, shape index: {}]
  %s1 = inlined_call_operand.vmem [shape: bf16[8,128], index: 1, kind: input, shape index: {}]
  %s2 = inlined_call_operand.vmem [shape: f32[1,128], index: 2, kind: input, shape index: {}]
  %s3 = inlined_call_operand.vmem [shape: bf16[512,128], index: 3, kind: output, shape index: {}]
  %s4 = sld [smem:[#allocation0]]
  $region22: #{bottleneck_forward.3} parent=0
    _
  %s6 = ssub.s32 1, %s4
  %s7 = scalar_select 0, %s6, %s4
  // Predicated region
  $region2: #{bottleneck_forward.3} parent=0 // pred_check
    _
  $region3: #{bottleneck_forward.3} parent=0 // pred_check_branch
    %9 = sbr.rel (0) target = $region5
  $region4: #{bottleneck_forward.3} parent=0 // pred_region
    _
  $region5: #{bottleneck_forward.3} parent=0 // pred_fallthru
    _
  // Predicated region
  $region6: #{bottleneck_forward.3} parent=0 // pred_check
    _
  $region7: #{bottleneck_forward.3} parent=0 // pred_check_branch
    %11 = sbr.rel (0) target = $region9
  $region8: #{bottleneck_forward.3} parent=0 // pred_region
    _
  $region9: #{bottleneck_forward.3} parent=0 // pred_fallthru
    _
  // Predicated region
  $region10: #{bottleneck_forward.3} parent=0 // pred_check
    _
  $region11: #{bottleneck_forward.3} parent=0 // pred_check_branch
    %13 = sbr.rel (0) target = $region13
  $region12: #{bottleneck_forward.3} parent=0 // pred_region
    _
  $region13: #{bottleneck_forward.3} parent=0 // pred_fallthru
    _
  %v15 = vld [vmem:[%s0] sm:$0xf]
  %v16 = vld [vmem:[%s0 + $0x4] sm:$0xf]
  %v17 = vld [vmem:[%s0 + $0x8] sm:$0xf]
  %v18 = vld [vmem:[%s0 + $0xc] sm:$0xf]
  %v19 = vld [vmem:[%s0 + $0x10] sm:$0xf]
  %v20 = vld [vmem:[%s0 + $0x14] sm:$0xf]
  %v21 = vld [vmem:[%s0 + $0x18] sm:$0xf]
  %v22 = vld [vmem:[%s0 + $0x1c] sm:$0xf]
  %v23 = vld [vmem:[%s0 + $0x20] sm:$0xf]
  %v24 = vld [vmem:[%s0 + $0x24] sm:$0xf]
  %v25 = vld [vmem:[%s0 + $0x28] sm:$0xf]
  %v26 = vld [vmem:[%s0 + $0x2c] sm:$0xf]
  %v27 = vld [vmem:[%s0 + $0x30] sm:$0xf]
  %v28 = vld [vmem:[%s0 + $0x34] sm:$0xf]
  %v29 = vld [vmem:[%s0 + $0x38] sm:$0xf]
  %v30 = vld [vmem:[%s0 + $0x3c] sm:$0xf]
  %v31 = vld [vmem:[%s0 + $0x40] sm:$0xf]
  %v32 = vld [vmem:[%s0 + $0x44] sm:$0xf]
  %v33 = vld [vmem:[%s0 + $0x48] sm:$0xf]
  %v34 = vld [vmem:[%s0 + $0x4c] sm:$0xf]
  %v35 = vld [vmem:[%s0 + $0x50] sm:$0xf]
  %v36 = vld [vmem:[%s0 + $0x54] sm:$0xf]
  %v37 = vld [vmem:[%s0 + $0x58] sm:$0xf]
  %v38 = vld [vmem:[%s0 + $0x5c] sm:$0xf]
  %v39 = vld [vmem:[%s0 + $0x60] sm:$0xf]
  %v40 = vld [vmem:[%s0 + $0x64] sm:$0xf]
  %v41 = vld [vmem:[%s0 + $0x68] sm:$0xf]
  %v42 = vld [vmem:[%s0 + $0x6c] sm:$0xf]
  %v43 = vld [vmem:[%s0 + $0x70] sm:$0xf]
  %v44 = vld [vmem:[%s0 + $0x74] sm:$0xf]
  %v45 = vld [vmem:[%s0 + $0x78] sm:$0xf]
  %v46 = vld [vmem:[%s0 + $0x7c] sm:$0xf]
  %v47 = vld [vmem:[%s0 + $0x80] sm:$0xf]
  %v48 = vld [vmem:[%s0 + $0x84] sm:$0xf]
  %v49 = vld [vmem:[%s0 + $0x88] sm:$0xf]
  %v50 = vld [vmem:[%s0 + $0x8c] sm:$0xf]
  %v51 = vld [vmem:[%s0 + $0x90] sm:$0xf]
  %v52 = vld [vmem:[%s0 + $0x94] sm:$0xf]
  %v53 = vld [vmem:[%s0 + $0x98] sm:$0xf]
  %v54 = vld [vmem:[%s0 + $0x9c] sm:$0xf]
  %v55 = vld [vmem:[%s0 + $0xa0] sm:$0xf]
  %v56 = vld [vmem:[%s0 + $0xa4] sm:$0xf]
  %v57 = vld [vmem:[%s0 + $0xa8] sm:$0xf]
  %v58 = vld [vmem:[%s0 + $0xac] sm:$0xf]
  %v59 = vld [vmem:[%s0 + $0xb0] sm:$0xf]
  %v60 = vld [vmem:[%s0 + $0xb4] sm:$0xf]
  %v61 = vld [vmem:[%s0 + $0xb8] sm:$0xf]
  %v62 = vld [vmem:[%s0 + $0xbc] sm:$0xf]
  %v63 = vld [vmem:[%s0 + $0xc0] sm:$0xf]
  %v64 = vld [vmem:[%s0 + $0xc4] sm:$0xf]
  %v65 = vld [vmem:[%s0 + $0xc8] sm:$0xf]
  %v66 = vld [vmem:[%s0 + $0xcc] sm:$0xf]
  %v67 = vld [vmem:[%s0 + $0xd0] sm:$0xf]
  %v68 = vld [vmem:[%s0 + $0xd4] sm:$0xf]
  %v69 = vld [vmem:[%s0 + $0xd8] sm:$0xf]
  %v70 = vld [vmem:[%s0 + $0xdc] sm:$0xf]
  %v71 = vld [vmem:[%s0 + $0xe0] sm:$0xf]
  %v72 = vld [vmem:[%s0 + $0xe4] sm:$0xf]
  %v73 = vld [vmem:[%s0 + $0xe8] sm:$0xf]
  %v74 = vld [vmem:[%s0 + $0xec] sm:$0xf]
  %v75 = vld [vmem:[%s0 + $0xf0] sm:$0xf]
  %v76 = vld [vmem:[%s0 + $0xf4] sm:$0xf]
  %v77 = vld [vmem:[%s0 + $0xf8] sm:$0xf]
  %v78 = vld [vmem:[%s0 + $0xfc] sm:$0xf]
  %v79 = vld [vmem:[%s1] sm:$0xf]
  %v80 = vld [vmem:[%s2] sm:$0x1]
  %v82 = vlaneseq
  %v83 = vshrl.u32 %v82, 7
  %v84 = vsub.s32 0, %v83
  %v85 = vrot.slane %v80, %v84
  %v151 = vunpack.c.l.b16 %v15
  %v152 = vunpack.c.l.b16 %v16
  %v153 = vunpack.c.l.b16 %v17
  %v154 = vunpack.c.l.b16 %v18
  %v155 = vunpack.c.l.b16 %v19
  %v156 = vunpack.c.l.b16 %v20
  %v157 = vunpack.c.l.b16 %v21
  %v158 = vunpack.c.l.b16 %v22
  %v159 = vunpack.c.l.b16 %v23
  %v160 = vunpack.c.l.b16 %v24
  %v161 = vunpack.c.l.b16 %v25
  %v162 = vunpack.c.l.b16 %v26
  %v163 = vunpack.c.l.b16 %v27
  %v164 = vunpack.c.l.b16 %v28
  %v165 = vunpack.c.l.b16 %v29
  %v166 = vunpack.c.l.b16 %v30
  %v167 = vunpack.c.l.b16 %v31
  %v168 = vunpack.c.l.b16 %v32
  %v169 = vunpack.c.l.b16 %v33
  %v170 = vunpack.c.l.b16 %v34
  %v171 = vunpack.c.l.b16 %v35
  %v172 = vunpack.c.l.b16 %v36
  %v173 = vunpack.c.l.b16 %v37
  %v174 = vunpack.c.l.b16 %v38
  %v175 = vunpack.c.l.b16 %v39
  %v176 = vunpack.c.l.b16 %v40
  %v177 = vunpack.c.l.b16 %v41
  %v178 = vunpack.c.l.b16 %v42
  %v179 = vunpack.c.l.b16 %v43
  %v180 = vunpack.c.l.b16 %v44
  %v181 = vunpack.c.l.b16 %v45
  %v182 = vunpack.c.l.b16 %v46
  %v183 = vunpack.c.l.b16 %v47
  %v184 = vunpack.c.l.b16 %v48
  %v185 = vunpack.c.l.b16 %v49
  %v186 = vunpack.c.l.b16 %v50
  %v187 = vunpack.c.l.b16 %v51
  %v188 = vunpack.c.l.b16 %v52
  %v189 = vunpack.c.l.b16 %v53
  %v190 = vunpack.c.l.b16 %v54
  %v191 = vunpack.c.l.b16 %v55
  %v192 = vunpack.c.l.b16 %v56
  %v193 = vunpack.c.l.b16 %v57
  %v194 = vunpack.c.l.b16 %v58
  %v195 = vunpack.c.l.b16 %v59
  %v196 = vunpack.c.l.b16 %v60
  %v197 = vunpack.c.l.b16 %v61
  %v198 = vunpack.c.l.b16 %v62
  %v199 = vunpack.c.l.b16 %v63
  %v200 = vunpack.c.l.b16 %v64
  %v201 = vunpack.c.l.b16 %v65
  %v202 = vunpack.c.l.b16 %v66
  %v203 = vunpack.c.l.b16 %v67
  %v204 = vunpack.c.l.b16 %v68
  %v205 = vunpack.c.l.b16 %v69
  %v206 = vunpack.c.l.b16 %v70
  %v207 = vunpack.c.l.b16 %v71
  %v208 = vunpack.c.l.b16 %v72
  %v209 = vunpack.c.l.b16 %v73
  %v210 = vunpack.c.l.b16 %v74
  %v211 = vunpack.c.l.b16 %v75
  %v212 = vunpack.c.l.b16 %v76
  %v213 = vunpack.c.l.b16 %v77
  %v214 = vunpack.c.l.b16 %v78
  %v215 = vpack.c.b16 %v152, %v151
  %v216 = vpack.c.b16 %v154, %v153
  %v217 = vpack.c.b16 %v156, %v155
  %v218 = vpack.c.b16 %v158, %v157
  %v219 = vpack.c.b16 %v160, %v159
  %v220 = vpack.c.b16 %v162, %v161
  %v221 = vpack.c.b16 %v164, %v163
  %v222 = vpack.c.b16 %v166, %v165
  %v223 = vpack.c.b16 %v168, %v167
  %v224 = vpack.c.b16 %v170, %v169
  %v225 = vpack.c.b16 %v172, %v171
  %v226 = vpack.c.b16 %v174, %v173
  %v227 = vpack.c.b16 %v176, %v175
  %v228 = vpack.c.b16 %v178, %v177
  %v229 = vpack.c.b16 %v180, %v179
  %v230 = vpack.c.b16 %v182, %v181
  %v231 = vpack.c.b16 %v184, %v183
  %v232 = vpack.c.b16 %v186, %v185
  %v233 = vpack.c.b16 %v188, %v187
  %v234 = vpack.c.b16 %v190, %v189
  %v235 = vpack.c.b16 %v192, %v191
  %v236 = vpack.c.b16 %v194, %v193
  %v237 = vpack.c.b16 %v196, %v195
  %v238 = vpack.c.b16 %v198, %v197
  %v239 = vpack.c.b16 %v200, %v199
  %v240 = vpack.c.b16 %v202, %v201
  %v241 = vpack.c.b16 %v204, %v203
  %v242 = vpack.c.b16 %v206, %v205
  %v243 = vpack.c.b16 %v208, %v207
  %v244 = vpack.c.b16 %v210, %v209
  %v245 = vpack.c.b16 %v212, %v211
  %v246 = vpack.c.b16 %v214, %v213
  %vm247 = vcmask 64512
  %v249 = vsel %vm247, %v215, 0
  %v252 = vsel %vm247, %v216, 0
  %v255 = vsel %vm247, %v217, 0
  %v258 = vsel %vm247, %v218, 0
  %v261 = vsel %vm247, %v219, 0
  %v264 = vsel %vm247, %v220, 0
  %v267 = vsel %vm247, %v221, 0
  %v270 = vsel %vm247, %v222, 0
  %v273 = vsel %vm247, %v223, 0
  %v276 = vsel %vm247, %v224, 0
  %v279 = vsel %vm247, %v225, 0
  %v282 = vsel %vm247, %v226, 0
  %v285 = vsel %vm247, %v227, 0
  %v288 = vsel %vm247, %v228, 0
  %v291 = vsel %vm247, %v229, 0
  %v294 = vsel %vm247, %v230, 0
  %v297 = vsel %vm247, %v231, 0
  %v300 = vsel %vm247, %v232, 0
  %v303 = vsel %vm247, %v233, 0
  %v306 = vsel %vm247, %v234, 0
  %v309 = vsel %vm247, %v235, 0
  %v312 = vsel %vm247, %v236, 0
  %v315 = vsel %vm247, %v237, 0
  %v318 = vsel %vm247, %v238, 0
  %v321 = vsel %vm247, %v239, 0
  %v324 = vsel %vm247, %v240, 0
  %v327 = vsel %vm247, %v241, 0
  %v330 = vsel %vm247, %v242, 0
  %v333 = vsel %vm247, %v243, 0
  %v336 = vsel %vm247, %v244, 0
  %v339 = vsel %vm247, %v245, 0
  %v342 = vsel %vm247, %v246, 0
  %vm344 = vcmask 1043456
  %v346 = vsel %vm344, %v79, 0
  %348 = vmatprep.subr.bf16.mxu0 0
  %349 = vmatpush1.bf16.msra.mxu0 %v346
  %350 = vmatprep.subr.bf16.mxu0 0
  %351 = vmatpush1.bf16.msra.mxu0 0
  %352 = vmatprep.subr.bf16.mxu0 0
  %353 = vmatpush1.bf16.msra.mxu0 0
  %354 = vmatprep.subr.bf16.mxu0 0
  %355 = vmatpush1.bf16.msra.mxu0 0
  %356 = vmatprep.subr.bf16.mxu0 0
  %357 = vmatpush1.bf16.msra.mxu0 0
  %358 = vmatprep.subr.bf16.mxu0 0
  %359 = vmatpush1.bf16.msra.mxu0 0
  %360 = vmatprep.subr.bf16.mxu0 0
  %361 = vmatpush1.bf16.msra.mxu0 0
  %362 = vmatprep.subr.bf16.mxu0 0
  %363 = vmatpush1.bf16.msra.mxu0 0
  %364 = vmatprep.subr.bf16.mxu0 0
  %365 = vmatpush1.bf16.msra.mxu0 0
  %366 = vmatprep.subr.bf16.mxu0 0
  %367 = vmatpush1.bf16.msra.mxu0 0
  %368 = vmatprep.subr.bf16.mxu0 0
  %369 = vmatpush1.bf16.msra.mxu0 0
  %370 = vmatprep.subr.bf16.mxu0 0
  %371 = vmatpush1.bf16.msra.mxu0 0
  %372 = vmatprep.subr.bf16.mxu0 0
  %373 = vmatpush1.bf16.msra.mxu0 0
  %374 = vmatprep.subr.bf16.mxu0 0
  %375 = vmatpush1.bf16.msra.mxu0 0
  %376 = vmatprep.subr.bf16.mxu0 0
  %377 = vmatpush1.bf16.msra.mxu0 0
  %378 = vmatprep.subr.bf16.mxu0 0
  %379 = vmatpush1.bf16.msra.mxu0 0
  %380 = vmatprep.mubr.bf16.mxu0 0
  %381 = vmatmul.mubr.bf16.gmra.mrb[0].mxu0 %v249
  %v382 = vpop.f32.mrb[0].mxu0
  %v383 = vadd.f32 %v85, %v382
  %v384 = vpop.f32.mrb[0].mxu0
  %v385 = vpop.f32.mrb[0].mxu0
  %v386 = vadd.f32 %v85, %v385
  %v387 = vpop.f32.mrb[0].mxu0
  %388 = vmatprep.mubr.bf16.mxu0 0
  %389 = vmatmul.mubr.bf16.gmra.mrb[0].mxu0 %v252
  %v390 = vpop.f32.mrb[0].mxu0
  %v391 = vadd.f32 %v85, %v390
  %v392 = vpop.f32.mrb[0].mxu0
  %v393 = vpop.f32.mrb[0].mxu0
  %v394 = vadd.f32 %v85, %v393
  %v395 = vpop.f32.mrb[0].mxu0
  %396 = vmatprep.mubr.bf16.mxu0 0
  %397 = vmatmul.mubr.bf16.gmra.mrb[0].mxu0 %v255
  %v398 = vpop.f32.mrb[0].mxu0
  %v399 = vadd.f32 %v85, %v398
  %v400 = vpop.f32.mrb[0].mxu0
  %v401 = vpop.f32.mrb[0].mxu0
  %v402 = vadd.f32 %v85, %v401
  %v403 = vpop.f32.mrb[0].mxu0
  %404 = vmatprep.mubr.bf16.mxu0 0
  %405 = vmatmul.mubr.bf16.gmra.mrb[0].mxu0 %v258
  %v406 = vpop.f32.mrb[0].mxu0
  %v407 = vadd.f32 %v85, %v406
  %v408 = vpop.f32.mrb[0].mxu0
  %v409 = vpop.f32.mrb[0].mxu0
  %v410 = vadd.f32 %v85, %v409
  %v411 = vpop.f32.mrb[0].mxu0
  %412 = vmatprep.mubr.bf16.mxu0 0
  %413 = vmatmul.mubr.bf16.gmra.mrb[0].mxu0 %v261
  %v414 = vpop.f32.mrb[0].mxu0
  %v415 = vadd.f32 %v85, %v414
  %v416 = vpop.f32.mrb[0].mxu0
  %v417 = vpop.f32.mrb[0].mxu0
  %v418 = vadd.f32 %v85, %v417
  %v419 = vpop.f32.mrb[0].mxu0
  %420 = vmatprep.mubr.bf16.mxu0 0
  %421 = vmatmul.mubr.bf16.gmra.mrb[0].mxu0 %v264
  %v422 = vpop.f32.mrb[0].mxu0
  %v423 = vadd.f32 %v85, %v422
  %v424 = vpop.f32.mrb[0].mxu0
  %v425 = vpop.f32.mrb[0].mxu0
  %v426 = vadd.f32 %v85, %v425
  %v427 = vpop.f32.mrb[0].mxu0
  %428 = vmatprep.mubr.bf16.mxu0 0
  %429 = vmatmul.mubr.bf16.gmra.mrb[0].mxu0 %v267
  %v430 = vpop.f32.mrb[0].mxu0
  %v431 = vadd.f32 %v85, %v430
  %v432 = vpop.f32.mrb[0].mxu0
  %v433 = vpop.f32.mrb[0].mxu0
  %v434 = vadd.f32 %v85, %v433
  %v435 = vpop.f32.mrb[0].mxu0
  %436 = vmatprep.mubr.bf16.mxu0 0
  %437 = vmatmul.mubr.bf16.gmra.mrb[0].mxu0 %v270
  %v438 = vpop.f32.mrb[0].mxu0
  %v439 = vadd.f32 %v85, %v438
  %v440 = vpop.f32.mrb[0].mxu0
  %v441 = vpop.f32.mrb[0].mxu0
  %v442 = vadd.f32 %v85, %v441
  %v443 = vpop.f32.mrb[0].mxu0
  %444 = vmatprep.mubr.bf16.mxu0 0
  %445 = vmatmul.mubr.bf16.gmra.mrb[0].mxu0 %v273
  %v446 = vpop.f32.mrb[0].mxu0
  %v447 = vadd.f32 %v85, %v446
  %v448 = vpop.f32.mrb[0].mxu0
  %v449 = vpop.f32.mrb[0].mxu0
  %v450 = vadd.f32 %v85, %v449
  %v451 = vpop.f32.mrb[0].mxu0
  %452 = vmatprep.mubr.bf16.mxu0 0
  %453 = vmatmul.mubr.bf16.gmra.mrb[0].mxu0 %v276
  %v454 = vpop.f32.mrb[0].mxu0
  %v455 = vadd.f32 %v85, %v454
  %v456 = vpop.f32.mrb[0].mxu0
  %v457 = vpop.f32.mrb[0].mxu0
  %v458 = vadd.f32 %v85, %v457
  %v459 = vpop.f32.mrb[0].mxu0
  %460 = vmatprep.mubr.bf16.mxu0 0
  %461 = vmatmul.mubr.bf16.gmra.mrb[0].mxu0 %v279
  %v462 = vpop.f32.mrb[0].mxu0
  %v463 = vadd.f32 %v85, %v462
  %v464 = vpop.f32.mrb[0].mxu0
  %v465 = vpop.f32.mrb[0].mxu0
  %v466 = vadd.f32 %v85, %v465
  %v467 = vpop.f32.mrb[0].mxu0
  %468 = vmatprep.mubr.bf16.mxu0 0
  %469 = vmatmul.mubr.bf16.gmra.mrb[0].mxu0 %v282
  %v470 = vpop.f32.mrb[0].mxu0
  %v471 = vadd.f32 %v85, %v470
  %v472 = vpop.f32.mrb[0].mxu0
  %v473 = vpop.f32.mrb[0].mxu0
  %v474 = vadd.f32 %v85, %v473
  %v475 = vpop.f32.mrb[0].mxu0
  %476 = vmatprep.mubr.bf16.mxu0 0
  %477 = vmatmul.mubr.bf16.gmra.mrb[0].mxu0 %v285
  %v478 = vpop.f32.mrb[0].mxu0
  %v479 = vadd.f32 %v85, %v478
  %v480 = vpop.f32.mrb[0].mxu0
  %v481 = vpop.f32.mrb[0].mxu0
  %v482 = vadd.f32 %v85, %v481
  %v483 = vpop.f32.mrb[0].mxu0
  %484 = vmatprep.mubr.bf16.mxu0 0
  %485 = vmatmul.mubr.bf16.gmra.mrb[0].mxu0 %v288
  %v486 = vpop.f32.mrb[0].mxu0
  %v487 = vadd.f32 %v85, %v486
  %v488 = vpop.f32.mrb[0].mxu0
  %v489 = vpop.f32.mrb[0].mxu0
  %v490 = vadd.f32 %v85, %v489
  %v491 = vpop.f32.mrb[0].mxu0
  %492 = vmatprep.mubr.bf16.mxu0 0
  %493 = vmatmul.mubr.bf16.gmra.mrb[0].mxu0 %v291
  %v494 = vpop.f32.mrb[0].mxu0
  %v495 = vadd.f32 %v85, %v494
  %v496 = vpop.f32.mrb[0].mxu0
  %v497 = vpop.f32.mrb[0].mxu0
  %v498 = vadd.f32 %v85, %v497
  %v499 = vpop.f32.mrb[0].mxu0
  %500 = vmatprep.mubr.bf16.mxu0 0
  %501 = vmatmul.mubr.bf16.gmra.mrb[0].mxu0 %v294
  %v502 = vpop.f32.mrb[0].mxu0
  %v503 = vadd.f32 %v85, %v502
  %v504 = vpop.f32.mrb[0].mxu0
  %v505 = vpop.f32.mrb[0].mxu0
  %v506 = vadd.f32 %v85, %v505
  %v507 = vpop.f32.mrb[0].mxu0
  %508 = vmatprep.mubr.bf16.mxu0 0
  %509 = vmatmul.mubr.bf16.gmra.mrb[0].mxu0 %v297
  %v510 = vpop.f32.mrb[0].mxu0
  %v511 = vadd.f32 %v85, %v510
  %v512 = vpop.f32.mrb[0].mxu0
  %v513 = vpop.f32.mrb[0].mxu0
  %v514 = vadd.f32 %v85, %v513
  %v515 = vpop.f32.mrb[0].mxu0
  %516 = vmatprep.mubr.bf16.mxu0 0
  %517 = vmatmul.mubr.bf16.gmra.mrb[0].mxu0 %v300
  %v518 = vpop.f32.mrb[0].mxu0
  %v519 = vadd.f32 %v85, %v518
  %v520 = vpop.f32.mrb[0].mxu0
  %v521 = vpop.f32.mrb[0].mxu0
  %v522 = vadd.f32 %v85, %v521
  %v523 = vpop.f32.mrb[0].mxu0
  %524 = vmatprep.mubr.bf16.mxu0 0
  %525 = vmatmul.mubr.bf16.gmra.mrb[0].mxu0 %v303
  %v526 = vpop.f32.mrb[0].mxu0
  %v527 = vadd.f32 %v85, %v526
  %v528 = vpop.f32.mrb[0].mxu0
  %v529 = vpop.f32.mrb[0].mxu0
  %v530 = vadd.f32 %v85, %v529
  %v531 = vpop.f32.mrb[0].mxu0
  %532 = vmatprep.mubr.bf16.mxu0 0
  %533 = vmatmul.mubr.bf16.gmra.mrb[0].mxu0 %v306
  %v534 = vpop.f32.mrb[0].mxu0
  %v535 = vadd.f32 %v85, %v534
  %v536 = vpop.f32.mrb[0].mxu0
  %v537 = vpop.f32.mrb[0].mxu0
  %v538 = vadd.f32 %v85, %v537
  %v539 = vpop.f32.mrb[0].mxu0
  %540 = vmatprep.mubr.bf16.mxu0 0
  %541 = vmatmul.mubr.bf16.gmra.mrb[0].mxu0 %v309
  %v542 = vpop.f32.mrb[0].mxu0
  %v543 = vadd.f32 %v85, %v542
  %v544 = vpop.f32.mrb[0].mxu0
  %v545 = vpop.f32.mrb[0].mxu0
  %v546 = vadd.f32 %v85, %v545
  %v547 = vpop.f32.mrb[0].mxu0
  %548 = vmatprep.mubr.bf16.mxu0 0
  %549 = vmatmul.mubr.bf16.gmra.mrb[0].mxu0 %v312
  %v550 = vpop.f32.mrb[0].mxu0
  %v551 = vadd.f32 %v85, %v550
  %v552 = vpop.f32.mrb[0].mxu0
  %v553 = vpop.f32.mrb[0].mxu0
  %v554 = vadd.f32 %v85, %v553
  %v555 = vpop.f32.mrb[0].mxu0
  %556 = vmatprep.mubr.bf16.mxu0 0
  %557 = vmatmul.mubr.bf16.gmra.mrb[0].mxu0 %v315
  %v558 = vpop.f32.mrb[0].mxu0
  %v559 = vadd.f32 %v85, %v558
  %v560 = vpop.f32.mrb[0].mxu0
  %v561 = vpop.f32.mrb[0].mxu0
  %v562 = vadd.f32 %v85, %v561
  %v563 = vpop.f32.mrb[0].mxu0
  %564 = vmatprep.mubr.bf16.mxu0 0
  %565 = vmatmul.mubr.bf16.gmra.mrb[0].mxu0 %v318
  %v566 = vpop.f32.mrb[0].mxu0
  %v567 = vadd.f32 %v85, %v566
  %v568 = vpop.f32.mrb[0].mxu0
  %v569 = vpop.f32.mrb[0].mxu0
  %v570 = vadd.f32 %v85, %v569
  %v571 = vpop.f32.mrb[0].mxu0
  %572 = vmatprep.mubr.bf16.mxu0 0
  %573 = vmatmul.mubr.bf16.gmra.mrb[0].mxu0 %v321
  %v574 = vpop.f32.mrb[0].mxu0
  %v575 = vadd.f32 %v85, %v574
  %v576 = vpop.f32.mrb[0].mxu0
  %v577 = vpop.f32.mrb[0].mxu0
  %v578 = vadd.f32 %v85, %v577
  %v579 = vpop.f32.mrb[0].mxu0
  %580 = vmatprep.mubr.bf16.mxu0 0
  %581 = vmatmul.mubr.bf16.gmra.mrb[0].mxu0 %v324
  %v582 = vpop.f32.mrb[0].mxu0
  %v583 = vadd.f32 %v85, %v582
  %v584 = vpop.f32.mrb[0].mxu0
  %v585 = vpop.f32.mrb[0].mxu0
  %v586 = vadd.f32 %v85, %v585
  %v587 = vpop.f32.mrb[0].mxu0
  %588 = vmatprep.mubr.bf16.mxu0 0
  %589 = vmatmul.mubr.bf16.gmra.mrb[0].mxu0 %v327
  %v590 = vpop.f32.mrb[0].mxu0
  %v591 = vadd.f32 %v85, %v590
  %v592 = vpop.f32.mrb[0].mxu0
  %v593 = vpop.f32.mrb[0].mxu0
  %v594 = vadd.f32 %v85, %v593
  %v595 = vpop.f32.mrb[0].mxu0
  %596 = vmatprep.mubr.bf16.mxu0 0
  %597 = vmatmul.mubr.bf16.gmra.mrb[0].mxu0 %v330
  %v598 = vpop.f32.mrb[0].mxu0
  %v599 = vadd.f32 %v85, %v598
  %v600 = vpop.f32.mrb[0].mxu0
  %v601 = vpop.f32.mrb[0].mxu0
  %v602 = vadd.f32 %v85, %v601
  %v603 = vpop.f32.mrb[0].mxu0
  %604 = vmatprep.mubr.bf16.mxu0 0
  %605 = vmatmul.mubr.bf16.gmra.mrb[0].mxu0 %v333
  %v606 = vpop.f32.mrb[0].mxu0
  %v607 = vadd.f32 %v85, %v606
  %v608 = vpop.f32.mrb[0].mxu0
  %v609 = vpop.f32.mrb[0].mxu0
  %v610 = vadd.f32 %v85, %v609
  %v611 = vpop.f32.mrb[0].mxu0
  %612 = vmatprep.mubr.bf16.mxu0 0
  %613 = vmatmul.mubr.bf16.gmra.mrb[0].mxu0 %v336
  %v614 = vpop.f32.mrb[0].mxu0
  %v615 = vadd.f32 %v85, %v614
  %v616 = vpop.f32.mrb[0].mxu0
  %v617 = vpop.f32.mrb[0].mxu0
  %v618 = vadd.f32 %v85, %v617
  %v619 = vpop.f32.mrb[0].mxu0
  %620 = vmatprep.mubr.bf16.mxu0 0
  %621 = vmatmul.mubr.bf16.gmra.mrb[0].mxu0 %v339
  %v622 = vpop.f32.mrb[0].mxu0
  %v623 = vadd.f32 %v85, %v622
  %v624 = vpop.f32.mrb[0].mxu0
  %v625 = vpop.f32.mrb[0].mxu0
  %v626 = vadd.f32 %v85, %v625
  %v627 = vpop.f32.mrb[0].mxu0
  %628 = vmatprep.mubr.bf16.mxu0 0
  %629 = vmatmul.mubr.bf16.gmra.mrb[0].mxu0 %v342
  %v630 = vpop.f32.mrb[0].mxu0
  %v631 = vadd.f32 %v85, %v630
  %v632 = vpop.f32.mrb[0].mxu0
  %v633 = vpop.f32.mrb[0].mxu0
  %v634 = vadd.f32 %v85, %v633
  %v635 = vpop.f32.mrb[0].mxu0
  %636 = vdwg.mxu0
  %v637 = vmax.f32 %v383, 0.0
  %v638 = vmax.f32 %v386, 0.0
  %v639 = vmax.f32 %v391, 0.0
  %v640 = vmax.f32 %v394, 0.0
  %v641 = vmax.f32 %v399, 0.0
  %v642 = vmax.f32 %v402, 0.0
  %v643 = vmax.f32 %v407, 0.0
  %v644 = vmax.f32 %v410, 0.0
  %v645 = vmax.f32 %v415, 0.0
  %v646 = vmax.f32 %v418, 0.0
  %v647 = vmax.f32 %v423, 0.0
  %v648 = vmax.f32 %v426, 0.0
  %v649 = vmax.f32 %v431, 0.0
  %v650 = vmax.f32 %v434, 0.0
  %v651 = vmax.f32 %v439, 0.0
  %v652 = vmax.f32 %v442, 0.0
  %v653 = vmax.f32 %v447, 0.0
  %v654 = vmax.f32 %v450, 0.0
  %v655 = vmax.f32 %v455, 0.0
  %v656 = vmax.f32 %v458, 0.0
  %v657 = vmax.f32 %v463, 0.0
  %v658 = vmax.f32 %v466, 0.0
  %v659 = vmax.f32 %v471, 0.0
  %v660 = vmax.f32 %v474, 0.0
  %v661 = vmax.f32 %v479, 0.0
  %v662 = vmax.f32 %v482, 0.0
  %v663 = vmax.f32 %v487, 0.0
  %v664 = vmax.f32 %v490, 0.0
  %v665 = vmax.f32 %v495, 0.0
  %v666 = vmax.f32 %v498, 0.0
  %v667 = vmax.f32 %v503, 0.0
  %v668 = vmax.f32 %v506, 0.0
  %v669 = vmax.f32 %v511, 0.0
  %v670 = vmax.f32 %v514, 0.0
  %v671 = vmax.f32 %v519, 0.0
  %v672 = vmax.f32 %v522, 0.0
  %v673 = vmax.f32 %v527, 0.0
  %v674 = vmax.f32 %v530, 0.0
  %v675 = vmax.f32 %v535, 0.0
  %v676 = vmax.f32 %v538, 0.0
  %v677 = vmax.f32 %v543, 0.0
  %v678 = vmax.f32 %v546, 0.0
  %v679 = vmax.f32 %v551, 0.0
  %v680 = vmax.f32 %v554, 0.0
  %v681 = vmax.f32 %v559, 0.0
  %v682 = vmax.f32 %v562, 0.0
  %v683 = vmax.f32 %v567, 0.0
  %v684 = vmax.f32 %v570, 0.0
  %v685 = vmax.f32 %v575, 0.0
  %v686 = vmax.f32 %v578, 0.0
  %v687 = vmax.f32 %v583, 0.0
  %v688 = vmax.f32 %v586, 0.0
  %v689 = vmax.f32 %v591, 0.0
  %v690 = vmax.f32 %v594, 0.0
  %v691 = vmax.f32 %v599, 0.0
  %v692 = vmax.f32 %v602, 0.0
  %v693 = vmax.f32 %v607, 0.0
  %v694 = vmax.f32 %v610, 0.0
  %v695 = vmax.f32 %v615, 0.0
  %v696 = vmax.f32 %v618, 0.0
  %v697 = vmax.f32 %v623, 0.0
  %v698 = vmax.f32 %v626, 0.0
  %v699 = vmax.f32 %v631, 0.0
  %v700 = vmax.f32 %v634, 0.0
  %v701 = vpack.c.bf16 %v638, %v637
  %v702 = vpack.c.bf16 %v640, %v639
  %v703 = vpack.c.bf16 %v642, %v641
  %v704 = vpack.c.bf16 %v644, %v643
  %v705 = vpack.c.bf16 %v646, %v645
  %v706 = vpack.c.bf16 %v648, %v647
  %v707 = vpack.c.bf16 %v650, %v649
  %v708 = vpack.c.bf16 %v652, %v651
  %v709 = vpack.c.bf16 %v654, %v653
  %v710 = vpack.c.bf16 %v656, %v655
  %v711 = vpack.c.bf16 %v658, %v657
  %v712 = vpack.c.bf16 %v660, %v659
  %v713 = vpack.c.bf16 %v662, %v661
  %v714 = vpack.c.bf16 %v664, %v663
  %v715 = vpack.c.bf16 %v666, %v665
  %v716 = vpack.c.bf16 %v668, %v667
  %v717 = vpack.c.bf16 %v670, %v669
  %v718 = vpack.c.bf16 %v672, %v671
  %v719 = vpack.c.bf16 %v674, %v673
  %v720 = vpack.c.bf16 %v676, %v675
  %v721 = vpack.c.bf16 %v678, %v677
  %v722 = vpack.c.bf16 %v680, %v679
  %v723 = vpack.c.bf16 %v682, %v681
  %v724 = vpack.c.bf16 %v684, %v683
  %v725 = vpack.c.bf16 %v686, %v685
  %v726 = vpack.c.bf16 %v688, %v687
  %v727 = vpack.c.bf16 %v690, %v689
  %v728 = vpack.c.bf16 %v692, %v691
  %v729 = vpack.c.bf16 %v694, %v693
  %v730 = vpack.c.bf16 %v696, %v695
  %v731 = vpack.c.bf16 %v698, %v697
  %v732 = vpack.c.bf16 %v700, %v699
  %v765 = vunpack.c.l.b16 %v701
  %v766 = vunpack.c.h.b16 %v701
  %v767 = vunpack.c.l.b16 %v702
  %v768 = vunpack.c.h.b16 %v702
  %v769 = vunpack.c.l.b16 %v703
  %v770 = vunpack.c.h.b16 %v703
  %v771 = vunpack.c.l.b16 %v704
  %v772 = vunpack.c.h.b16 %v704
  %v773 = vunpack.c.l.b16 %v705
  %v774 = vunpack.c.h.b16 %v705
  %v775 = vunpack.c.l.b16 %v706
  %v776 = vunpack.c.h.b16 %v706
  %v777 = vunpack.c.l.b16 %v707
  %v778 = vunpack.c.h.b16 %v707
  %v779 = vunpack.c.l.b16 %v708
  %v780 = vunpack.c.h.b16 %v708
  %v781 = vunpack.c.l.b16 %v709
  %v782 = vunpack.c.h.b16 %v709
  %v783 = vunpack.c.l.b16 %v710
  %v784 = vunpack.c.h.b16 %v710
  %v785 = vunpack.c.l.b16 %v711
  %v786 = vunpack.c.h.b16 %v711
  %v787 = vunpack.c.l.b16 %v712
  %v788 = vunpack.c.h.b16 %v712
  %v789 = vunpack.c.l.b16 %v713
  %v790 = vunpack.c.h.b16 %v713
  %v791 = vunpack.c.l.b16 %v714
  %v792 = vunpack.c.h.b16 %v714
  %v793 = vunpack.c.l.b16 %v715
  %v794 = vunpack.c.h.b16 %v715
  %v795 = vunpack.c.l.b16 %v716
  %v796 = vunpack.c.h.b16 %v716
  %v797 = vunpack.c.l.b16 %v717
  %v798 = vunpack.c.h.b16 %v717
  %v799 = vunpack.c.l.b16 %v718
  %v800 = vunpack.c.h.b16 %v718
  %v801 = vunpack.c.l.b16 %v719
  %v802 = vunpack.c.h.b16 %v719
  %v803 = vunpack.c.l.b16 %v720
  %v804 = vunpack.c.h.b16 %v720
  %v805 = vunpack.c.l.b16 %v721
  %v806 = vunpack.c.h.b16 %v721
  %v807 = vunpack.c.l.b16 %v722
  %v808 = vunpack.c.h.b16 %v722
  %v809 = vunpack.c.l.b16 %v723
  %v810 = vunpack.c.h.b16 %v723
  %v811 = vunpack.c.l.b16 %v724
  %v812 = vunpack.c.h.b16 %v724
  %v813 = vunpack.c.l.b16 %v725
  %v814 = vunpack.c.h.b16 %v725
  %v815 = vunpack.c.l.b16 %v726
  %v816 = vunpack.c.h.b16 %v726
  %v817 = vunpack.c.l.b16 %v727
  %v818 = vunpack.c.h.b16 %v727
  %v819 = vunpack.c.l.b16 %v728
  %v820 = vunpack.c.h.b16 %v728
  %v821 = vunpack.c.l.b16 %v729
  %v822 = vunpack.c.h.b16 %v729
  %v823 = vunpack.c.l.b16 %v730
  %v824 = vunpack.c.h.b16 %v730
  %v825 = vunpack.c.l.b16 %v731
  %v826 = vunpack.c.h.b16 %v731
  %v827 = vunpack.c.l.b16 %v732
  %v828 = vunpack.c.h.b16 %v732
  %v829 = vpack.c.b16 %v765, %v765
  %v830 = vpack.c.b16 %v766, %v766
  %v831 = vpack.c.b16 %v767, %v767
  %v832 = vpack.c.b16 %v768, %v768
  %v833 = vpack.c.b16 %v769, %v769
  %v834 = vpack.c.b16 %v770, %v770
  %v835 = vpack.c.b16 %v771, %v771
  %v836 = vpack.c.b16 %v772, %v772
  %v837 = vpack.c.b16 %v773, %v773
  %v838 = vpack.c.b16 %v774, %v774
  %v839 = vpack.c.b16 %v775, %v775
  %v840 = vpack.c.b16 %v776, %v776
  %v841 = vpack.c.b16 %v777, %v777
  %v842 = vpack.c.b16 %v778, %v778
  %v843 = vpack.c.b16 %v779, %v779
  %v844 = vpack.c.b16 %v780, %v780
  %v845 = vpack.c.b16 %v781, %v781
  %v846 = vpack.c.b16 %v782, %v782
  %v847 = vpack.c.b16 %v783, %v783
  %v848 = vpack.c.b16 %v784, %v784
  %v849 = vpack.c.b16 %v785, %v785
  %v850 = vpack.c.b16 %v786, %v786
  %v851 = vpack.c.b16 %v787, %v787
  %v852 = vpack.c.b16 %v788, %v788
  %v853 = vpack.c.b16 %v789, %v789
  %v854 = vpack.c.b16 %v790, %v790
  %v855 = vpack.c.b16 %v791, %v791
  %v856 = vpack.c.b16 %v792, %v792
  %v857 = vpack.c.b16 %v793, %v793
  %v858 = vpack.c.b16 %v794, %v794
  %v859 = vpack.c.b16 %v795, %v795
  %v860 = vpack.c.b16 %v796, %v796
  %v861 = vpack.c.b16 %v797, %v797
  %v862 = vpack.c.b16 %v798, %v798
  %v863 = vpack.c.b16 %v799, %v799
  %v864 = vpack.c.b16 %v800, %v800
  %v865 = vpack.c.b16 %v801, %v801
  %v866 = vpack.c.b16 %v802, %v802
  %v867 = vpack.c.b16 %v803, %v803
  %v868 = vpack.c.b16 %v804, %v804
  %v869 = vpack.c.b16 %v805, %v805
  %v870 = vpack.c.b16 %v806, %v806
  %v871 = vpack.c.b16 %v807, %v807
  %v872 = vpack.c.b16 %v808, %v808
  %v873 = vpack.c.b16 %v809, %v809
  %v874 = vpack.c.b16 %v810, %v810
  %v875 = vpack.c.b16 %v811, %v811
  %v876 = vpack.c.b16 %v812, %v812
  %v877 = vpack.c.b16 %v813, %v813
  %v878 = vpack.c.b16 %v814, %v814
  %v879 = vpack.c.b16 %v815, %v815
  %v880 = vpack.c.b16 %v816, %v816
  %v881 = vpack.c.b16 %v817, %v817
  %v882 = vpack.c.b16 %v818, %v818
  %v883 = vpack.c.b16 %v819, %v819
  %v884 = vpack.c.b16 %v820, %v820
  %v885 = vpack.c.b16 %v821, %v821
  %v886 = vpack.c.b16 %v822, %v822
  %v887 = vpack.c.b16 %v823, %v823
  %v888 = vpack.c.b16 %v824, %v824
  %v889 = vpack.c.b16 %v825, %v825
  %v890 = vpack.c.b16 %v826, %v826
  %v891 = vpack.c.b16 %v827, %v827
  %v892 = vpack.c.b16 %v828, %v828
  %957 = vst [vmem:[%s3] sm:$0xf] %v829
  %958 = vst [vmem:[%s3 + $0x4] sm:$0xf] %v830
  %959 = vst [vmem:[%s3 + $0x8] sm:$0xf] %v831
  %960 = vst [vmem:[%s3 + $0xc] sm:$0xf] %v832
  %961 = vst [vmem:[%s3 + $0x10] sm:$0xf] %v833
  %962 = vst [vmem:[%s3 + $0x14] sm:$0xf] %v834
  %963 = vst [vmem:[%s3 + $0x18] sm:$0xf] %v835
  %964 = vst [vmem:[%s3 + $0x1c] sm:$0xf] %v836
  %965 = vst [vmem:[%s3 + $0x20] sm:$0xf] %v837
  %966 = vst [vmem:[%s3 + $0x24] sm:$0xf] %v838
  %967 = vst [vmem:[%s3 + $0x28] sm:$0xf] %v839
  %968 = vst [vmem:[%s3 + $0x2c] sm:$0xf] %v840
  %969 = vst [vmem:[%s3 + $0x30] sm:$0xf] %v841
  %970 = vst [vmem:[%s3 + $0x34] sm:$0xf] %v842
  %971 = vst [vmem:[%s3 + $0x38] sm:$0xf] %v843
  %972 = vst [vmem:[%s3 + $0x3c] sm:$0xf] %v844
  %973 = vst [vmem:[%s3 + $0x40] sm:$0xf] %v845
  %974 = vst [vmem:[%s3 + $0x44] sm:$0xf] %v846
  %975 = vst [vmem:[%s3 + $0x48] sm:$0xf] %v847
  %976 = vst [vmem:[%s3 + $0x4c] sm:$0xf] %v848
  %977 = vst [vmem:[%s3 + $0x50] sm:$0xf] %v849
  %978 = vst [vmem:[%s3 + $0x54] sm:$0xf] %v850
  %979 = vst [vmem:[%s3 + $0x58] sm:$0xf] %v851
  %980 = vst [vmem:[%s3 + $0x5c] sm:$0xf] %v852
  %981 = vst [vmem:[%s3 + $0x60] sm:$0xf] %v853
  %982 = vst [vmem:[%s3 + $0x64] sm:$0xf] %v854
  %983 = vst [vmem:[%s3 + $0x68] sm:$0xf] %v855
  %984 = vst [vmem:[%s3 + $0x6c] sm:$0xf] %v856
  %985 = vst [vmem:[%s3 + $0x70] sm:$0xf] %v857
  %986 = vst [vmem:[%s3 + $0x74] sm:$0xf] %v858
  %987 = vst [vmem:[%s3 + $0x78] sm:$0xf] %v859
  %988 = vst [vmem:[%s3 + $0x7c] sm:$0xf] %v860
  %989 = vst [vmem:[%s3 + $0x80] sm:$0xf] %v861
  %990 = vst [vmem:[%s3 + $0x84] sm:$0xf] %v862
  %991 = vst [vmem:[%s3 + $0x88] sm:$0xf] %v863
  %992 = vst [vmem:[%s3 + $0x8c] sm:$0xf] %v864
  %993 = vst [vmem:[%s3 + $0x90] sm:$0xf] %v865
  %994 = vst [vmem:[%s3 + $0x94] sm:$0xf] %v866
  %995 = vst [vmem:[%s3 + $0x98] sm:$0xf] %v867
  %996 = vst [vmem:[%s3 + $0x9c] sm:$0xf] %v868
  %997 = vst [vmem:[%s3 + $0xa0] sm:$0xf] %v869
  %998 = vst [vmem:[%s3 + $0xa4] sm:$0xf] %v870
  %999 = vst [vmem:[%s3 + $0xa8] sm:$0xf] %v871
  %1000 = vst [vmem:[%s3 + $0xac] sm:$0xf] %v872
  %1001 = vst [vmem:[%s3 + $0xb0] sm:$0xf] %v873
  %1002 = vst [vmem:[%s3 + $0xb4] sm:$0xf] %v874
  %1003 = vst [vmem:[%s3 + $0xb8] sm:$0xf] %v875
  %1004 = vst [vmem:[%s3 + $0xbc] sm:$0xf] %v876
  %1005 = vst [vmem:[%s3 + $0xc0] sm:$0xf] %v877
  %1006 = vst [vmem:[%s3 + $0xc4] sm:$0xf] %v878
  %1007 = vst [vmem:[%s3 + $0xc8] sm:$0xf] %v879
  %1008 = vst [vmem:[%s3 + $0xcc] sm:$0xf] %v880
  %1009 = vst [vmem:[%s3 + $0xd0] sm:$0xf] %v881
  %1010 = vst [vmem:[%s3 + $0xd4] sm:$0xf] %v882
  %1011 = vst [vmem:[%s3 + $0xd8] sm:$0xf] %v883
  %1012 = vst [vmem:[%s3 + $0xdc] sm:$0xf] %v884
  %1013 = vst [vmem:[%s3 + $0xe0] sm:$0xf] %v885
  %1014 = vst [vmem:[%s3 + $0xe4] sm:$0xf] %v886
  %1015 = vst [vmem:[%s3 + $0xe8] sm:$0xf] %v887
  %1016 = vst [vmem:[%s3 + $0xec] sm:$0xf] %v888
  %1017 = vst [vmem:[%s3 + $0xf0] sm:$0xf] %v889
  %1018 = vst [vmem:[%s3 + $0xf4] sm:$0xf] %v890
  %1019 = vst [vmem:[%s3 + $0xf8] sm:$0xf] %v891
  %1020 = vst [vmem:[%s3 + $0xfc] sm:$0xf] %v892
  // Predicated region
  $region14: #{bottleneck_forward.3} parent=0 // pred_check
    _
  $region15: #{bottleneck_forward.3} parent=0 // pred_check_branch
    %1022 = sbr.rel (0) target = $region17
  $region16: #{bottleneck_forward.3} parent=0 // pred_region
    _
  $region17: #{bottleneck_forward.3} parent=0 // pred_fallthru
    _
  // Predicated region
  $region18: #{bottleneck_forward.3} parent=0 // pred_check
    _
  $region19: #{bottleneck_forward.3} parent=0 // pred_check_branch
    %1024 = sbr.rel (0) target = $region21
  $region20: #{bottleneck_forward.3} parent=0 // pred_region
    _
  $region21: #{bottleneck_forward.3} parent=0 // pred_fallthru
    _

// kernel: bottleneck_forward.5
$region0: #{bottleneck_forward.5}
  #allocation0 [shape = 'u32[]', space=smem, size = 0x4, offset = 0x4, fixed_abs, tag = 'smem constant byte address 0x4 - core index']
  #allocation1 [shape = 'u32[144,128]{1,0:T(1,128)}', space=vmem, size = 0x12000, scoped, tag = 'internal scratch']
  %s0 = inlined_call_operand.vmem [shape: bf16[128,128], index: 0, kind: input, shape index: {}]
  %s1 = inlined_call_operand.vmem [shape: bf16[128,128], index: 1, kind: input, shape index: {}]
  %s2 = inlined_call_operand.vmem [shape: bf16[128,8], index: 2, kind: input, shape index: {}]
  %s3 = inlined_call_operand.vmem [shape: bf16[8,128], index: 3, kind: input, shape index: {}]
  %s4 = inlined_call_operand.vmem [shape: f32[1,128], index: 4, kind: input, shape index: {}]
  %s5 = inlined_call_operand.hbm [shape: f32[128,128], index: 5, kind: output, shape index: {}]
  %s6 = sld [smem:[#allocation0]]
  $region30: #{bottleneck_forward.5} parent=0
    _
  %s8 = ssub.s32 1, %s6
  %s9 = scalar_select 0, %s8, %s6
  $region1: #{bottleneck_forward.5} parent=0
    #allocation2 [shape = 'u8[65536]{0}', space=vmem, size = 0x10000, scoped, tag = 'output window, operand 0, single buffered']
    #allocation3 [shape = 's32[1]{0}', space=sflag, size = 0x4, scoped, tag = 'scoped memory for bottleneck_forward.5']
    %10 = vsyncpa [#allocation3], 0
    // Predicated region
    $region2: #{bottleneck_forward.5} parent=1 // pred_check
      _
    $region3: #{bottleneck_forward.5} parent=1 // pred_check_branch
      %12 = sbr.rel (0) target = $region5
    $region4: #{bottleneck_forward.5} parent=1 // pred_region
      _
    $region5: #{bottleneck_forward.5} parent=1 // pred_fallthru
      _
    // Predicated region
    $region6: #{bottleneck_forward.5} parent=1 // pred_check
      _
    $region7: #{bottleneck_forward.5} parent=1 // pred_check_branch
      %14 = sbr.rel (0) target = $region9
    $region8: #{bottleneck_forward.5} parent=1 // pred_region
      _
    $region9: #{bottleneck_forward.5} parent=1 // pred_fallthru
      _
    // Predicated region
    $region10: #{bottleneck_forward.5} parent=1 // pred_check
      _
    $region11: #{bottleneck_forward.5} parent=1 // pred_check_branch
      %16 = sbr.rel (0) target = $region13
    $region12: #{bottleneck_forward.5} parent=1 // pred_region
      _
    $region13: #{bottleneck_forward.5} parent=1 // pred_fallthru
      _
    // Predicated region
    $region14: #{bottleneck_forward.5} parent=1 // pred_check
      _
    $region15: #{bottleneck_forward.5} parent=1 // pred_check_branch
      %18 = sbr.rel (0) target = $region17
    $region16: #{bottleneck_forward.5} parent=1 // pred_region
      _
    $region17: #{bottleneck_forward.5} parent=1 // pred_fallthru
      _
    // Predicated region
    $region18: #{bottleneck_forward.5} parent=1 // pred_check
      _
    $region19: #{bottleneck_forward.5} parent=1 // pred_check_branch
      %20 = sbr.rel (0) target = $region21
    $region20: #{bottleneck_forward.5} parent=1 // pred_region
      _
    $region21: #{bottleneck_forward.5} parent=1 // pred_fallthru
      _
    %v22 = vld [vmem:[%s0] sm:$0xf]
    %v23 = vld [vmem:[%s0 + $0x4] sm:$0xf]
    %v24 = vld [vmem:[%s0 + $0x8] sm:$0xf]
    %v25 = vld [vmem:[%s0 + $0xc] sm:$0xf]
    %v26 = vld [vmem:[%s0 + $0x10] sm:$0xf]
    %v27 = vld [vmem:[%s0 + $0x14] sm:$0xf]
    %v28 = vld [vmem:[%s0 + $0x18] sm:$0xf]
    %v29 = vld [vmem:[%s0 + $0x1c] sm:$0xf]
    %v30 = vld [vmem:[%s0 + $0x20] sm:$0xf]
    %v31 = vld [vmem:[%s0 + $0x24] sm:$0xf]
    %v32 = vld [vmem:[%s0 + $0x28] sm:$0xf]
    %v33 = vld [vmem:[%s0 + $0x2c] sm:$0xf]
    %v34 = vld [vmem:[%s0 + $0x30] sm:$0xf]
    %v35 = vld [vmem:[%s0 + $0x34] sm:$0xf]
    %v36 = vld [vmem:[%s0 + $0x38] sm:$0xf]
    %v37 = vld [vmem:[%s0 + $0x3c] sm:$0xf]
    %v38 = vld [vmem:[%s1] sm:$0xf]
    %v39 = vld [vmem:[%s1 + $0x4] sm:$0xf]
    %v40 = vld [vmem:[%s1 + $0x8] sm:$0xf]
    %v41 = vld [vmem:[%s1 + $0xc] sm:$0xf]
    %v42 = vld [vmem:[%s1 + $0x10] sm:$0xf]
    %v43 = vld [vmem:[%s1 + $0x14] sm:$0xf]
    %v44 = vld [vmem:[%s1 + $0x18] sm:$0xf]
    %v45 = vld [vmem:[%s1 + $0x1c] sm:$0xf]
    %v46 = vld [vmem:[%s1 + $0x20] sm:$0xf]
    %v47 = vld [vmem:[%s1 + $0x24] sm:$0xf]
    %v48 = vld [vmem:[%s1 + $0x28] sm:$0xf]
    %v49 = vld [vmem:[%s1 + $0x2c] sm:$0xf]
    %v50 = vld [vmem:[%s1 + $0x30] sm:$0xf]
    %v51 = vld [vmem:[%s1 + $0x34] sm:$0xf]
    %v52 = vld [vmem:[%s1 + $0x38] sm:$0xf]
    %v53 = vld [vmem:[%s1 + $0x3c] sm:$0xf]
    %v54 = vld [vmem:[%s2] sm:$0xf]
    %v55 = vld [vmem:[%s2 + $0x4] sm:$0xf]
    %v56 = vld [vmem:[%s2 + $0x8] sm:$0xf]
    %v57 = vld [vmem:[%s2 + $0xc] sm:$0xf]
    %v58 = vld [vmem:[%s2 + $0x10] sm:$0xf]
    %v59 = vld [vmem:[%s2 + $0x14] sm:$0xf]
    %v60 = vld [vmem:[%s2 + $0x18] sm:$0xf]
    %v61 = vld [vmem:[%s2 + $0x1c] sm:$0xf]
    %v62 = vld [vmem:[%s2 + $0x20] sm:$0xf]
    %v63 = vld [vmem:[%s2 + $0x24] sm:$0xf]
    %v64 = vld [vmem:[%s2 + $0x28] sm:$0xf]
    %v65 = vld [vmem:[%s2 + $0x2c] sm:$0xf]
    %v66 = vld [vmem:[%s2 + $0x30] sm:$0xf]
    %v67 = vld [vmem:[%s2 + $0x34] sm:$0xf]
    %v68 = vld [vmem:[%s2 + $0x38] sm:$0xf]
    %v69 = vld [vmem:[%s2 + $0x3c] sm:$0xf]
    %v70 = vld [vmem:[%s3] sm:$0xf]
    %v87 = vunpack.c.l.b16 %v54
    %v88 = vunpack.c.l.b16 %v55
    %v89 = vunpack.c.l.b16 %v56
    %v90 = vunpack.c.l.b16 %v57
    %v91 = vunpack.c.l.b16 %v58
    %v92 = vunpack.c.l.b16 %v59
    %v93 = vunpack.c.l.b16 %v60
    %v94 = vunpack.c.l.b16 %v61
    %v95 = vunpack.c.l.b16 %v62
    %v96 = vunpack.c.l.b16 %v63
    %v97 = vunpack.c.l.b16 %v64
    %v98 = vunpack.c.l.b16 %v65
    %v99 = vunpack.c.l.b16 %v66
    %v100 = vunpack.c.l.b16 %v67
    %v101 = vunpack.c.l.b16 %v68
    %v102 = vunpack.c.l.b16 %v69
    %v103 = vpack.c.b16 %v88, %v87
    %v104 = vpack.c.b16 %v90, %v89
    %v105 = vpack.c.b16 %v92, %v91
    %v106 = vpack.c.b16 %v94, %v93
    %v107 = vpack.c.b16 %v96, %v95
    %v108 = vpack.c.b16 %v98, %v97
    %v109 = vpack.c.b16 %v100, %v99
    %v110 = vpack.c.b16 %v102, %v101
    %vm111 = vcmask 64512
    %v113 = vsel %vm111, %v103, 0
    %v116 = vsel %vm111, %v104, 0
    %v119 = vsel %vm111, %v105, 0
    %v122 = vsel %vm111, %v106, 0
    %v125 = vsel %vm111, %v107, 0
    %v128 = vsel %vm111, %v108, 0
    %v131 = vsel %vm111, %v109, 0
    %v134 = vsel %vm111, %v110, 0
    %vm136 = vcmask 1043456
    %v138 = vsel %vm136, %v70, 0
    %140 = vmatprep.subr.bf16.mxu0 0
    %141 = vmatpush1.bf16.msra.mxu0 %v138
    %142 = vmatprep.subr.bf16.mxu0 0
    %143 = vmatpush1.bf16.msra.mxu0 0
    %144 = vmatprep.subr.bf16.mxu0 0
    %145 = vmatpush1.bf16.msra.mxu0 0
    %146 = vmatprep.subr.bf16.mxu0 0
    %147 = vmatpush1.bf16.msra.mxu0 0
    %148 = vmatprep.subr.bf16.mxu0 0
    %149 = vmatpush1.bf16.msra.mxu0 0
    %150 = vmatprep.subr.bf16.mxu0 0
    %151 = vmatpush1.bf16.msra.mxu0 0
    %152 = vmatprep.subr.bf16.mxu0 0
    %153 = vmatpush1.bf16.msra.mxu0 0
    %154 = vmatprep.subr.bf16.mxu0 0
    %155 = vmatpush1.bf16.msra.mxu0 0
    %156 = vmatprep.subr.bf16.mxu0 0
    %157 = vmatpush1.bf16.msra.mxu0 0
    %158 = vmatprep.subr.bf16.mxu0 0
    %159 = vmatpush1.bf16.msra.mxu0 0
    %160 = vmatprep.subr.bf16.mxu0 0
    %161 = vmatpush1.bf16.msra.mxu0 0
    %162 = vmatprep.subr.bf16.mxu0 0
    %163 = vmatpush1.bf16.msra.mxu0 0
    %164 = vmatprep.subr.bf16.mxu0 0
    %165 = vmatpush1.bf16.msra.mxu0 0
    %166 = vmatprep.subr.bf16.mxu0 0
    %167 = vmatpush1.bf16.msra.mxu0 0
    %168 = vmatprep.subr.bf16.mxu0 0
    %169 = vmatpush1.bf16.msra.mxu0 0
    %170 = vmatprep.subr.bf16.mxu0 0
    %171 = vmatpush1.bf16.msra.mxu0 0
    %172 = vmatprep.mubr.bf16.mxu0 0
    %173 = vmatmul.mubr.bf16.gmra.mrb[0].mxu0 %v113
    %v174 = vpop.f32.mrb[0].mxu0
    %v175 = vadd.f32 0.0, %v174
    %v176 = vpop.f32.mrb[0].mxu0
    %v177 = vpop.f32.mrb[0].mxu0
    %v178 = vadd.f32 0.0, %v177
    %v179 = vpop.f32.mrb[0].mxu0
    %180 = vmatprep.mubr.bf16.mxu0 0
    %181 = vmatmul.mubr.bf16.gmra.mrb[0].mxu0 %v116
    %v182 = vpop.f32.mrb[0].mxu0
    %v183 = vadd.f32 0.0, %v182
    %v184 = vpop.f32.mrb[0].mxu0
    %v185 = vpop.f32.mrb[0].mxu0
    %v186 = vadd.f32 0.0, %v185
    %v187 = vpop.f32.mrb[0].mxu0
    %188 = vmatprep.mubr.bf16.mxu0 0
    %189 = vmatmul.mubr.bf16.gmra.mrb[0].mxu0 %v119
    %v190 = vpop.f32.mrb[0].mxu0
    %v191 = vadd.f32 0.0, %v190
    %v192 = vpop.f32.mrb[0].mxu0
    %v193 = vpop.f32.mrb[0].mxu0
    %v194 = vadd.f32 0.0, %v193
    %v195 = vpop.f32.mrb[0].mxu0
    %196 = vmatprep.mubr.bf16.mxu0 0
    %197 = vmatmul.mubr.bf16.gmra.mrb[0].mxu0 %v122
    %v198 = vpop.f32.mrb[0].mxu0
    %v199 = vadd.f32 0.0, %v198
    %v200 = vpop.f32.mrb[0].mxu0
    %v201 = vpop.f32.mrb[0].mxu0
    %v202 = vadd.f32 0.0, %v201
    %v203 = vpop.f32.mrb[0].mxu0
    %204 = vmatprep.mubr.bf16.mxu0 0
    %205 = vmatmul.mubr.bf16.gmra.mrb[0].mxu0 %v125
    %v206 = vpop.f32.mrb[0].mxu0
    %v207 = vadd.f32 0.0, %v206
    %v208 = vpop.f32.mrb[0].mxu0
    %v209 = vpop.f32.mrb[0].mxu0
    %v210 = vadd.f32 0.0, %v209
    %v211 = vpop.f32.mrb[0].mxu0
    %212 = vmatprep.mubr.bf16.mxu0 0
    %213 = vmatmul.mubr.bf16.gmra.mrb[0].mxu0 %v128
    %v214 = vpop.f32.mrb[0].mxu0
    %v215 = vadd.f32 0.0, %v214
    %v216 = vpop.f32.mrb[0].mxu0
    %v217 = vpop.f32.mrb[0].mxu0
    %v218 = vadd.f32 0.0, %v217
    %v219 = vpop.f32.mrb[0].mxu0
    %220 = vmatprep.mubr.bf16.mxu0 0
    %221 = vmatmul.mubr.bf16.gmra.mrb[0].mxu0 %v131
    %v222 = vpop.f32.mrb[0].mxu0
    %v223 = vadd.f32 0.0, %v222
    %v224 = vpop.f32.mrb[0].mxu0
    %v225 = vpop.f32.mrb[0].mxu0
    %v226 = vadd.f32 0.0, %v225
    %v227 = vpop.f32.mrb[0].mxu0
    %228 = vmatprep.mubr.bf16.mxu0 0
    %229 = vmatmul.mubr.bf16.gmra.mrb[0].mxu0 %v134
    %v230 = vpop.f32.mrb[0].mxu0
    %v231 = vadd.f32 0.0, %v230
    %v232 = vpop.f32.mrb[0].mxu0
    %v233 = vpop.f32.mrb[0].mxu0
    %v234 = vadd.f32 0.0, %v233
    %v235 = vpop.f32.mrb[0].mxu0
    %236 = vdwg.mxu0
    %v253 = vunpack.c.l.b16 %v22
    %v254 = vunpack.c.l.b16 %v23
    %v255 = vunpack.c.l.b16 %v24
    %v256 = vunpack.c.l.b16 %v25
    %v257 = vunpack.c.l.b16 %v26
    %v258 = vunpack.c.l.b16 %v27
    %v259 = vunpack.c.l.b16 %v28
    %v260 = vunpack.c.l.b16 %v29
    %v261 = vunpack.c.l.b16 %v30
    %v262 = vunpack.c.l.b16 %v31
    %v263 = vunpack.c.l.b16 %v32
    %v264 = vunpack.c.l.b16 %v33
    %v265 = vunpack.c.l.b16 %v34
    %v266 = vunpack.c.l.b16 %v35
    %v267 = vunpack.c.l.b16 %v36
    %v268 = vunpack.c.l.b16 %v37
    %v269 = vpack.c.b16 %v254, %v253
    %v270 = vpack.c.b16 %v256, %v255
    %v271 = vpack.c.b16 %v258, %v257
    %v272 = vpack.c.b16 %v260, %v259
    %v273 = vpack.c.b16 %v262, %v261
    %v274 = vpack.c.b16 %v264, %v263
    %v275 = vpack.c.b16 %v266, %v265
    %v276 = vpack.c.b16 %v268, %v267
    %v301 = vunpack.c.l.b16 %v38
    %v302 = vunpack.c.l.b16 %v39
    %v303 = vunpack.c.l.b16 %v40
    %v304 = vunpack.c.l.b16 %v41
    %v305 = vunpack.c.l.b16 %v42
    %v306 = vunpack.c.l.b16 %v43
    %v307 = vunpack.c.l.b16 %v44
    %v308 = vunpack.c.l.b16 %v45
    %v309 = vunpack.c.l.b16 %v46
    %v310 = vunpack.c.l.b16 %v47
    %v311 = vunpack.c.l.b16 %v48
    %v312 = vunpack.c.l.b16 %v49
    %v313 = vunpack.c.l.b16 %v50
    %v314 = vunpack.c.l.b16 %v51
    %v315 = vunpack.c.l.b16 %v52
    %v316 = vunpack.c.l.b16 %v53
    %v317 = vpack.c.b16 %v302, %v301
    %v318 = vpack.c.b16 %v304, %v303
    %v319 = vpack.c.b16 %v306, %v305
    %v320 = vpack.c.b16 %v308, %v307
    %v321 = vpack.c.b16 %v310, %v309
    %v322 = vpack.c.b16 %v312, %v311
    %v323 = vpack.c.b16 %v314, %v313
    %v324 = vpack.c.b16 %v316, %v315
    %333 = vmatprep.subr.bf16.mxu0 0
    %334 = vmatpush1.bf16.msra.mxu0 %v317
    %335 = vmatprep.subr.bf16.mxu0 0
    %336 = vmatpush1.bf16.msra.mxu0 %v318
    %337 = vmatprep.subr.bf16.mxu0 0
    %338 = vmatpush1.bf16.msra.mxu0 %v319
    %339 = vmatprep.subr.bf16.mxu0 0
    %340 = vmatpush1.bf16.msra.mxu0 %v320
    %341 = vmatprep.subr.bf16.mxu0 0
    %342 = vmatpush1.bf16.msra.mxu0 %v321
    %343 = vmatprep.subr.bf16.mxu0 0
    %344 = vmatpush1.bf16.msra.mxu0 %v322
    %345 = vmatprep.subr.bf16.mxu0 0
    %346 = vmatpush1.bf16.msra.mxu0 %v323
    %347 = vmatprep.subr.bf16.mxu0 0
    %348 = vmatpush1.bf16.msra.mxu0 %v324
    %349 = vmatprep.subr.bf16.mxu0 0
    %350 = vmatpush1.bf16.msra.mxu0 0
    %351 = vmatprep.subr.bf16.mxu0 0
    %352 = vmatpush1.bf16.msra.mxu0 0
    %353 = vmatprep.subr.bf16.mxu0 0
    %354 = vmatpush1.bf16.msra.mxu0 0
    %355 = vmatprep.subr.bf16.mxu0 0
    %356 = vmatpush1.bf16.msra.mxu0 0
    %357 = vmatprep.subr.bf16.mxu0 0
    %358 = vmatpush1.bf16.msra.mxu0 0
    %359 = vmatprep.subr.bf16.mxu0 0
    %360 = vmatpush1.bf16.msra.mxu0 0
    %361 = vmatprep.subr.bf16.mxu0 0
    %362 = vmatpush1.bf16.msra.mxu0 0
    %363 = vmatprep.subr.bf16.mxu0 0
    %364 = vmatpush1.bf16.msra.mxu0 0
    %365 = vmatprep.mubr.bf16.mxu0 0
    %366 = vmatmul.mubr.bf16.gmra.mrb[0].mxu0 %v269
    %v367 = vpop.f32.mrb[0].mxu0
    %v368 = vadd.f32 %v175, %v367
    %v369 = vpop.f32.mrb[0].mxu0
    %v370 = vpop.f32.mrb[0].mxu0
    %v371 = vadd.f32 %v178, %v370
    %v372 = vpop.f32.mrb[0].mxu0
    %373 = vmatprep.mubr.bf16.mxu0 0
    %374 = vmatmul.mubr.bf16.gmra.mrb[0].mxu0 %v270
    %v375 = vpop.f32.mrb[0].mxu0
    %v376 = vadd.f32 %v183, %v375
    %v377 = vpop.f32.mrb[0].mxu0
    %v378 = vpop.f32.mrb[0].mxu0
    %v379 = vadd.f32 %v186, %v378
    %v380 = vpop.f32.mrb[0].mxu0
    %381 = vmatprep.mubr.bf16.mxu0 0
    %382 = vmatmul.mubr.bf16.gmra.mrb[0].mxu0 %v271
    %v383 = vpop.f32.mrb[0].mxu0
    %v384 = vadd.f32 %v191, %v383
    %v385 = vpop.f32.mrb[0].mxu0
    %v386 = vpop.f32.mrb[0].mxu0
    %v387 = vadd.f32 %v194, %v386
    %v388 = vpop.f32.mrb[0].mxu0
    %389 = vmatprep.mubr.bf16.mxu0 0
    %390 = vmatmul.mubr.bf16.gmra.mrb[0].mxu0 %v272
    %v391 = vpop.f32.mrb[0].mxu0
    %v392 = vadd.f32 %v199, %v391
    %v393 = vpop.f32.mrb[0].mxu0
    %v394 = vpop.f32.mrb[0].mxu0
    %v395 = vadd.f32 %v202, %v394
    %v396 = vpop.f32.mrb[0].mxu0
    %397 = vmatprep.mubr.bf16.mxu0 0
    %398 = vmatmul.mubr.bf16.gmra.mrb[0].mxu0 %v273
    %v399 = vpop.f32.mrb[0].mxu0
    %v400 = vadd.f32 %v207, %v399
    %v401 = vpop.f32.mrb[0].mxu0
    %v402 = vpop.f32.mrb[0].mxu0
    %v403 = vadd.f32 %v210, %v402
    %v404 = vpop.f32.mrb[0].mxu0
    %405 = vmatprep.mubr.bf16.mxu0 0
    %406 = vmatmul.mubr.bf16.gmra.mrb[0].mxu0 %v274
    %v407 = vpop.f32.mrb[0].mxu0
    %v408 = vadd.f32 %v215, %v407
    %v409 = vpop.f32.mrb[0].mxu0
    %v410 = vpop.f32.mrb[0].mxu0
    %v411 = vadd.f32 %v218, %v410
    %v412 = vpop.f32.mrb[0].mxu0
    %413 = vmatprep.mubr.bf16.mxu0 0
    %414 = vmatmul.mubr.bf16.gmra.mrb[0].mxu0 %v275
    %v415 = vpop.f32.mrb[0].mxu0
    %v416 = vadd.f32 %v223, %v415
    %v417 = vpop.f32.mrb[0].mxu0
    %v418 = vpop.f32.mrb[0].mxu0
    %v419 = vadd.f32 %v226, %v418
    %v420 = vpop.f32.mrb[0].mxu0
    %421 = vmatprep.mubr.bf16.mxu0 0
    %422 = vmatmul.mubr.bf16.gmra.mrb[0].mxu0 %v276
    %v423 = vpop.f32.mrb[0].mxu0
    %v424 = vadd.f32 %v231, %v423
    %v425 = vpop.f32.mrb[0].mxu0
    %v426 = vpop.f32.mrb[0].mxu0
    %v427 = vadd.f32 %v234, %v426
    %v428 = vpop.f32.mrb[0].mxu0
    %429 = vdwg.mxu0
    %v430 = vld [vmem:[%s4] sm:$0x1]
    %v432 = vlaneseq
    %v433 = vshrl.u32 %v432, 7
    %v434 = vsub.s32 0, %v433
    %v435 = vrot.slane %v430, %v434
    %v437 = vadd.f32 %v368, %v435
    %v438 = vadd.f32 %v371, %v435
    %v439 = vadd.f32 %v376, %v435
    %v440 = vadd.f32 %v379, %v435
    %v441 = vadd.f32 %v384, %v435
    %v442 = vadd.f32 %v387, %v435
    %v443 = vadd.f32 %v392, %v435
    %v444 = vadd.f32 %v395, %v435
    %v445 = vadd.f32 %v400, %v435
    %v446 = vadd.f32 %v403, %v435
    %v447 = vadd.f32 %v408, %v435
    %v448 = vadd.f32 %v411, %v435
    %v449 = vadd.f32 %v416, %v435
    %v450 = vadd.f32 %v419, %v435
    %v451 = vadd.f32 %v424, %v435
    %v452 = vadd.f32 %v427, %v435
    %v453 = vmax.f32 %v437, 0.0
    %v454 = vmax.f32 %v438, 0.0
    %v455 = vmax.f32 %v439, 0.0
    %v456 = vmax.f32 %v440, 0.0
    %v457 = vmax.f32 %v441, 0.0
    %v458 = vmax.f32 %v442, 0.0
    %v459 = vmax.f32 %v443, 0.0
    %v460 = vmax.f32 %v444, 0.0
    %v461 = vmax.f32 %v445, 0.0
    %v462 = vmax.f32 %v446, 0.0
    %v463 = vmax.f32 %v447, 0.0
    %v464 = vmax.f32 %v448, 0.0
    %v465 = vmax.f32 %v449, 0.0
    %v466 = vmax.f32 %v450, 0.0
    %v467 = vmax.f32 %v451, 0.0
    %v468 = vmax.f32 %v452, 0.0
    %469 = vst [vmem:[#allocation2] sm:$0xff] %v453
    %470 = vst [vmem:[#allocation2 + $0x8] sm:$0xff] %v454
    %471 = vst [vmem:[#allocation2 + $0x10] sm:$0xff] %v455
    %472 = vst [vmem:[#allocation2 + $0x18] sm:$0xff] %v456
    %473 = vst [vmem:[#allocation2 + $0x20] sm:$0xff] %v457
    %474 = vst [vmem:[#allocation2 + $0x28] sm:$0xff] %v458
    %475 = vst [vmem:[#allocation2 + $0x30] sm:$0xff] %v459
    %476 = vst [vmem:[#allocation2 + $0x38] sm:$0xff] %v460
    %477 = vst [vmem:[#allocation2 + $0x40] sm:$0xff] %v461
    %478 = vst [vmem:[#allocation2 + $0x48] sm:$0xff] %v462
    %479 = vst [vmem:[#allocation2 + $0x50] sm:$0xff] %v463
    %480 = vst [vmem:[#allocation2 + $0x58] sm:$0xff] %v464
    %481 = vst [vmem:[#allocation2 + $0x60] sm:$0xff] %v465
    %482 = vst [vmem:[#allocation2 + $0x68] sm:$0xff] %v466
    %483 = vst [vmem:[#allocation2 + $0x70] sm:$0xff] %v467
    %484 = vst [vmem:[#allocation2 + $0x78] sm:$0xff] %v468
    // Predicated region
    $region22: #{bottleneck_forward.5} parent=1 // pred_check
      _
    $region23: #{bottleneck_forward.5} parent=1 // pred_check_branch
      %486 = sbr.rel (0) target = $region25
    $region24: #{bottleneck_forward.5} parent=1 // pred_region
      %s488 = ssub.s32 2048, 2048
      %489 = vsyncadd [#allocation3], %s488
      %s490 = sshll.u32 [#allocation2], 4
      %s491 = int_to_ptr.vmem [resolvable:$true] %s490
      %496 = dma.vmem_to_hbm [thread:$0]  %s491, 2048, %s5, [#allocation3], 128, 128, 8
    $region25: #{bottleneck_forward.5} parent=1 // pred_fallthru
      _
    // Predicated region
    $region26: #{bottleneck_forward.5} parent=1 // pred_check
      _
    $region27: #{bottleneck_forward.5} parent=1 // pred_check_branch
      %498 = sbr.rel (0) target = $region29
    $region28: #{bottleneck_forward.5} parent=1 // pred_region
      %499 = dma.done [#allocation3], 2048
    $region29: #{bottleneck_forward.5} parent=1 // pred_fallthru
      _
    %500 = vsyncpa [#allocation3], 1

// kernel: bottleneck_forward.4
$region0: #{bottleneck_forward.4}
  #allocation0 [shape = 'u32[]', space=smem, size = 0x4, offset = 0x4, fixed_abs, tag = 'smem constant byte address 0x4 - core index']
  #allocation1 [shape = 'u32[144,128]{1,0:T(1,128)}', space=vmem, size = 0x12000, scoped, tag = 'internal scratch']
  %s0 = inlined_call_operand.vmem [shape: bf16[8,9,9,128], index: 0, kind: input, shape index: {}]
  %s1 = inlined_call_operand.vmem [shape: bf16[9,128,128], index: 1, kind: input, shape index: {}]
  %s2 = inlined_call_operand.vmem [shape: f32[1,128], index: 2, kind: input, shape index: {}]
  %s3 = inlined_call_operand.vmem [shape: bf16[2,64,128], index: 3, kind: output, shape index: {}]
  %s4 = sld [smem:[#allocation0]]
  $region45: #{bottleneck_forward.4} parent=0
    _
  %s6 = ssub.s32 1, %s4
  %s7 = scalar_select 0, %s6, %s4
  loop: start=0, step=1, limit=4
  $region2: #{bottleneck_forward.4} parent=0 // loop_pre_header
    _
  $region3: #{bottleneck_forward.4} parent=0 // loop_header
    %s9 = sphi 0, %s13
    %p10 = scmp.ge.s32.totalorder %s9, 4
    %s16 = sphi 0, %s28
    %s17 = sphi 0, %s24
    %s18 = sphi 0, %s16
    %s19 = sphi 0, %s17
    %s20 = sphi 0, %s18
    %s21 = sphi 0, %s19
    %s31 = sphi 0, %s33
    %s34 = sphi 0, %s31
    %s35 = sphi 0, %s34
    %s51 = sphi 0, %s35
    %s57 = sphi 0, %s59
    %s60 = sphi 0, %s57
    %s61 = sphi 0, %s60
    %s77 = sphi 0, %s61
    %s83 = sphi 0, %s85
    %s86 = sphi 0, %s83
    %s87 = sphi 0, %s86
    %s103 = sphi 0, %s87
    %s111 = sphi 0, %s113
    %s114 = sphi 0, %s111
    %s115 = sphi 0, %s114
    %s131 = sphi 0, %s115
  $region4: #{bottleneck_forward.4} parent=0 // loop_header_branch
    %12 = sbr.rel (%p10) target = $region8
  $region5: #{bottleneck_forward.4} parent=0 // loop_body
    %s14 = ssub.s32 %s9, 1
    %s15 = ssub.s32 %s9, 2
    %s22 = sadd.s32 1, %s17
    %p23 = scmp.ge.s32.totalorder %s22, 1
    %s24 = scalar_select %p23, 0, %s22
    %s25 = sadd.s32 1, %s16
    %s26 = scalar_select %p23, %s25, %s16
    %p27 = scmp.ge.s32.totalorder %s26, 2
    %s28 = scalar_select %p27, 0, %s26
    %s29 = ssub.s32 %s16, %s28
    %p30 = scmp.eq.s32.totalorder %s29, 0
    %s32 = sadd.s32 %s31, 1
    %s33 = scalar_select %p30, %s31, %s32
    %p36 = pneg %p30
    %p37 = scmp.eq.s32.totalorder %s9, 1
    %p38 = por %p36, %p37
    %p39 = scmp.ne.s32.totalorder %s31, %s34
    %p40 = scmp.eq.s32.totalorder %s9, 0
    %p41 = por %p39, %p40
    %p42 = scmp.ne.s32.totalorder %s31, %s34
    %p43 = scmp.eq.s32.totalorder %s14, 1
    %p44 = por %p42, %p43
    %p45 = scmp.ne.s32.totalorder %s34, %s35
    %p46 = scmp.eq.s32.totalorder %s14, 0
    %p47 = por %p45, %p46
    %p48 = scmp.ne.s32.totalorder %s34, %s35
    %p49 = scmp.eq.s32.totalorder %s15, 1
    %p50 = por %p48, %p49
    %p52 = scmp.ne.s32.totalorder %s35, %s51
    %p53 = scmp.eq.s32.totalorder %s15, 0
    %p54 = por %p52, %p53
    %s55 = ssub.s32 %s17, %s24
    %p56 = scmp.eq.s32.totalorder %s55, 0
    %s58 = sadd.s32 %s57, 1
    %s59 = scalar_select %p56, %s57, %s58
    %p62 = pneg %p56
    %p63 = scmp.eq.s32.totalorder %s9, 1
    %p64 = por %p62, %p63
    %p65 = scmp.ne.s32.totalorder %s57, %s60
    %p66 = scmp.eq.s32.totalorder %s9, 0
    %p67 = por %p65, %p66
    %p68 = scmp.ne.s32.totalorder %s57, %s60
    %p69 = scmp.eq.s32.totalorder %s14, 1
    %p70 = por %p68, %p69
    %p71 = scmp.ne.s32.totalorder %s60, %s61
    %p72 = scmp.eq.s32.totalorder %s14, 0
    %p73 = por %p71, %p72
    %p74 = scmp.ne.s32.totalorder %s60, %s61
    %p75 = scmp.eq.s32.totalorder %s15, 1
    %p76 = por %p74, %p75
    %p78 = scmp.ne.s32.totalorder %s61, %s77
    %p79 = scmp.eq.s32.totalorder %s15, 0
    %p80 = por %p78, %p79
    %s81 = ssub.s32 %s17, %s24
    %p82 = scmp.eq.s32.totalorder %s81, 0
    %s84 = sadd.s32 %s83, 1
    %s85 = scalar_select %p82, %s83, %s84
    %p88 = pneg %p82
    %p89 = scmp.eq.s32.totalorder %s9, 1
    %p90 = por %p88, %p89
    %p91 = scmp.ne.s32.totalorder %s83, %s86
    %p92 = scmp.eq.s32.totalorder %s9, 0
    %p93 = por %p91, %p92
    %p94 = scmp.ne.s32.totalorder %s83, %s86
    %p95 = scmp.eq.s32.totalorder %s14, 1
    %p96 = por %p94, %p95
    %p97 = scmp.ne.s32.totalorder %s86, %s87
    %p98 = scmp.eq.s32.totalorder %s14, 0
    %p99 = por %p97, %p98
    %p100 = scmp.ne.s32.totalorder %s86, %s87
    %p101 = scmp.eq.s32.totalorder %s15, 1
    %p102 = por %p100, %p101
    %p104 = scmp.ne.s32.totalorder %s87, %s103
    %p105 = scmp.eq.s32.totalorder %s15, 0
    %p106 = por %p104, %p105
    %s107 = ssub.s32 %s16, %s28
    %s108 = ssub.s32 %s17, %s24
    %s109 = sor.u32 %s107, %s108
    %p110 = scmp.eq.s32.totalorder %s109, 0
    %s112 = sadd.s32 %s111, 1
    %s113 = scalar_select %p110, %s111, %s112
    %p116 = pneg %p110
    %p117 = scmp.eq.s32.totalorder %s9, 1
    %p118 = por %p116, %p117
    %p119 = scmp.ne.s32.totalorder %s111, %s114
    %p120 = scmp.eq.s32.totalorder %s9, 0
    %p121 = por %p119, %p120
    %p122 = scmp.ne.s32.totalorder %s111, %s114
    %p123 = scmp.eq.s32.totalorder %s14, 1
    %p124 = por %p122, %p123
    %p125 = scmp.ne.s32.totalorder %s114, %s115
    %p126 = scmp.eq.s32.totalorder %s14, 0
    %p127 = por %p125, %p126
    %p128 = scmp.ne.s32.totalorder %s114, %s115
    %p129 = scmp.eq.s32.totalorder %s15, 1
    %p130 = por %p128, %p129
    %p132 = scmp.ne.s32.totalorder %s115, %s131
    %p133 = scmp.eq.s32.totalorder %s15, 0
    %p134 = por %p132, %p133
    %p135 = scmp.le.s32.totalorder 1, %s9
    %p136 = scmp.lt.s32.totalorder %s9, 3
    %p137 = pnand %p135, %p136
    %p138 = pneg %p137
    // Predicated region
    $region9: #{bottleneck_forward.4} parent=5 // pred_check
      _
    $region10: #{bottleneck_forward.4} parent=5 // pred_check_branch
      %140 = sbr.rel (%p137) target = $region12
    $region11: #{bottleneck_forward.4} parent=5 // pred_region
      %s141 = ssub.s32 %s9, 1
      // Predicated region
      $region13: #{bottleneck_forward.4} parent=11 // pred_check
        %p142 = pneg %p73
      $region14: #{bottleneck_forward.4} parent=11 // pred_check_branch
        %144 = sbr.rel (%p142) target = $region16
      $region15: #{bottleneck_forward.4} parent=11 // pred_region
        %p145 = scmp.lt.s32.totalorder %s19, 0
        %s146 = scalar_select %p145, %s19, 0
        %s147 = smul.addr %s146, 4
        %s148 = scalar_lea.vmem %s1, %s147
      $region16: #{bottleneck_forward.4} parent=11 // pred_fallthru
        _
      // Predicated region
      $region17: #{bottleneck_forward.4} parent=11 // pred_check
        %p149 = pneg %p99
      $region18: #{bottleneck_forward.4} parent=11 // pred_check_branch
        %151 = sbr.rel (%p149) target = $region20
      $region19: #{bottleneck_forward.4} parent=11 // pred_region
        %p152 = scmp.lt.s32.totalorder %s19, 0
        %s153 = scalar_select %p152, %s19, 0
        %s154 = scalar_lea.vmem %s2, %s153
      $region20: #{bottleneck_forward.4} parent=11 // pred_fallthru
        _
    $region12: #{bottleneck_forward.4} parent=5 // pred_fallthru
      _
    %p155 = scmp.lt.s32.totalorder %s9, 2
    // Predicated region
    $region21: #{bottleneck_forward.4} parent=5 // pred_check
      %p156 = pneg %p155
    $region22: #{bottleneck_forward.4} parent=5 // pred_check_branch
      %158 = sbr.rel (%p156) target = $region24
    $region23: #{bottleneck_forward.4} parent=5 // pred_region
      // Predicated region
      $region25: #{bottleneck_forward.4} parent=23 // pred_check
        %p159 = pneg %p41
      $region26: #{bottleneck_forward.4} parent=23 // pred_check_branch
        %161 = sbr.rel (%p159) target = $region28
      $region27: #{bottleneck_forward.4} parent=23 // pred_region
        %s162 = smul.u32 4, %s16
        %p163 = scmp.lt.s32.totalorder %s162, 7
        %s164 = scalar_select %p163, %s162, 7
        %s165 = smul.addr %s164, 18
        %s166 = smul.addr %s165, 4
        %s167 = scalar_lea.vmem %s0, %s166
        %s168 = smul.u32 4, %s16
      $region28: #{bottleneck_forward.4} parent=23 // pred_fallthru
        _
    $region24: #{bottleneck_forward.4} parent=5 // pred_fallthru
      _
    %p169 = scmp.le.s32.totalorder 1, %s9
    %p170 = scmp.lt.s32.totalorder %s9, 3
    %p171 = pnand %p169, %p170
    %p172 = pneg %p171
    // Predicated region
    $region29: #{bottleneck_forward.4} parent=5 // pred_check
      _
    $region30: #{bottleneck_forward.4} parent=5 // pred_check_branch
      %174 = sbr.rel (%p171) target = $region32
    $region31: #{bottleneck_forward.4} parent=5 // pred_region
      %s175 = ssub.s32 %s9, 1
      %s176 = smul.u32 4, %s18
      %p177 = scmp.lt.s32.totalorder %s176, 7
      %s178 = scalar_select %p177, %s176, 7
      %s179 = smul.addr %s178, 18
      %s180 = smul.addr %s179, 4
      %s181 = scalar_lea.vmem %s0, %s180
      %p182 = pneg %p47
      %p183 = pneg %p44
      %p184 = scmp.lt.s32.totalorder %s19, 0
      %s185 = scalar_select %p184, %s19, 0
      %s186 = smul.addr %s185, 4
      %s187 = scalar_lea.vmem %s1, %s186
      %p188 = pneg %p73
      %p189 = pneg %p70
      %p190 = scmp.lt.s32.totalorder %s19, 0
      %s191 = scalar_select %p190, %s19, 0
      %s192 = scalar_lea.vmem %s2, %s191
      %p193 = pneg %p99
      %p194 = pneg %p96
      %p195 = pneg %p127
      %p196 = pneg %p124
      %p197 = scmp.lt.s32.totalorder %s18, 1
      %s198 = scalar_select %p197, %s18, 1
      %p199 = scmp.lt.s32.totalorder %s19, 0
      %s200 = scalar_select %p199, %s19, 0
      %s201 = smul.addr %s198, 8
      %s202 = sadd.s32 %s200, %s201
      %s203 = smul.addr %s202, 4
      %s204 = scalar_lea.vmem %s3, %s203
      %s205 = smul.u32 4, %s18
      %p206 = scmp.lt.s32.totalorder %s205, 7
      %s207 = scalar_select %p206, %s205, 7
      %s208 = smul.addr %s207, 18
      %s209 = smul.addr %s208, 4
      %s210 = scalar_lea.vmem %s0, %s209
      %s211 = smul.u32 4, %s18
      %p212 = scmp.lt.s32.totalorder %s19, 0
      %s213 = scalar_select %p212, %s19, 0
      %s214 = smul.addr %s213, 4
      %s215 = scalar_lea.vmem %s1, %s214
      %p216 = scmp.lt.s32.totalorder %s19, 0
      %s217 = scalar_select %p216, %s19, 0
      %s218 = scalar_lea.vmem %s2, %s217
      %p219 = scmp.lt.s32.totalorder %s18, 1
      %s220 = scalar_select %p219, %s18, 1
      %p221 = scmp.lt.s32.totalorder %s19, 0
      %s222 = scalar_select %p221, %s19, 0
      %s223 = smul.addr %s220, 8
      %s224 = sadd.s32 %s222, %s223
      %s225 = smul.addr %s224, 4
      %s226 = scalar_lea.vmem %s3, %s225
      %v228 = vld [vmem:[%s210] sm:$0xf]
      %v229 = vld [vmem:[%s210 + $0x8] sm:$0xf]
      %v230 = vld [vmem:[%s210 + $0x10] sm:$0xf]
      %v231 = vld [vmem:[%s210 + $0x18] sm:$0xf]
      %v232 = vld [vmem:[%s210 + $0x20] sm:$0xf]
      %v233 = vld [vmem:[%s210 + $0x28] sm:$0xf]
      %v234 = vld [vmem:[%s210 + $0x30] sm:$0xf]
      %v235 = vld [vmem:[%s210 + $0x38] sm:$0xf]
      %v236 = vld [vmem:[%s215] sm:$0xf]
      %v237 = vld [vmem:[%s215 + $0x4] sm:$0xf]
      %v238 = vld [vmem:[%s215 + $0x8] sm:$0xf]
      %v239 = vld [vmem:[%s215 + $0xc] sm:$0xf]
      %v240 = vld [vmem:[%s215 + $0x10] sm:$0xf]
      %v241 = vld [vmem:[%s215 + $0x14] sm:$0xf]
      %v242 = vld [vmem:[%s215 + $0x18] sm:$0xf]
      %v243 = vld [vmem:[%s215 + $0x1c] sm:$0xf]
      %v244 = vld [vmem:[%s215 + $0x20] sm:$0xf]
      %v245 = vld [vmem:[%s215 + $0x24] sm:$0xf]
      %v246 = vld [vmem:[%s215 + $0x28] sm:$0xf]
      %v247 = vld [vmem:[%s215 + $0x2c] sm:$0xf]
      %v248 = vld [vmem:[%s215 + $0x30] sm:$0xf]
      %v249 = vld [vmem:[%s215 + $0x34] sm:$0xf]
      %v250 = vld [vmem:[%s215 + $0x38] sm:$0xf]
      %v251 = vld [vmem:[%s215 + $0x3c] sm:$0xf]
      %s252 = scalar_lea.vmem %s210, 72
      %v253 = vld [vmem:[%s252] sm:$0xf]
      %v254 = vld [vmem:[%s252 + $0x8] sm:$0xf]
      %v255 = vld [vmem:[%s252 + $0x10] sm:$0xf]
      %v256 = vld [vmem:[%s252 + $0x18] sm:$0xf]
      %v257 = vld [vmem:[%s252 + $0x20] sm:$0xf]
      %v258 = vld [vmem:[%s252 + $0x28] sm:$0xf]
      %v259 = vld [vmem:[%s252 + $0x30] sm:$0xf]
      %v260 = vld [vmem:[%s252 + $0x38] sm:$0xf]
      %s261 = scalar_lea.vmem %s215, 64
      %v262 = vld [vmem:[%s261] sm:$0xf]
      %v263 = vld [vmem:[%s261 + $0x4] sm:$0xf]
      %v264 = vld [vmem:[%s261 + $0x8] sm:$0xf]
      %v265 = vld [vmem:[%s261 + $0xc] sm:$0xf]
      %v266 = vld [vmem:[%s261 + $0x10] sm:$0xf]
      %v267 = vld [vmem:[%s261 + $0x14] sm:$0xf]
      %v268 = vld [vmem:[%s261 + $0x18] sm:$0xf]
      %v269 = vld [vmem:[%s261 + $0x1c] sm:$0xf]
      %v270 = vld [vmem:[%s261 + $0x20] sm:$0xf]
      %v271 = vld [vmem:[%s261 + $0x24] sm:$0xf]
      %v272 = vld [vmem:[%s261 + $0x28] sm:$0xf]
      %v273 = vld [vmem:[%s261 + $0x2c] sm:$0xf]
      %v274 = vld [vmem:[%s261 + $0x30] sm:$0xf]
      %v275 = vld [vmem:[%s261 + $0x34] sm:$0xf]
      %v276 = vld [vmem:[%s261 + $0x38] sm:$0xf]
      %v277 = vld [vmem:[%s261 + $0x3c] sm:$0xf]
      %v286 = vunpack.c.l.b16 %v253
      %v287 = vunpack.c.l.b16 %v254
      %v288 = vunpack.c.l.b16 %v255
      %v289 = vunpack.c.l.b16 %v256
      %v290 = vunpack.c.l.b16 %v257
      %v291 = vunpack.c.l.b16 %v258
      %v292 = vunpack.c.l.b16 %v259
      %v293 = vunpack.c.l.b16 %v260
      %v294 = vpack.c.b16 %v287, %v286
      %v295 = vpack.c.b16 %v289, %v288
      %v296 = vpack.c.b16 %v291, %v290
      %v297 = vpack.c.b16 %v293, %v292
      %v318 = vunpack.c.l.b16 %v262
      %v319 = vunpack.c.l.b16 %v263
      %v320 = vunpack.c.l.b16 %v264
      %v321 = vunpack.c.l.b16 %v265
      %v322 = vunpack.c.l.b16 %v266
      %v323 = vunpack.c.l.b16 %v267
      %v324 = vunpack.c.l.b16 %v268
      %v325 = vunpack.c.l.b16 %v269
      %v326 = vunpack.c.l.b16 %v270
      %v327 = vunpack.c.l.b16 %v271
      %v328 = vunpack.c.l.b16 %v272
      %v329 = vunpack.c.l.b16 %v273
      %v330 = vunpack.c.l.b16 %v274
      %v331 = vunpack.c.l.b16 %v275
      %v332 = vunpack.c.l.b16 %v276
      %v333 = vunpack.c.l.b16 %v277
      %v334 = vpack.c.b16 %v319, %v318
      %v335 = vpack.c.b16 %v321, %v320
      %v336 = vpack.c.b16 %v323, %v322
      %v337 = vpack.c.b16 %v325, %v324
      %v338 = vpack.c.b16 %v327, %v326
      %v339 = vpack.c.b16 %v329, %v328
      %v340 = vpack.c.b16 %v331, %v330
      %v341 = vpack.c.b16 %v333, %v332
      %350 = vmatprep.subr.bf16.mxu0 0
      %351 = vmatpush1.bf16.msra.mxu0 %v334
      %352 = vmatprep.subr.bf16.mxu0 0
      %353 = vmatpush1.bf16.msra.mxu0 %v335
      %354 = vmatprep.subr.bf16.mxu0 0
      %355 = vmatpush1.bf16.msra.mxu0 %v336
      %356 = vmatprep.subr.bf16.mxu0 0
      %357 = vmatpush1.bf16.msra.mxu0 %v337
      %358 = vmatprep.subr.bf16.mxu0 0
      %359 = vmatpush1.bf16.msra.mxu0 %v338
      %360 = vmatprep.subr.bf16.mxu0 0
      %361 = vmatpush1.bf16.msra.mxu0 %v339
      %362 = vmatprep.subr.bf16.mxu0 0
      %363 = vmatpush1.bf16.msra.mxu0 %v340
      %364 = vmatprep.subr.bf16.mxu0 0
      %365 = vmatpush1.bf16.msra.mxu0 %v341
      %366 = vmatprep.subr.bf16.mxu0 0
      %367 = vmatpush1.bf16.msra.mxu0 0
      %368 = vmatprep.subr.bf16.mxu0 0
      %369 = vmatpush1.bf16.msra.mxu0 0
      %370 = vmatprep.subr.bf16.mxu0 0
      %371 = vmatpush1.bf16.msra.mxu0 0
      %372 = vmatprep.subr.bf16.mxu0 0
      %373 = vmatpush1.bf16.msra.mxu0 0
      %374 = vmatprep.subr.bf16.mxu0 0
      %375 = vmatpush1.bf16.msra.mxu0 0
      %376 = vmatprep.subr.bf16.mxu0 0
      %377 = vmatpush1.bf16.msra.mxu0 0
      %378 = vmatprep.subr.bf16.mxu0 0
      %379 = vmatpush1.bf16.msra.mxu0 0
      %380 = vmatprep.subr.bf16.mxu0 0
      %381 = vmatpush1.bf16.msra.mxu0 0
      %382 = vmatprep.mubr.bf16.mxu0 0
      %383 = vmatmul.mubr.bf16.gmra.mrb[0].mxu0 %v294
      %v384 = vpop.f32.mrb[0].mxu0
      %v385 = vadd.f32 0.0, %v384
      %v386 = vpop.f32.mrb[0].mxu0
      %v387 = vpop.f32.mrb[0].mxu0
      %v388 = vadd.f32 0.0, %v387
      %v389 = vpop.f32.mrb[0].mxu0
      %390 = vmatprep.mubr.bf16.mxu0 0
      %391 = vmatmul.mubr.bf16.gmra.mrb[0].mxu0 %v295
      %v392 = vpop.f32.mrb[0].mxu0
      %v393 = vadd.f32 0.0, %v392
      %v394 = vpop.f32.mrb[0].mxu0
      %v395 = vpop.f32.mrb[0].mxu0
      %v396 = vadd.f32 0.0, %v395
      %v397 = vpop.f32.mrb[0].mxu0
      %398 = vmatprep.mubr.bf16.mxu0 0
      %399 = vmatmul.mubr.bf16.gmra.mrb[0].mxu0 %v296
      %v400 = vpop.f32.mrb[0].mxu0
      %v401 = vadd.f32 0.0, %v400
      %v402 = vpop.f32.mrb[0].mxu0
      %v403 = vpop.f32.mrb[0].mxu0
      %v404 = vadd.f32 0.0, %v403
      %v405 = vpop.f32.mrb[0].mxu0
      %406 = vmatprep.mubr.bf16.mxu0 0
      %407 = vmatmul.mubr.bf16.gmra.mrb[0].mxu0 %v297
      %v408 = vpop.f32.mrb[0].mxu0
      %v409 = vadd.f32 0.0, %v408
      %v410 = vpop.f32.mrb[0].mxu0
      %v411 = vpop.f32.mrb[0].mxu0
      %v412 = vadd.f32 0.0, %v411
      %v413 = vpop.f32.mrb[0].mxu0
      %414 = vdwg.mxu0
      %v423 = vunpack.c.l.b16 %v228
      %v424 = vunpack.c.l.b16 %v229
      %v425 = vunpack.c.l.b16 %v230
      %v426 = vunpack.c.l.b16 %v231
      %v427 = vunpack.c.l.b16 %v232
      %v428 = vunpack.c.l.b16 %v233
      %v429 = vunpack.c.l.b16 %v234
      %v430 = vunpack.c.l.b16 %v235
      %v431 = vpack.c.b16 %v424, %v423
      %v432 = vpack.c.b16 %v426, %v425
      %v433 = vpack.c.b16 %v428, %v427
      %v434 = vpack.c.b16 %v430, %v429
      %v455 = vunpack.c.l.b16 %v236
      %v456 = vunpack.c.l.b16 %v237
      %v457 = vunpack.c.l.b16 %v238
      %v458 = vunpack.c.l.b16 %v239
      %v459 = vunpack.c.l.b16 %v240
      %v460 = vunpack.c.l.b16 %v241
      %v461 = vunpack.c.l.b16 %v242
      %v462 = vunpack.c.l.b16 %v243
      %v463 = vunpack.c.l.b16 %v244
      %v464 = vunpack.c.l.b16 %v245
      %v465 = vunpack.c.l.b16 %v246
      %v466 = vunpack.c.l.b16 %v247
      %v467 = vunpack.c.l.b16 %v248
      %v468 = vunpack.c.l.b16 %v249
      %v469 = vunpack.c.l.b16 %v250
      %v470 = vunpack.c.l.b16 %v251
      %v471 = vpack.c.b16 %v456, %v455
      %v472 = vpack.c.b16 %v458, %v457
      %v473 = vpack.c.b16 %v460, %v459
      %v474 = vpack.c.b16 %v462, %v461
      %v475 = vpack.c.b16 %v464, %v463
      %v476 = vpack.c.b16 %v466, %v465
      %v477 = vpack.c.b16 %v468, %v467
      %v478 = vpack.c.b16 %v470, %v469
      %487 = vmatprep.subr.bf16.mxu0 0
      %488 = vmatpush1.bf16.msra.mxu0 %v471
      %489 = vmatprep.subr.bf16.mxu0 0
      %490 = vmatpush1.bf16.msra.mxu0 %v472
      %491 = vmatprep.subr.bf16.mxu0 0
      %492 = vmatpush1.bf16.msra.mxu0 %v473
      %493 = vmatprep.subr.bf16.mxu0 0
      %494 = vmatpush1.bf16.msra.mxu0 %v474
      %495 = vmatprep.subr.bf16.mxu0 0
      %496 = vmatpush1.bf16.msra.mxu0 %v475
      %497 = vmatprep.subr.bf16.mxu0 0
      %498 = vmatpush1.bf16.msra.mxu0 %v476
      %499 = vmatprep.subr.bf16.mxu0 0
      %500 = vmatpush1.bf16.msra.mxu0 %v477
      %501 = vmatprep.subr.bf16.mxu0 0
      %502 = vmatpush1.bf16.msra.mxu0 %v478
      %503 = vmatprep.subr.bf16.mxu0 0
      %504 = vmatpush1.bf16.msra.mxu0 0
      %505 = vmatprep.subr.bf16.mxu0 0
      %506 = vmatpush1.bf16.msra.mxu0 0
      %507 = vmatprep.subr.bf16.mxu0 0
      %508 = vmatpush1.bf16.msra.mxu0 0
      %509 = vmatprep.subr.bf16.mxu0 0
      %510 = vmatpush1.bf16.msra.mxu0 0
      %511 = vmatprep.subr.bf16.mxu0 0
      %512 = vmatpush1.bf16.msra.mxu0 0
      %513 = vmatprep.subr.bf16.mxu0 0
      %514 = vmatpush1.bf16.msra.mxu0 0
      %515 = vmatprep.subr.bf16.mxu0 0
      %516 = vmatpush1.bf16.msra.mxu0 0
      %517 = vmatprep.subr.bf16.mxu0 0
      %518 = vmatpush1.bf16.msra.mxu0 0
      %519 = vmatprep.mubr.bf16.mxu0 0
      %520 = vmatmul.mubr.bf16.gmra.mrb[0].mxu0 %v431
      %v521 = vpop.f32.mrb[0].mxu0
      %v522 = vadd.f32 %v385, %v521
      %v523 = vpop.f32.mrb[0].mxu0
      %v524 = vpop.f32.mrb[0].mxu0
      %v525 = vadd.f32 %v388, %v524
      %v526 = vpop.f32.mrb[0].mxu0
      %527 = vmatprep.mubr.bf16.mxu0 0
      %528 = vmatmul.mubr.bf16.gmra.mrb[0].mxu0 %v432
      %v529 = vpop.f32.mrb[0].mxu0
      %v530 = vadd.f32 %v393, %v529
      %v531 = vpop.f32.mrb[0].mxu0
      %v532 = vpop.f32.mrb[0].mxu0
      %v533 = vadd.f32 %v396, %v532
      %v534 = vpop.f32.mrb[0].mxu0
      %535 = vmatprep.mubr.bf16.mxu0 0
      %536 = vmatmul.mubr.bf16.gmra.mrb[0].mxu0 %v433
      %v537 = vpop.f32.mrb[0].mxu0
      %v538 = vadd.f32 %v401, %v537
      %v539 = vpop.f32.mrb[0].mxu0
      %v540 = vpop.f32.mrb[0].mxu0
      %v541 = vadd.f32 %v404, %v540
      %v542 = vpop.f32.mrb[0].mxu0
      %543 = vmatprep.mubr.bf16.mxu0 0
      %544 = vmatmul.mubr.bf16.gmra.mrb[0].mxu0 %v434
      %v545 = vpop.f32.mrb[0].mxu0
      %v546 = vadd.f32 %v409, %v545
      %v547 = vpop.f32.mrb[0].mxu0
      %v548 = vpop.f32.mrb[0].mxu0
      %v549 = vadd.f32 %v412, %v548
      %v550 = vpop.f32.mrb[0].mxu0
      %551 = vdwg.mxu0
      %v552 = vld [vmem:[%s210] sm:$0xf]
      %v553 = vld [vmem:[%s210 + $0x4] sm:$0x1]
      %v554 = vld [vmem:[%s210 + $0x8] sm:$0xf]
      %v555 = vld [vmem:[%s210 + $0xc] sm:$0x1]
      %v556 = vld [vmem:[%s210 + $0x10] sm:$0xf]
      %v557 = vld [vmem:[%s210 + $0x14] sm:$0x1]
      %v558 = vld [vmem:[%s210 + $0x18] sm:$0xf]
      %v559 = vld [vmem:[%s210 + $0x1c] sm:$0x1]
      %v560 = vld [vmem:[%s210 + $0x20] sm:$0xf]
      %v561 = vld [vmem:[%s210 + $0x24] sm:$0x1]
      %v562 = vld [vmem:[%s210 + $0x28] sm:$0xf]
      %v563 = vld [vmem:[%s210 + $0x2c] sm:$0x1]
      %v564 = vld [vmem:[%s210 + $0x30] sm:$0xf]
      %v565 = vld [vmem:[%s210 + $0x34] sm:$0x1]
      %v566 = vld [vmem:[%s210 + $0x38] sm:$0xf]
      %v567 = vld [vmem:[%s210 + $0x3c] sm:$0x1]
      %vm568 = vsmask.f32 3328
      %vm569 = vsmask.f32 7440
      %vm570 = vmor %vm568, %vm569
      %v572 = vshrl.u32 %v552, 16
      %v574 = vrot.slane %v572, 4
      %v575 = vshll.u32 %v552, 16
      %v577 = vrot.slane %v575, 5
      %v578 = vor.u32 %v574, %v577
      %v579 = vrot.slane %v578, 4
      %v581 = vshll.u32 %v553, 16
      %v583 = vrot.slane %v581, 5
      %v584 = vsel %vm570, %v579, %v583
      %v586 = vshrl.u32 %v554, 16
      %v588 = vrot.slane %v586, 4
      %v589 = vshll.u32 %v554, 16
      %v591 = vrot.slane %v589, 5
      %v592 = vor.u32 %v588, %v591
      %v593 = vrot.slane %v592, 4
      %v595 = vshll.u32 %v555, 16
      %v597 = vrot.slane %v595, 5
      %v598 = vsel %vm570, %v593, %v597
      %v600 = vshrl.u32 %v556, 16
      %v602 = vrot.slane %v600, 4
      %v603 = vshll.u32 %v556, 16
      %v605 = vrot.slane %v603, 5
      %v606 = vor.u32 %v602, %v605
      %v607 = vrot.slane %v606, 4
      %v609 = vshll.u32 %v557, 16
      %v611 = vrot.slane %v609, 5
      %v612 = vsel %vm570, %v607, %v611
      %v614 = vshrl.u32 %v558, 16
      %v616 = vrot.slane %v614, 4
      %v617 = vshll.u32 %v558, 16
      %v619 = vrot.slane %v617, 5
      %v620 = vor.u32 %v616, %v619
      %v621 = vrot.slane %v620, 4
      %v623 = vshll.u32 %v559, 16
      %v625 = vrot.slane %v623, 5
      %v626 = vsel %vm570, %v621, %v625
      %v628 = vshrl.u32 %v560, 16
      %v630 = vrot.slane %v628, 4
      %v631 = vshll.u32 %v560, 16
      %v633 = vrot.slane %v631, 5
      %v634 = vor.u32 %v630, %v633
      %v635 = vrot.slane %v634, 4
      %v637 = vshll.u32 %v561, 16
      %v639 = vrot.slane %v637, 5
      %v640 = vsel %vm570, %v635, %v639
      %v642 = vshrl.u32 %v562, 16
      %v644 = vrot.slane %v642, 4
      %v645 = vshll.u32 %v562, 16
      %v647 = vrot.slane %v645, 5
      %v648 = vor.u32 %v644, %v647
      %v649 = vrot.slane %v648, 4
      %v651 = vshll.u32 %v563, 16
      %v653 = vrot.slane %v651, 5
      %v654 = vsel %vm570, %v649, %v653
      %v656 = vshrl.u32 %v564, 16
      %v658 = vrot.slane %v656, 4
      %v659 = vshll.u32 %v564, 16
      %v661 = vrot.slane %v659, 5
      %v662 = vor.u32 %v658, %v661
      %v663 = vrot.slane %v662, 4
      %v665 = vshll.u32 %v565, 16
      %v667 = vrot.slane %v665, 5
      %v668 = vsel %vm570, %v663, %v667
      %v670 = vshrl.u32 %v566, 16
      %v672 = vrot.slane %v670, 4
      %v673 = vshll.u32 %v566, 16
      %v675 = vrot.slane %v673, 5
      %v676 = vor.u32 %v672, %v675
      %v677 = vrot.slane %v676, 4
      %v679 = vshll.u32 %v567, 16
      %v681 = vrot.slane %v679, 5
      %v682 = vsel %vm570, %v677, %v681
      %s683 = scalar_lea.vmem %s215, 128
      %v684 = vld [vmem:[%s683] sm:$0xf]
      %v685 = vld [vmem:[%s683 + $0x4] sm:$0xf]
      %v686 = vld [vmem:[%s683 + $0x8] sm:$0xf]
      %v687 = vld [vmem:[%s683 + $0xc] sm:$0xf]
      %v688 = vld [vmem:[%s683 + $0x10] sm:$0xf]
      %v689 = vld [vmem:[%s683 + $0x14] sm:$0xf]
      %v690 = vld [vmem:[%s683 + $0x18] sm:$0xf]
      %v691 = vld [vmem:[%s683 + $0x1c] sm:$0xf]
      %v692 = vld [vmem:[%s683 + $0x20] sm:$0xf]
      %v693 = vld [vmem:[%s683 + $0x24] sm:$0xf]
      %v694 = vld [vmem:[%s683 + $0x28] sm:$0xf]
      %v695 = vld [vmem:[%s683 + $0x2c] sm:$0xf]
      %v696 = vld [vmem:[%s683 + $0x30] sm:$0xf]
      %v697 = vld [vmem:[%s683 + $0x34] sm:$0xf]
      %v698 = vld [vmem:[%s683 + $0x38] sm:$0xf]
      %v699 = vld [vmem:[%s683 + $0x3c] sm:$0xf]
      %v700 = vunpack.c.l.b16 %v584
      %v701 = vunpack.c.l.b16 %v598
      %v702 = vunpack.c.l.b16 %v612
      %v703 = vunpack.c.l.b16 %v626
      %v704 = vunpack.c.l.b16 %v640
      %v705 = vunpack.c.l.b16 %v654
      %v706 = vunpack.c.l.b16 %v668
      %v707 = vunpack.c.l.b16 %v682
      %v708 = vpack.c.b16 %v701, %v700
      %v709 = vpack.c.b16 %v703, %v702
      %v710 = vpack.c.b16 %v705, %v704
      %v711 = vpack.c.b16 %v707, %v706
      %v732 = vunpack.c.l.b16 %v684
      %v733 = vunpack.c.l.b16 %v685
      %v734 = vunpack.c.l.b16 %v686
      %v735 = vunpack.c.l.b16 %v687
      %v736 = vunpack.c.l.b16 %v688
      %v737 = vunpack.c.l.b16 %v689
      %v738 = vunpack.c.l.b16 %v690
      %v739 = vunpack.c.l.b16 %v691
      %v740 = vunpack.c.l.b16 %v692
      %v741 = vunpack.c.l.b16 %v693
      %v742 = vunpack.c.l.b16 %v694
      %v743 = vunpack.c.l.b16 %v695
      %v744 = vunpack.c.l.b16 %v696
      %v745 = vunpack.c.l.b16 %v697
      %v746 = vunpack.c.l.b16 %v698
      %v747 = vunpack.c.l.b16 %v699
      %v748 = vpack.c.b16 %v733, %v732
      %v749 = vpack.c.b16 %v735, %v734
      %v750 = vpack.c.b16 %v737, %v736
      %v751 = vpack.c.b16 %v739, %v738
      %v752 = vpack.c.b16 %v741, %v740
      %v753 = vpack.c.b16 %v743, %v742
      %v754 = vpack.c.b16 %v745, %v744
      %v755 = vpack.c.b16 %v747, %v746
      %764 = vmatprep.subr.bf16.mxu0 0
      %765 = vmatpush1.bf16.msra.mxu0 %v748
      %766 = vmatprep.subr.bf16.mxu0 0
      %767 = vmatpush1.bf16.msra.mxu0 %v749
      %768 = vmatprep.subr.bf16.mxu0 0
      %769 = vmatpush1.bf16.msra.mxu0 %v750
      %770 = vmatprep.subr.bf16.mxu0 0
      %771 = vmatpush1.bf16.msra.mxu0 %v751
      %772 = vmatprep.subr.bf16.mxu0 0
      %773 = vmatpush1.bf16.msra.mxu0 %v752
      %774 = vmatprep.subr.bf16.mxu0 0
      %775 = vmatpush1.bf16.msra.mxu0 %v753
      %776 = vmatprep.subr.bf16.mxu0 0
      %777 = vmatpush1.bf16.msra.mxu0 %v754
      %778 = vmatprep.subr.bf16.mxu0 0
      %779 = vmatpush1.bf16.msra.mxu0 %v755
      %780 = vmatprep.subr.bf16.mxu0 0
      %781 = vmatpush1.bf16.msra.mxu0 0
      %782 = vmatprep.subr.bf16.mxu0 0
      %783 = vmatpush1.bf16.msra.mxu0 0
      %784 = vmatprep.subr.bf16.mxu0 0
      %785 = vmatpush1.bf16.msra.mxu0 0
      %786 = vmatprep.subr.bf16.mxu0 0
      %787 = vmatpush1.bf16.msra.mxu0 0
      %788 = vmatprep.subr.bf16.mxu0 0
      %789 = vmatpush1.bf16.msra.mxu0 0
      %790 = vmatprep.subr.bf16.mxu0 0
      %791 = vmatpush1.bf16.msra.mxu0 0
      %792 = vmatprep.subr.bf16.mxu0 0
      %793 = vmatpush1.bf16.msra.mxu0 0
      %794 = vmatprep.subr.bf16.mxu0 0
      %795 = vmatpush1.bf16.msra.mxu0 0
      %796 = vmatprep.mubr.bf16.mxu0 0
      %797 = vmatmul.mubr.bf16.gmra.mrb[0].mxu0 %v708
      %v798 = vpop.f32.mrb[0].mxu0
      %v799 = vadd.f32 0.0, %v798
      %v800 = vpop.f32.mrb[0].mxu0
      %v801 = vpop.f32.mrb[0].mxu0
      %v802 = vadd.f32 0.0, %v801
      %v803 = vpop.f32.mrb[0].mxu0
      %804 = vmatprep.mubr.bf16.mxu0 0
      %805 = vmatmul.mubr.bf16.gmra.mrb[0].mxu0 %v709
      %v806 = vpop.f32.mrb[0].mxu0
      %v807 = vadd.f32 0.0, %v806
      %v808 = vpop.f32.mrb[0].mxu0
      %v809 = vpop.f32.mrb[0].mxu0
      %v810 = vadd.f32 0.0, %v809
      %v811 = vpop.f32.mrb[0].mxu0
      %812 = vmatprep.mubr.bf16.mxu0 0
      %813 = vmatmul.mubr.bf16.gmra.mrb[0].mxu0 %v710
      %v814 = vpop.f32.mrb[0].mxu0
      %v815 = vadd.f32 0.0, %v814
      %v816 = vpop.f32.mrb[0].mxu0
      %v817 = vpop.f32.mrb[0].mxu0
      %v818 = vadd.f32 0.0, %v817
      %v819 = vpop.f32.mrb[0].mxu0
      %820 = vmatprep.mubr.bf16.mxu0 0
      %821 = vmatmul.mubr.bf16.gmra.mrb[0].mxu0 %v711
      %v822 = vpop.f32.mrb[0].mxu0
      %v823 = vadd.f32 0.0, %v822
      %v824 = vpop.f32.mrb[0].mxu0
      %v825 = vpop.f32.mrb[0].mxu0
      %v826 = vadd.f32 0.0, %v825
      %v827 = vpop.f32.mrb[0].mxu0
      %828 = vdwg.mxu0
      %v829 = vadd.f32 %v522, %v799
      %v830 = vadd.f32 %v525, %v802
      %v831 = vadd.f32 %v530, %v807
      %v832 = vadd.f32 %v533, %v810
      %v833 = vadd.f32 %v538, %v815
      %v834 = vadd.f32 %v541, %v818
      %v835 = vadd.f32 %v546, %v823
      %v836 = vadd.f32 %v549, %v826
      %s837 = scalar_lea.vmem %s210, 144
      %v838 = vld [vmem:[%s837] sm:$0xf]
      %v839 = vld [vmem:[%s837 + $0x8] sm:$0xf]
      %v840 = vld [vmem:[%s837 + $0x10] sm:$0xf]
      %v841 = vld [vmem:[%s837 + $0x18] sm:$0xf]
      %v842 = vld [vmem:[%s837 + $0x20] sm:$0xf]
      %v843 = vld [vmem:[%s837 + $0x28] sm:$0xf]
      %v844 = vld [vmem:[%s837 + $0x30] sm:$0xf]
      %v845 = vld [vmem:[%s837 + $0x38] sm:$0xf]
      %s846 = scalar_lea.vmem %s215, 192
      %v847 = vld [vmem:[%s846] sm:$0xf]
      %v848 = vld [vmem:[%s846 + $0x4] sm:$0xf]
      %v849 = vld [vmem:[%s846 + $0x8] sm:$0xf]
      %v850 = vld [vmem:[%s846 + $0xc] sm:$0xf]
      %v851 = vld [vmem:[%s846 + $0x10] sm:$0xf]
      %v852 = vld [vmem:[%s846 + $0x14] sm:$0xf]
      %v853 = vld [vmem:[%s846 + $0x18] sm:$0xf]
      %v854 = vld [vmem:[%s846 + $0x1c] sm:$0xf]
      %v855 = vld [vmem:[%s846 + $0x20] sm:$0xf]
      %v856 = vld [vmem:[%s846 + $0x24] sm:$0xf]
      %v857 = vld [vmem:[%s846 + $0x28] sm:$0xf]
      %v858 = vld [vmem:[%s846 + $0x2c] sm:$0xf]
      %v859 = vld [vmem:[%s846 + $0x30] sm:$0xf]
      %v860 = vld [vmem:[%s846 + $0x34] sm:$0xf]
      %v861 = vld [vmem:[%s846 + $0x38] sm:$0xf]
      %v862 = vld [vmem:[%s846 + $0x3c] sm:$0xf]
      %v871 = vunpack.c.l.b16 %v838
      %v872 = vunpack.c.l.b16 %v839
      %v873 = vunpack.c.l.b16 %v840
      %v874 = vunpack.c.l.b16 %v841
      %v875 = vunpack.c.l.b16 %v842
      %v876 = vunpack.c.l.b16 %v843
      %v877 = vunpack.c.l.b16 %v844
      %v878 = vunpack.c.l.b16 %v845
      %v879 = vpack.c.b16 %v872, %v871
      %v880 = vpack.c.b16 %v874, %v873
      %v881 = vpack.c.b16 %v876, %v875
      %v882 = vpack.c.b16 %v878, %v877
      %v903 = vunpack.c.l.b16 %v847
      %v904 = vunpack.c.l.b16 %v848
      %v905 = vunpack.c.l.b16 %v849
      %v906 = vunpack.c.l.b16 %v850
      %v907 = vunpack.c.l.b16 %v851
      %v908 = vunpack.c.l.b16 %v852
      %v909 = vunpack.c.l.b16 %v853
      %v910 = vunpack.c.l.b16 %v854
      %v911 = vunpack.c.l.b16 %v855
      %v912 = vunpack.c.l.b16 %v856
      %v913 = vunpack.c.l.b16 %v857
      %v914 = vunpack.c.l.b16 %v858
      %v915 = vunpack.c.l.b16 %v859
      %v916 = vunpack.c.l.b16 %v860
      %v917 = vunpack.c.l.b16 %v861
      %v918 = vunpack.c.l.b16 %v862
      %v919 = vpack.c.b16 %v904, %v903
      %v920 = vpack.c.b16 %v906, %v905
      %v921 = vpack.c.b16 %v908, %v907
      %v922 = vpack.c.b16 %v910, %v909
      %v923 = vpack.c.b16 %v912, %v911
      %v924 = vpack.c.b16 %v914, %v913
      %v925 = vpack.c.b16 %v916, %v915
      %v926 = vpack.c.b16 %v918, %v917
      %935 = vmatprep.subr.bf16.mxu0 0
      %936 = vmatpush1.bf16.msra.mxu0 %v919
      %937 = vmatprep.subr.bf16.mxu0 0
      %938 = vmatpush1.bf16.msra.mxu0 %v920
      %939 = vmatprep.subr.bf16.mxu0 0
      %940 = vmatpush1.bf16.msra.mxu0 %v921
      %941 = vmatprep.subr.bf16.mxu0 0
      %942 = vmatpush1.bf16.msra.mxu0 %v922
      %943 = vmatprep.subr.bf16.mxu0 0
      %944 = vmatpush1.bf16.msra.mxu0 %v923
      %945 = vmatprep.subr.bf16.mxu0 0
      %946 = vmatpush1.bf16.msra.mxu0 %v924
      %947 = vmatprep.subr.bf16.mxu0 0
      %948 = vmatpush1.bf16.msra.mxu0 %v925
      %949 = vmatprep.subr.bf16.mxu0 0
      %950 = vmatpush1.bf16.msra.mxu0 %v926
      %951 = vmatprep.subr.bf16.mxu0 0
      %952 = vmatpush1.bf16.msra.mxu0 0
      %953 = vmatprep.subr.bf16.mxu0 0
      %954 = vmatpush1.bf16.msra.mxu0 0
      %955 = vmatprep.subr.bf16.mxu0 0
      %956 = vmatpush1.bf16.msra.mxu0 0
      %957 = vmatprep.subr.bf16.mxu0 0
      %958 = vmatpush1.bf16.msra.mxu0 0
      %959 = vmatprep.subr.bf16.mxu0 0
      %960 = vmatpush1.bf16.msra.mxu0 0
      %961 = vmatprep.subr.bf16.mxu0 0
      %962 = vmatpush1.bf16.msra.mxu0 0
      %963 = vmatprep.subr.bf16.mxu0 0
      %964 = vmatpush1.bf16.msra.mxu0 0
      %965 = vmatprep.subr.bf16.mxu0 0
      %966 = vmatpush1.bf16.msra.mxu0 0
      %967 = vmatprep.mubr.bf16.mxu0 0
      %968 = vmatmul.mubr.bf16.gmra.mrb[0].mxu0 %v879
      %v969 = vpop.f32.mrb[0].mxu0
      %v970 = vadd.f32 0.0, %v969
      %v971 = vpop.f32.mrb[0].mxu0
      %v972 = vpop.f32.mrb[0].mxu0
      %v973 = vadd.f32 0.0, %v972
      %v974 = vpop.f32.mrb[0].mxu0
      %975 = vmatprep.mubr.bf16.mxu0 0
      %976 = vmatmul.mubr.bf16.gmra.mrb[0].mxu0 %v880
      %v977 = vpop.f32.mrb[0].mxu0
      %v978 = vadd.f32 0.0, %v977
      %v979 = vpop.f32.mrb[0].mxu0
      %v980 = vpop.f32.mrb[0].mxu0
      %v981 = vadd.f32 0.0, %v980
      %v982 = vpop.f32.mrb[0].mxu0
      %983 = vmatprep.mubr.bf16.mxu0 0
      %984 = vmatmul.mubr.bf16.gmra.mrb[0].mxu0 %v881
      %v985 = vpop.f32.mrb[0].mxu0
      %v986 = vadd.f32 0.0, %v985
      %v987 = vpop.f32.mrb[0].mxu0
      %v988 = vpop.f32.mrb[0].mxu0
      %v989 = vadd.f32 0.0, %v988
      %v990 = vpop.f32.mrb[0].mxu0
      %991 = vmatprep.mubr.bf16.mxu0 0
      %992 = vmatmul.mubr.bf16.gmra.mrb[0].mxu0 %v882
      %v993 = vpop.f32.mrb[0].mxu0
      %v994 = vadd.f32 0.0, %v993
      %v995 = vpop.f32.mrb[0].mxu0
      %v996 = vpop.f32.mrb[0].mxu0
      %v997 = vadd.f32 0.0, %v996
      %v998 = vpop.f32.mrb[0].mxu0
      %999 = vdwg.mxu0
      %v1000 = vadd.f32 %v829, %v970
      %v1001 = vadd.f32 %v830, %v973
      %v1002 = vadd.f32 %v831, %v978
      %v1003 = vadd.f32 %v832, %v981
      %v1004 = vadd.f32 %v833, %v986
      %v1005 = vadd.f32 %v834, %v989
      %v1006 = vadd.f32 %v835, %v994
      %v1007 = vadd.f32 %v836, %v997
      %s1008 = scalar_lea.vmem %s210, 216
      %v1009 = vld [vmem:[%s1008] sm:$0xf]
      %v1010 = vld [vmem:[%s1008 + $0x8] sm:$0xf]
      %v1011 = vld [vmem:[%s1008 + $0x10] sm:$0xf]
      %v1012 = vld [vmem:[%s1008 + $0x18] sm:$0xf]
      %v1013 = vld [vmem:[%s1008 + $0x20] sm:$0xf]
      %v1014 = vld [vmem:[%s1008 + $0x28] sm:$0xf]
      %v1015 = vld [vmem:[%s1008 + $0x30] sm:$0xf]
      %v1016 = vld [vmem:[%s1008 + $0x38] sm:$0xf]
      %s1017 = scalar_lea.vmem %s215, 256
      %v1018 = vld [vmem:[%s1017] sm:$0xf]
      %v1019 = vld [vmem:[%s1017 + $0x4] sm:$0xf]
      %v1020 = vld [vmem:[%s1017 + $0x8] sm:$0xf]
      %v1021 = vld [vmem:[%s1017 + $0xc] sm:$0xf]
      %v1022 = vld [vmem:[%s1017 + $0x10] sm:$0xf]
      %v1023 = vld [vmem:[%s1017 + $0x14] sm:$0xf]
      %v1024 = vld [vmem:[%s1017 + $0x18] sm:$0xf]
      %v1025 = vld [vmem:[%s1017 + $0x1c] sm:$0xf]
      %v1026 = vld [vmem:[%s1017 + $0x20] sm:$0xf]
      %v1027 = vld [vmem:[%s1017 + $0x24] sm:$0xf]
      %v1028 = vld [vmem:[%s1017 + $0x28] sm:$0xf]
      %v1029 = vld [vmem:[%s1017 + $0x2c] sm:$0xf]
      %v1030 = vld [vmem:[%s1017 + $0x30] sm:$0xf]
      %v1031 = vld [vmem:[%s1017 + $0x34] sm:$0xf]
      %v1032 = vld [vmem:[%s1017 + $0x38] sm:$0xf]
      %v1033 = vld [vmem:[%s1017 + $0x3c] sm:$0xf]
      %v1042 = vunpack.c.l.b16 %v1009
      %v1043 = vunpack.c.l.b16 %v1010
      %v1044 = vunpack.c.l.b16 %v1011
      %v1045 = vunpack.c.l.b16 %v1012
      %v1046 = vunpack.c.l.b16 %v1013
      %v1047 = vunpack.c.l.b16 %v1014
      %v1048 = vunpack.c.l.b16 %v1015
      %v1049 = vunpack.c.l.b16 %v1016
      %v1050 = vpack.c.b16 %v1043, %v1042
      %v1051 = vpack.c.b16 %v1045, %v1044
      %v1052 = vpack.c.b16 %v1047, %v1046
      %v1053 = vpack.c.b16 %v1049, %v1048
      %v1074 = vunpack.c.l.b16 %v1018
      %v1075 = vunpack.c.l.b16 %v1019
      %v1076 = vunpack.c.l.b16 %v1020
      %v1077 = vunpack.c.l.b16 %v1021
      %v1078 = vunpack.c.l.b16 %v1022
      %v1079 = vunpack.c.l.b16 %v1023
      %v1080 = vunpack.c.l.b16 %v1024
      %v1081 = vunpack.c.l.b16 %v1025
      %v1082 = vunpack.c.l.b16 %v1026
      %v1083 = vunpack.c.l.b16 %v1027
      %v1084 = vunpack.c.l.b16 %v1028
      %v1085 = vunpack.c.l.b16 %v1029
      %v1086 = vunpack.c.l.b16 %v1030
      %v1087 = vunpack.c.l.b16 %v1031
      %v1088 = vunpack.c.l.b16 %v1032
      %v1089 = vunpack.c.l.b16 %v1033
      %v1090 = vpack.c.b16 %v1075, %v1074
      %v1091 = vpack.c.b16 %v1077, %v1076
      %v1092 = vpack.c.b16 %v1079, %v1078
      %v1093 = vpack.c.b16 %v1081, %v1080
      %v1094 = vpack.c.b16 %v1083, %v1082
      %v1095 = vpack.c.b16 %v1085, %v1084
      %v1096 = vpack.c.b16 %v1087, %v1086
      %v1097 = vpack.c.b16 %v1089, %v1088
      %1106 = vmatprep.subr.bf16.mxu0 0
      %1107 = vmatpush1.bf16.msra.mxu0 %v1090
      %1108 = vmatprep.subr.bf16.mxu0 0
      %1109 = vmatpush1.bf16.msra.mxu0 %v1091
      %1110 = vmatprep.subr.bf16.mxu0 0
      %1111 = vmatpush1.bf16.msra.mxu0 %v1092
      %1112 = vmatprep.subr.bf16.mxu0 0
      %1113 = vmatpush1.bf16.msra.mxu0 %v1093
      %1114 = vmatprep.subr.bf16.mxu0 0
      %1115 = vmatpush1.bf16.msra.mxu0 %v1094
      %1116 = vmatprep.subr.bf16.mxu0 0
      %1117 = vmatpush1.bf16.msra.mxu0 %v1095
      %1118 = vmatprep.subr.bf16.mxu0 0
      %1119 = vmatpush1.bf16.msra.mxu0 %v1096
      %1120 = vmatprep.subr.bf16.mxu0 0
      %1121 = vmatpush1.bf16.msra.mxu0 %v1097
      %1122 = vmatprep.subr.bf16.mxu0 0
      %1123 = vmatpush1.bf16.msra.mxu0 0
      %1124 = vmatprep.subr.bf16.mxu0 0
      %1125 = vmatpush1.bf16.msra.mxu0 0
      %1126 = vmatprep.subr.bf16.mxu0 0
      %1127 = vmatpush1.bf16.msra.mxu0 0
      %1128 = vmatprep.subr.bf16.mxu0 0
      %1129 = vmatpush1.bf16.msra.mxu0 0
      %1130 = vmatprep.subr.bf16.mxu0 0
      %1131 = vmatpush1.bf16.msra.mxu0 0
      %1132 = vmatprep.subr.bf16.mxu0 0
      %1133 = vmatpush1.bf16.msra.mxu0 0
      %1134 = vmatprep.subr.bf16.mxu0 0
      %1135 = vmatpush1.bf16.msra.mxu0 0
      %1136 = vmatprep.subr.bf16.mxu0 0
      %1137 = vmatpush1.bf16.msra.mxu0 0
      %1138 = vmatprep.mubr.bf16.mxu0 0
      %1139 = vmatmul.mubr.bf16.gmra.mrb[0].mxu0 %v1050
      %v1140 = vpop.f32.mrb[0].mxu0
      %v1141 = vadd.f32 0.0, %v1140
      %v1142 = vpop.f32.mrb[0].mxu0
      %v1143 = vpop.f32.mrb[0].mxu0
      %v1144 = vadd.f32 0.0, %v1143
      %v1145 = vpop.f32.mrb[0].mxu0
      %1146 = vmatprep.mubr.bf16.mxu0 0
      %1147 = vmatmul.mubr.bf16.gmra.mrb[0].mxu0 %v1051
      %v1148 = vpop.f32.mrb[0].mxu0
      %v1149 = vadd.f32 0.0, %v1148
      %v1150 = vpop.f32.mrb[0].mxu0
      %v1151 = vpop.f32.mrb[0].mxu0
      %v1152 = vadd.f32 0.0, %v1151
      %v1153 = vpop.f32.mrb[0].mxu0
      %1154 = vmatprep.mubr.bf16.mxu0 0
      %1155 = vmatmul.mubr.bf16.gmra.mrb[0].mxu0 %v1052
      %v1156 = vpop.f32.mrb[0].mxu0
      %v1157 = vadd.f32 0.0, %v1156
      %v1158 = vpop.f32.mrb[0].mxu0
      %v1159 = vpop.f32.mrb[0].mxu0
      %v1160 = vadd.f32 0.0, %v1159
      %v1161 = vpop.f32.mrb[0].mxu0
      %1162 = vmatprep.mubr.bf16.mxu0 0
      %1163 = vmatmul.mubr.bf16.gmra.mrb[0].mxu0 %v1053
      %v1164 = vpop.f32.mrb[0].mxu0
      %v1165 = vadd.f32 0.0, %v1164
      %v1166 = vpop.f32.mrb[0].mxu0
      %v1167 = vpop.f32.mrb[0].mxu0
      %v1168 = vadd.f32 0.0, %v1167
      %v1169 = vpop.f32.mrb[0].mxu0
      %1170 = vdwg.mxu0
      %v1171 = vadd.f32 %v1000, %v1141
      %v1172 = vadd.f32 %v1001, %v1144
      %v1173 = vadd.f32 %v1002, %v1149
      %v1174 = vadd.f32 %v1003, %v1152
      %v1175 = vadd.f32 %v1004, %v1157
      %v1176 = vadd.f32 %v1005, %v1160
      %v1177 = vadd.f32 %v1006, %v1165
      %v1178 = vadd.f32 %v1007, %v1168
      %v1179 = vld [vmem:[%s837] sm:$0xf]
      %v1180 = vld [vmem:[%s837 + $0x4] sm:$0x1]
      %v1181 = vld [vmem:[%s837 + $0x8] sm:$0xf]
      %v1182 = vld [vmem:[%s837 + $0xc] sm:$0x1]
      %v1183 = vld [vmem:[%s837 + $0x10] sm:$0xf]
      %v1184 = vld [vmem:[%s837 + $0x14] sm:$0x1]
      %v1185 = vld [vmem:[%s837 + $0x18] sm:$0xf]
      %v1186 = vld [vmem:[%s837 + $0x1c] sm:$0x1]
      %v1187 = vld [vmem:[%s837 + $0x20] sm:$0xf]
      %v1188 = vld [vmem:[%s837 + $0x24] sm:$0x1]
      %v1189 = vld [vmem:[%s837 + $0x28] sm:$0xf]
      %v1190 = vld [vmem:[%s837 + $0x2c] sm:$0x1]
      %v1191 = vld [vmem:[%s837 + $0x30] sm:$0xf]
      %v1192 = vld [vmem:[%s837 + $0x34] sm:$0x1]
      %v1193 = vld [vmem:[%s837 + $0x38] sm:$0xf]
      %v1194 = vld [vmem:[%s837 + $0x3c] sm:$0x1]
      %v1196 = vshrl.u32 %v1179, 16
      %v1198 = vrot.slane %v1196, 4
      %v1199 = vshll.u32 %v1179, 16
      %v1201 = vrot.slane %v1199, 5
      %v1202 = vor.u32 %v1198, %v1201
      %v1203 = vrot.slane %v1202, 4
      %v1205 = vshll.u32 %v1180, 16
      %v1207 = vrot.slane %v1205, 5
      %v1208 = vsel %vm570, %v1203, %v1207
      %v1210 = vshrl.u32 %v1181, 16
      %v1212 = vrot.slane %v1210, 4
      %v1213 = vshll.u32 %v1181, 16
      %v1215 = vrot.slane %v1213, 5
      %v1216 = vor.u32 %v1212, %v1215
      %v1217 = vrot.slane %v1216, 4
      %v1219 = vshll.u32 %v1182, 16
      %v1221 = vrot.slane %v1219, 5
      %v1222 = vsel %vm570, %v1217, %v1221
      %v1224 = vshrl.u32 %v1183, 16
      %v1226 = vrot.slane %v1224, 4
      %v1227 = vshll.u32 %v1183, 16
      %v1229 = vrot.slane %v1227, 5
      %v1230 = vor.u32 %v1226, %v1229
      %v1231 = vrot.slane %v1230, 4
      %v1233 = vshll.u32 %v1184, 16
      %v1235 = vrot.slane %v1233, 5
      %v1236 = vsel %vm570, %v1231, %v1235
      %v1238 = vshrl.u32 %v1185, 16
      %v1240 = vrot.slane %v1238, 4
      %v1241 = vshll.u32 %v1185, 16
      %v1243 = vrot.slane %v1241, 5
      %v1244 = vor.u32 %v1240, %v1243
      %v1245 = vrot.slane %v1244, 4
      %v1247 = vshll.u32 %v1186, 16
      %v1249 = vrot.slane %v1247, 5
      %v1250 = vsel %vm570, %v1245, %v1249
      %v1252 = vshrl.u32 %v1187, 16
      %v1254 = vrot.slane %v1252, 4
      %v1255 = vshll.u32 %v1187, 16
      %v1257 = vrot.slane %v1255, 5
      %v1258 = vor.u32 %v1254, %v1257
      %v1259 = vrot.slane %v1258, 4
      %v1261 = vshll.u32 %v1188, 16
      %v1263 = vrot.slane %v1261, 5
      %v1264 = vsel %vm570, %v1259, %v1263
      %v1266 = vshrl.u32 %v1189, 16
      %v1268 = vrot.slane %v1266, 4
      %v1269 = vshll.u32 %v1189, 16
      %v1271 = vrot.slane %v1269, 5
      %v1272 = vor.u32 %v1268, %v1271
      %v1273 = vrot.slane %v1272, 4
      %v1275 = vshll.u32 %v1190, 16
      %v1277 = vrot.slane %v1275, 5
      %v1278 = vsel %vm570, %v1273, %v1277
      %v1280 = vshrl.u32 %v1191, 16
      %v1282 = vrot.slane %v1280, 4
      %v1283 = vshll.u32 %v1191, 16
      %v1285 = vrot.slane %v1283, 5
      %v1286 = vor.u32 %v1282, %v1285
      %v1287 = vrot.slane %v1286, 4
      %v1289 = vshll.u32 %v1192, 16
      %v1291 = vrot.slane %v1289, 5
      %v1292 = vsel %vm570, %v1287, %v1291
      %v1294 = vshrl.u32 %v1193, 16
      %v1296 = vrot.slane %v1294, 4
      %v1297 = vshll.u32 %v1193, 16
      %v1299 = vrot.slane %v1297, 5
      %v1300 = vor.u32 %v1296, %v1299
      %v1301 = vrot.slane %v1300, 4
      %v1303 = vshll.u32 %v1194, 16
      %v1305 = vrot.slane %v1303, 5
      %v1306 = vsel %vm570, %v1301, %v1305
      %s1307 = scalar_lea.vmem %s215, 320
      %v1308 = vld [vmem:[%s1307] sm:$0xf]
      %v1309 = vld [vmem:[%s1307 + $0x4] sm:$0xf]
      %v1310 = vld [vmem:[%s1307 + $0x8] sm:$0xf]
      %v1311 = vld [vmem:[%s1307 + $0xc] sm:$0xf]
      %v1312 = vld [vmem:[%s1307 + $0x10] sm:$0xf]
      %v1313 = vld [vmem:[%s1307 + $0x14] sm:$0xf]
      %v1314 = vld [vmem:[%s1307 + $0x18] sm:$0xf]
      %v1315 = vld [vmem:[%s1307 + $0x1c] sm:$0xf]
      %v1316 = vld [vmem:[%s1307 + $0x20] sm:$0xf]
      %v1317 = vld [vmem:[%s1307 + $0x24] sm:$0xf]
      %v1318 = vld [vmem:[%s1307 + $0x28] sm:$0xf]
      %v1319 = vld [vmem:[%s1307 + $0x2c] sm:$0xf]
      %v1320 = vld [vmem:[%s1307 + $0x30] sm:$0xf]
      %v1321 = vld [vmem:[%s1307 + $0x34] sm:$0xf]
      %v1322 = vld [vmem:[%s1307 + $0x38] sm:$0xf]
      %v1323 = vld [vmem:[%s1307 + $0x3c] sm:$0xf]
      %v1324 = vunpack.c.l.b16 %v1208
      %v1325 = vunpack.c.l.b16 %v1222
      %v1326 = vunpack.c.l.b16 %v1236
      %v1327 = vunpack.c.l.b16 %v1250
      %v1328 = vunpack.c.l.b16 %v1264
      %v1329 = vunpack.c.l.b16 %v1278
      %v1330 = vunpack.c.l.b16 %v1292
      %v1331 = vunpack.c.l.b16 %v1306
      %v1332 = vpack.c.b16 %v1325, %v1324
      %v1333 = vpack.c.b16 %v1327, %v1326
      %v1334 = vpack.c.b16 %v1329, %v1328
      %v1335 = vpack.c.b16 %v1331, %v1330
      %v1356 = vunpack.c.l.b16 %v1308
      %v1357 = vunpack.c.l.b16 %v1309
      %v1358 = vunpack.c.l.b16 %v1310
      %v1359 = vunpack.c.l.b16 %v1311
      %v1360 = vunpack.c.l.b16 %v1312
      %v1361 = vunpack.c.l.b16 %v1313
      %v1362 = vunpack.c.l.b16 %v1314
      %v1363 = vunpack.c.l.b16 %v1315
      %v1364 = vunpack.c.l.b16 %v1316
      %v1365 = vunpack.c.l.b16 %v1317
      %v1366 = vunpack.c.l.b16 %v1318
      %v1367 = vunpack.c.l.b16 %v1319
      %v1368 = vunpack.c.l.b16 %v1320
      %v1369 = vunpack.c.l.b16 %v1321
      %v1370 = vunpack.c.l.b16 %v1322
      %v1371 = vunpack.c.l.b16 %v1323
      %v1372 = vpack.c.b16 %v1357, %v1356
      %v1373 = vpack.c.b16 %v1359, %v1358
      %v1374 = vpack.c.b16 %v1361, %v1360
      %v1375 = vpack.c.b16 %v1363, %v1362
      %v1376 = vpack.c.b16 %v1365, %v1364
      %v1377 = vpack.c.b16 %v1367, %v1366
      %v1378 = vpack.c.b16 %v1369, %v1368
      %v1379 = vpack.c.b16 %v1371, %v1370
      %1388 = vmatprep.subr.bf16.mxu0 0
      %1389 = vmatpush1.bf16.msra.mxu0 %v1372
      %1390 = vmatprep.subr.bf16.mxu0 0
      %1391 = vmatpush1.bf16.msra.mxu0 %v1373
      %1392 = vmatprep.subr.bf16.mxu0 0
      %1393 = vmatpush1.bf16.msra.mxu0 %v1374
      %1394 = vmatprep.subr.bf16.mxu0 0
      %1395 = vmatpush1.bf16.msra.mxu0 %v1375
      %1396 = vmatprep.subr.bf16.mxu0 0
      %1397 = vmatpush1.bf16.msra.mxu0 %v1376
      %1398 = vmatprep.subr.bf16.mxu0 0
      %1399 = vmatpush1.bf16.msra.mxu0 %v1377
      %1400 = vmatprep.subr.bf16.mxu0 0
      %1401 = vmatpush1.bf16.msra.mxu0 %v1378
      %1402 = vmatprep.subr.bf16.mxu0 0
      %1403 = vmatpush1.bf16.msra.mxu0 %v1379
      %1404 = vmatprep.subr.bf16.mxu0 0
      %1405 = vmatpush1.bf16.msra.mxu0 0
      %1406 = vmatprep.subr.bf16.mxu0 0
      %1407 = vmatpush1.bf16.msra.mxu0 0
      %1408 = vmatprep.subr.bf16.mxu0 0
      %1409 = vmatpush1.bf16.msra.mxu0 0
      %1410 = vmatprep.subr.bf16.mxu0 0
      %1411 = vmatpush1.bf16.msra.mxu0 0
      %1412 = vmatprep.subr.bf16.mxu0 0
      %1413 = vmatpush1.bf16.msra.mxu0 0
      %1414 = vmatprep.subr.bf16.mxu0 0
      %1415 = vmatpush1.bf16.msra.mxu0 0
      %1416 = vmatprep.subr.bf16.mxu0 0
      %1417 = vmatpush1.bf16.msra.mxu0 0
      %1418 = vmatprep.subr.bf16.mxu0 0
      %1419 = vmatpush1.bf16.msra.mxu0 0
      %1420 = vmatprep.mubr.bf16.mxu0 0
      %1421 = vmatmul.mubr.bf16.gmra.mrb[0].mxu0 %v1332
      %v1422 = vpop.f32.mrb[0].mxu0
      %v1423 = vadd.f32 0.0, %v1422
      %v1424 = vpop.f32.mrb[0].mxu0
      %v1425 = vpop.f32.mrb[0].mxu0
      %v1426 = vadd.f32 0.0, %v1425
      %v1427 = vpop.f32.mrb[0].mxu0
      %1428 = vmatprep.mubr.bf16.mxu0 0
      %1429 = vmatmul.mubr.bf16.gmra.mrb[0].mxu0 %v1333
      %v1430 = vpop.f32.mrb[0].mxu0
      %v1431 = vadd.f32 0.0, %v1430
      %v1432 = vpop.f32.mrb[0].mxu0
      %v1433 = vpop.f32.mrb[0].mxu0
      %v1434 = vadd.f32 0.0, %v1433
      %v1435 = vpop.f32.mrb[0].mxu0
      %1436 = vmatprep.mubr.bf16.mxu0 0
      %1437 = vmatmul.mubr.bf16.gmra.mrb[0].mxu0 %v1334
      %v1438 = vpop.f32.mrb[0].mxu0
      %v1439 = vadd.f32 0.0, %v1438
      %v1440 = vpop.f32.mrb[0].mxu0
      %v1441 = vpop.f32.mrb[0].mxu0
      %v1442 = vadd.f32 0.0, %v1441
      %v1443 = vpop.f32.mrb[0].mxu0
      %1444 = vmatprep.mubr.bf16.mxu0 0
      %1445 = vmatmul.mubr.bf16.gmra.mrb[0].mxu0 %v1335
      %v1446 = vpop.f32.mrb[0].mxu0
      %v1447 = vadd.f32 0.0, %v1446
      %v1448 = vpop.f32.mrb[0].mxu0
      %v1449 = vpop.f32.mrb[0].mxu0
      %v1450 = vadd.f32 0.0, %v1449
      %v1451 = vpop.f32.mrb[0].mxu0
      %1452 = vdwg.mxu0
      %v1453 = vadd.f32 %v1171, %v1423
      %v1454 = vadd.f32 %v1172, %v1426
      %v1455 = vadd.f32 %v1173, %v1431
      %v1456 = vadd.f32 %v1174, %v1434
      %v1457 = vadd.f32 %v1175, %v1439
      %v1458 = vadd.f32 %v1176, %v1442
      %v1459 = vadd.f32 %v1177, %v1447
      %v1460 = vadd.f32 %v1178, %v1450
      %s1461 = scalar_lea.vmem %s210, 8
      %v1462 = vld [vmem:[%s1461] sm:$0xf]
      %v1463 = vld [vmem:[%s1461 + $0x8] sm:$0xf]
      %v1464 = vld [vmem:[%s1461 + $0x10] sm:$0xf]
      %v1465 = vld [vmem:[%s1461 + $0x18] sm:$0xf]
      %v1466 = vld [vmem:[%s1461 + $0x20] sm:$0xf]
      %v1467 = vld [vmem:[%s1461 + $0x28] sm:$0xf]
      %v1468 = vld [vmem:[%s1461 + $0x30] sm:$0xf]
      %v1469 = vld [vmem:[%s1461 + $0x38] sm:$0xf]
      %s1470 = scalar_lea.vmem %s215, 384
      %v1471 = vld [vmem:[%s1470] sm:$0xf]
      %v1472 = vld [vmem:[%s1470 + $0x4] sm:$0xf]
      %v1473 = vld [vmem:[%s1470 + $0x8] sm:$0xf]
      %v1474 = vld [vmem:[%s1470 + $0xc] sm:$0xf]
      %v1475 = vld [vmem:[%s1470 + $0x10] sm:$0xf]
      %v1476 = vld [vmem:[%s1470 + $0x14] sm:$0xf]
      %v1477 = vld [vmem:[%s1470 + $0x18] sm:$0xf]
      %v1478 = vld [vmem:[%s1470 + $0x1c] sm:$0xf]
      %v1479 = vld [vmem:[%s1470 + $0x20] sm:$0xf]
      %v1480 = vld [vmem:[%s1470 + $0x24] sm:$0xf]
      %v1481 = vld [vmem:[%s1470 + $0x28] sm:$0xf]
      %v1482 = vld [vmem:[%s1470 + $0x2c] sm:$0xf]
      %v1483 = vld [vmem:[%s1470 + $0x30] sm:$0xf]
      %v1484 = vld [vmem:[%s1470 + $0x34] sm:$0xf]
      %v1485 = vld [vmem:[%s1470 + $0x38] sm:$0xf]
      %v1486 = vld [vmem:[%s1470 + $0x3c] sm:$0xf]
      %v1495 = vunpack.c.l.b16 %v1462
      %v1496 = vunpack.c.l.b16 %v1463
      %v1497 = vunpack.c.l.b16 %v1464
      %v1498 = vunpack.c.l.b16 %v1465
      %v1499 = vunpack.c.l.b16 %v1466
      %v1500 = vunpack.c.l.b16 %v1467
      %v1501 = vunpack.c.l.b16 %v1468
      %v1502 = vunpack.c.l.b16 %v1469
      %v1503 = vpack.c.b16 %v1496, %v1495
      %v1504 = vpack.c.b16 %v1498, %v1497
      %v1505 = vpack.c.b16 %v1500, %v1499
      %v1506 = vpack.c.b16 %v1502, %v1501
      %v1527 = vunpack.c.l.b16 %v1471
      %v1528 = vunpack.c.l.b16 %v1472
      %v1529 = vunpack.c.l.b16 %v1473
      %v1530 = vunpack.c.l.b16 %v1474
      %v1531 = vunpack.c.l.b16 %v1475
      %v1532 = vunpack.c.l.b16 %v1476
      %v1533 = vunpack.c.l.b16 %v1477
      %v1534 = vunpack.c.l.b16 %v1478
      %v1535 = vunpack.c.l.b16 %v1479
      %v1536 = vunpack.c.l.b16 %v1480
      %v1537 = vunpack.c.l.b16 %v1481
      %v1538 = vunpack.c.l.b16 %v1482
      %v1539 = vunpack.c.l.b16 %v1483
      %v1540 = vunpack.c.l.b16 %v1484
      %v1541 = vunpack.c.l.b16 %v1485
      %v1542 = vunpack.c.l.b16 %v1486
      %v1543 = vpack.c.b16 %v1528, %v1527
      %v1544 = vpack.c.b16 %v1530, %v1529
      %v1545 = vpack.c.b16 %v1532, %v1531
      %v1546 = vpack.c.b16 %v1534, %v1533
      %v1547 = vpack.c.b16 %v1536, %v1535
      %v1548 = vpack.c.b16 %v1538, %v1537
      %v1549 = vpack.c.b16 %v1540, %v1539
      %v1550 = vpack.c.b16 %v1542, %v1541
      %1559 = vmatprep.subr.bf16.mxu0 0
      %1560 = vmatpush1.bf16.msra.mxu0 %v1543
      %1561 = vmatprep.subr.bf16.mxu0 0
      %1562 = vmatpush1.bf16.msra.mxu0 %v1544
      %1563 = vmatprep.subr.bf16.mxu0 0
      %1564 = vmatpush1.bf16.msra.mxu0 %v1545
      %1565 = vmatprep.subr.bf16.mxu0 0
      %1566 = vmatpush1.bf16.msra.mxu0 %v1546
      %1567 = vmatprep.subr.bf16.mxu0 0
      %1568 = vmatpush1.bf16.msra.mxu0 %v1547
      %1569 = vmatprep.subr.bf16.mxu0 0
      %1570 = vmatpush1.bf16.msra.mxu0 %v1548
      %1571 = vmatprep.subr.bf16.mxu0 0
      %1572 = vmatpush1.bf16.msra.mxu0 %v1549
      %1573 = vmatprep.subr.bf16.mxu0 0
      %1574 = vmatpush1.bf16.msra.mxu0 %v1550
      %1575 = vmatprep.subr.bf16.mxu0 0
      %1576 = vmatpush1.bf16.msra.mxu0 0
      %1577 = vmatprep.subr.bf16.mxu0 0
      %1578 = vmatpush1.bf16.msra.mxu0 0
      %1579 = vmatprep.subr.bf16.mxu0 0
      %1580 = vmatpush1.bf16.msra.mxu0 0
      %1581 = vmatprep.subr.bf16.mxu0 0
      %1582 = vmatpush1.bf16.msra.mxu0 0
      %1583 = vmatprep.subr.bf16.mxu0 0
      %1584 = vmatpush1.bf16.msra.mxu0 0
      %1585 = vmatprep.subr.bf16.mxu0 0
      %1586 = vmatpush1.bf16.msra.mxu0 0
      %1587 = vmatprep.subr.bf16.mxu0 0
      %1588 = vmatpush1.bf16.msra.mxu0 0
      %1589 = vmatprep.subr.bf16.mxu0 0
      %1590 = vmatpush1.bf16.msra.mxu0 0
      %1591 = vmatprep.mubr.bf16.mxu0 0
      %1592 = vmatmul.mubr.bf16.gmra.mrb[0].mxu0 %v1503
      %v1593 = vpop.f32.mrb[0].mxu0
      %v1594 = vadd.f32 0.0, %v1593
      %v1595 = vpop.f32.mrb[0].mxu0
      %v1596 = vpop.f32.mrb[0].mxu0
      %v1597 = vadd.f32 0.0, %v1596
      %v1598 = vpop.f32.mrb[0].mxu0
      %1599 = vmatprep.mubr.bf16.mxu0 0
      %1600 = vmatmul.mubr.bf16.gmra.mrb[0].mxu0 %v1504
      %v1601 = vpop.f32.mrb[0].mxu0
      %v1602 = vadd.f32 0.0, %v1601
      %v1603 = vpop.f32.mrb[0].mxu0
      %v1604 = vpop.f32.mrb[0].mxu0
      %v1605 = vadd.f32 0.0, %v1604
      %v1606 = vpop.f32.mrb[0].mxu0
      %1607 = vmatprep.mubr.bf16.mxu0 0
      %1608 = vmatmul.mubr.bf16.gmra.mrb[0].mxu0 %v1505
      %v1609 = vpop.f32.mrb[0].mxu0
      %v1610 = vadd.f32 0.0, %v1609
      %v1611 = vpop.f32.mrb[0].mxu0
      %v1612 = vpop.f32.mrb[0].mxu0
      %v1613 = vadd.f32 0.0, %v1612
      %v1614 = vpop.f32.mrb[0].mxu0
      %1615 = vmatprep.mubr.bf16.mxu0 0
      %1616 = vmatmul.mubr.bf16.gmra.mrb[0].mxu0 %v1506
      %v1617 = vpop.f32.mrb[0].mxu0
      %v1618 = vadd.f32 0.0, %v1617
      %v1619 = vpop.f32.mrb[0].mxu0
      %v1620 = vpop.f32.mrb[0].mxu0
      %v1621 = vadd.f32 0.0, %v1620
      %v1622 = vpop.f32.mrb[0].mxu0
      %1623 = vdwg.mxu0
      %v1624 = vadd.f32 %v1453, %v1594
      %v1625 = vadd.f32 %v1454, %v1597
      %v1626 = vadd.f32 %v1455, %v1602
      %v1627 = vadd.f32 %v1456, %v1605
      %v1628 = vadd.f32 %v1457, %v1610
      %v1629 = vadd.f32 %v1458, %v1613
      %v1630 = vadd.f32 %v1459, %v1618
      %v1631 = vadd.f32 %v1460, %v1621
      %s1632 = scalar_lea.vmem %s210, 80
      %v1633 = vld [vmem:[%s1632] sm:$0xf]
      %v1634 = vld [vmem:[%s1632 + $0x8] sm:$0xf]
      %v1635 = vld [vmem:[%s1632 + $0x10] sm:$0xf]
      %v1636 = vld [vmem:[%s1632 + $0x18] sm:$0xf]
      %v1637 = vld [vmem:[%s1632 + $0x20] sm:$0xf]
      %v1638 = vld [vmem:[%s1632 + $0x28] sm:$0xf]
      %v1639 = vld [vmem:[%s1632 + $0x30] sm:$0xf]
      %v1640 = vld [vmem:[%s1632 + $0x38] sm:$0xf]
      %s1641 = scalar_lea.vmem %s215, 448
      %v1642 = vld [vmem:[%s1641] sm:$0xf]
      %v1643 = vld [vmem:[%s1641 + $0x4] sm:$0xf]
      %v1644 = vld [vmem:[%s1641 + $0x8] sm:$0xf]
      %v1645 = vld [vmem:[%s1641 + $0xc] sm:$0xf]
      %v1646 = vld [vmem:[%s1641 + $0x10] sm:$0xf]
      %v1647 = vld [vmem:[%s1641 + $0x14] sm:$0xf]
      %v1648 = vld [vmem:[%s1641 + $0x18] sm:$0xf]
      %v1649 = vld [vmem:[%s1641 + $0x1c] sm:$0xf]
      %v1650 = vld [vmem:[%s1641 + $0x20] sm:$0xf]
      %v1651 = vld [vmem:[%s1641 + $0x24] sm:$0xf]
      %v1652 = vld [vmem:[%s1641 + $0x28] sm:$0xf]
      %v1653 = vld [vmem:[%s1641 + $0x2c] sm:$0xf]
      %v1654 = vld [vmem:[%s1641 + $0x30] sm:$0xf]
      %v1655 = vld [vmem:[%s1641 + $0x34] sm:$0xf]
      %v1656 = vld [vmem:[%s1641 + $0x38] sm:$0xf]
      %v1657 = vld [vmem:[%s1641 + $0x3c] sm:$0xf]
      %v1666 = vunpack.c.l.b16 %v1633
      %v1667 = vunpack.c.l.b16 %v1634
      %v1668 = vunpack.c.l.b16 %v1635
      %v1669 = vunpack.c.l.b16 %v1636
      %v1670 = vunpack.c.l.b16 %v1637
      %v1671 = vunpack.c.l.b16 %v1638
      %v1672 = vunpack.c.l.b16 %v1639
      %v1673 = vunpack.c.l.b16 %v1640
      %v1674 = vpack.c.b16 %v1667, %v1666
      %v1675 = vpack.c.b16 %v1669, %v1668
      %v1676 = vpack.c.b16 %v1671, %v1670
      %v1677 = vpack.c.b16 %v1673, %v1672
      %v1698 = vunpack.c.l.b16 %v1642
      %v1699 = vunpack.c.l.b16 %v1643
      %v1700 = vunpack.c.l.b16 %v1644
      %v1701 = vunpack.c.l.b16 %v1645
      %v1702 = vunpack.c.l.b16 %v1646
      %v1703 = vunpack.c.l.b16 %v1647
      %v1704 = vunpack.c.l.b16 %v1648
      %v1705 = vunpack.c.l.b16 %v1649
      %v1706 = vunpack.c.l.b16 %v1650
      %v1707 = vunpack.c.l.b16 %v1651
      %v1708 = vunpack.c.l.b16 %v1652
      %v1709 = vunpack.c.l.b16 %v1653
      %v1710 = vunpack.c.l.b16 %v1654
      %v1711 = vunpack.c.l.b16 %v1655
      %v1712 = vunpack.c.l.b16 %v1656
      %v1713 = vunpack.c.l.b16 %v1657
      %v1714 = vpack.c.b16 %v1699, %v1698
      %v1715 = vpack.c.b16 %v1701, %v1700
      %v1716 = vpack.c.b16 %v1703, %v1702
      %v1717 = vpack.c.b16 %v1705, %v1704
      %v1718 = vpack.c.b16 %v1707, %v1706
      %v1719 = vpack.c.b16 %v1709, %v1708
      %v1720 = vpack.c.b16 %v1711, %v1710
      %v1721 = vpack.c.b16 %v1713, %v1712
      %1730 = vmatprep.subr.bf16.mxu0 0
      %1731 = vmatpush1.bf16.msra.mxu0 %v1714
      %1732 = vmatprep.subr.bf16.mxu0 0
      %1733 = vmatpush1.bf16.msra.mxu0 %v1715
      %1734 = vmatprep.subr.bf16.mxu0 0
      %1735 = vmatpush1.bf16.msra.mxu0 %v1716
      %1736 = vmatprep.subr.bf16.mxu0 0
      %1737 = vmatpush1.bf16.msra.mxu0 %v1717
      %1738 = vmatprep.subr.bf16.mxu0 0
      %1739 = vmatpush1.bf16.msra.mxu0 %v1718
      %1740 = vmatprep.subr.bf16.mxu0 0
      %1741 = vmatpush1.bf16.msra.mxu0 %v1719
      %1742 = vmatprep.subr.bf16.mxu0 0
      %1743 = vmatpush1.bf16.msra.mxu0 %v1720
      %1744 = vmatprep.subr.bf16.mxu0 0
      %1745 = vmatpush1.bf16.msra.mxu0 %v1721
      %1746 = vmatprep.subr.bf16.mxu0 0
      %1747 = vmatpush1.bf16.msra.mxu0 0
      %1748 = vmatprep.subr.bf16.mxu0 0
      %1749 = vmatpush1.bf16.msra.mxu0 0
      %1750 = vmatprep.subr.bf16.mxu0 0
      %1751 = vmatpush1.bf16.msra.mxu0 0
      %1752 = vmatprep.subr.bf16.mxu0 0
      %1753 = vmatpush1.bf16.msra.mxu0 0
      %1754 = vmatprep.subr.bf16.mxu0 0
      %1755 = vmatpush1.bf16.msra.mxu0 0
      %1756 = vmatprep.subr.bf16.mxu0 0
      %1757 = vmatpush1.bf16.msra.mxu0 0
      %1758 = vmatprep.subr.bf16.mxu0 0
      %1759 = vmatpush1.bf16.msra.mxu0 0
      %1760 = vmatprep.subr.bf16.mxu0 0
      %1761 = vmatpush1.bf16.msra.mxu0 0
      %1762 = vmatprep.mubr.bf16.mxu0 0
      %1763 = vmatmul.mubr.bf16.gmra.mrb[0].mxu0 %v1674
      %v1764 = vpop.f32.mrb[0].mxu0
      %v1765 = vadd.f32 0.0, %v1764
      %v1766 = vpop.f32.mrb[0].mxu0
      %v1767 = vpop.f32.mrb[0].mxu0
      %v1768 = vadd.f32 0.0, %v1767
      %v1769 = vpop.f32.mrb[0].mxu0
      %1770 = vmatprep.mubr.bf16.mxu0 0
      %1771 = vmatmul.mubr.bf16.gmra.mrb[0].mxu0 %v1675
      %v1772 = vpop.f32.mrb[0].mxu0
      %v1773 = vadd.f32 0.0, %v1772
      %v1774 = vpop.f32.mrb[0].mxu0
      %v1775 = vpop.f32.mrb[0].mxu0
      %v1776 = vadd.f32 0.0, %v1775
      %v1777 = vpop.f32.mrb[0].mxu0
      %1778 = vmatprep.mubr.bf16.mxu0 0
      %1779 = vmatmul.mubr.bf16.gmra.mrb[0].mxu0 %v1676
      %v1780 = vpop.f32.mrb[0].mxu0
      %v1781 = vadd.f32 0.0, %v1780
      %v1782 = vpop.f32.mrb[0].mxu0
      %v1783 = vpop.f32.mrb[0].mxu0
      %v1784 = vadd.f32 0.0, %v1783
      %v1785 = vpop.f32.mrb[0].mxu0
      %1786 = vmatprep.mubr.bf16.mxu0 0
      %1787 = vmatmul.mubr.bf16.gmra.mrb[0].mxu0 %v1677
      %v1788 = vpop.f32.mrb[0].mxu0
      %v1789 = vadd.f32 0.0, %v1788
      %v1790 = vpop.f32.mrb[0].mxu0
      %v1791 = vpop.f32.mrb[0].mxu0
      %v1792 = vadd.f32 0.0, %v1791
      %v1793 = vpop.f32.mrb[0].mxu0
      %1794 = vdwg.mxu0
      %v1795 = vadd.f32 %v1624, %v1765
      %v1796 = vadd.f32 %v1625, %v1768
      %v1797 = vadd.f32 %v1626, %v1773
      %v1798 = vadd.f32 %v1627, %v1776
      %v1799 = vadd.f32 %v1628, %v1781
      %v1800 = vadd.f32 %v1629, %v1784
      %v1801 = vadd.f32 %v1630, %v1789
      %v1802 = vadd.f32 %v1631, %v1792
      %v1803 = vld [vmem:[%s1461] sm:$0xf]
      %v1804 = vld [vmem:[%s1461 + $0x4] sm:$0x1]
      %v1805 = vld [vmem:[%s1461 + $0x8] sm:$0xf]
      %v1806 = vld [vmem:[%s1461 + $0xc] sm:$0x1]
      %v1807 = vld [vmem:[%s1461 + $0x10] sm:$0xf]
      %v1808 = vld [vmem:[%s1461 + $0x14] sm:$0x1]
      %v1809 = vld [vmem:[%s1461 + $0x18] sm:$0xf]
      %v1810 = vld [vmem:[%s1461 + $0x1c] sm:$0x1]
      %v1811 = vld [vmem:[%s1461 + $0x20] sm:$0xf]
      %v1812 = vld [vmem:[%s1461 + $0x24] sm:$0x1]
      %v1813 = vld [vmem:[%s1461 + $0x28] sm:$0xf]
      %v1814 = vld [vmem:[%s1461 + $0x2c] sm:$0x1]
      %v1815 = vld [vmem:[%s1461 + $0x30] sm:$0xf]
      %v1816 = vld [vmem:[%s1461 + $0x34] sm:$0x1]
      %v1817 = vld [vmem:[%s1461 + $0x38] sm:$0xf]
      %v1818 = vld [vmem:[%s1461 + $0x3c] sm:$0x1]
      %v1820 = vshrl.u32 %v1803, 16
      %v1822 = vrot.slane %v1820, 4
      %v1823 = vshll.u32 %v1803, 16
      %v1825 = vrot.slane %v1823, 5
      %v1826 = vor.u32 %v1822, %v1825
      %v1827 = vrot.slane %v1826, 4
      %v1829 = vshll.u32 %v1804, 16
      %v1831 = vrot.slane %v1829, 5
      %v1832 = vsel %vm570, %v1827, %v1831
      %v1834 = vshrl.u32 %v1805, 16
      %v1836 = vrot.slane %v1834, 4
      %v1837 = vshll.u32 %v1805, 16
      %v1839 = vrot.slane %v1837, 5
      %v1840 = vor.u32 %v1836, %v1839
      %v1841 = vrot.slane %v1840, 4
      %v1843 = vshll.u32 %v1806, 16
      %v1845 = vrot.slane %v1843, 5
      %v1846 = vsel %vm570, %v1841, %v1845
      %v1848 = vshrl.u32 %v1807, 16
      %v1850 = vrot.slane %v1848, 4
      %v1851 = vshll.u32 %v1807, 16
      %v1853 = vrot.slane %v1851, 5
      %v1854 = vor.u32 %v1850, %v1853
      %v1855 = vrot.slane %v1854, 4
      %v1857 = vshll.u32 %v1808, 16
      %v1859 = vrot.slane %v1857, 5
      %v1860 = vsel %vm570, %v1855, %v1859
      %v1862 = vshrl.u32 %v1809, 16
      %v1864 = vrot.slane %v1862, 4
      %v1865 = vshll.u32 %v1809, 16
      %v1867 = vrot.slane %v1865, 5
      %v1868 = vor.u32 %v1864, %v1867
      %v1869 = vrot.slane %v1868, 4
      %v1871 = vshll.u32 %v1810, 16
      %v1873 = vrot.slane %v1871, 5
      %v1874 = vsel %vm570, %v1869, %v1873
      %v1876 = vshrl.u32 %v1811, 16
      %v1878 = vrot.slane %v1876, 4
      %v1879 = vshll.u32 %v1811, 16
      %v1881 = vrot.slane %v1879, 5
      %v1882 = vor.u32 %v1878, %v1881
      %v1883 = vrot.slane %v1882, 4
      %v1885 = vshll.u32 %v1812, 16
      %v1887 = vrot.slane %v1885, 5
      %v1888 = vsel %vm570, %v1883, %v1887
      %v1890 = vshrl.u32 %v1813, 16
      %v1892 = vrot.slane %v1890, 4
      %v1893 = vshll.u32 %v1813, 16
      %v1895 = vrot.slane %v1893, 5
      %v1896 = vor.u32 %v1892, %v1895
      %v1897 = vrot.slane %v1896, 4
      %v1899 = vshll.u32 %v1814, 16
      %v1901 = vrot.slane %v1899, 5
      %v1902 = vsel %vm570, %v1897, %v1901
      %v1904 = vshrl.u32 %v1815, 16
      %v1906 = vrot.slane %v1904, 4
      %v1907 = vshll.u32 %v1815, 16
      %v1909 = vrot.slane %v1907, 5
      %v1910 = vor.u32 %v1906, %v1909
      %v1911 = vrot.slane %v1910, 4
      %v1913 = vshll.u32 %v1816, 16
      %v1915 = vrot.slane %v1913, 5
      %v1916 = vsel %vm570, %v1911, %v1915
      %v1918 = vshrl.u32 %v1817, 16
      %v1920 = vrot.slane %v1918, 4
      %v1921 = vshll.u32 %v1817, 16
      %v1923 = vrot.slane %v1921, 5
      %v1924 = vor.u32 %v1920, %v1923
      %v1925 = vrot.slane %v1924, 4
      %v1927 = vshll.u32 %v1818, 16
      %v1929 = vrot.slane %v1927, 5
      %v1930 = vsel %vm570, %v1925, %v1929
      %s1931 = scalar_lea.vmem %s215, 512
      %v1932 = vld [vmem:[%s1931] sm:$0xf]
      %v1933 = vld [vmem:[%s1931 + $0x4] sm:$0xf]
      %v1934 = vld [vmem:[%s1931 + $0x8] sm:$0xf]
      %v1935 = vld [vmem:[%s1931 + $0xc] sm:$0xf]
      %v1936 = vld [vmem:[%s1931 + $0x10] sm:$0xf]
      %v1937 = vld [vmem:[%s1931 + $0x14] sm:$0xf]
      %v1938 = vld [vmem:[%s1931 + $0x18] sm:$0xf]
      %v1939 = vld [vmem:[%s1931 + $0x1c] sm:$0xf]
      %v1940 = vld [vmem:[%s1931 + $0x20] sm:$0xf]
      %v1941 = vld [vmem:[%s1931 + $0x24] sm:$0xf]
      %v1942 = vld [vmem:[%s1931 + $0x28] sm:$0xf]
      %v1943 = vld [vmem:[%s1931 + $0x2c] sm:$0xf]
      %v1944 = vld [vmem:[%s1931 + $0x30] sm:$0xf]
      %v1945 = vld [vmem:[%s1931 + $0x34] sm:$0xf]
      %v1946 = vld [vmem:[%s1931 + $0x38] sm:$0xf]
      %v1947 = vld [vmem:[%s1931 + $0x3c] sm:$0xf]
      %v1948 = vunpack.c.l.b16 %v1832
      %v1949 = vunpack.c.l.b16 %v1846
      %v1950 = vunpack.c.l.b16 %v1860
      %v1951 = vunpack.c.l.b16 %v1874
      %v1952 = vunpack.c.l.b16 %v1888
      %v1953 = vunpack.c.l.b16 %v1902
      %v1954 = vunpack.c.l.b16 %v1916
      %v1955 = vunpack.c.l.b16 %v1930
      %v1956 = vpack.c.b16 %v1949, %v1948
      %v1957 = vpack.c.b16 %v1951, %v1950
      %v1958 = vpack.c.b16 %v1953, %v1952
      %v1959 = vpack.c.b16 %v1955, %v1954
      %v1980 = vunpack.c.l.b16 %v1932
      %v1981 = vunpack.c.l.b16 %v1933
      %v1982 = vunpack.c.l.b16 %v1934
      %v1983 = vunpack.c.l.b16 %v1935
      %v1984 = vunpack.c.l.b16 %v1936
      %v1985 = vunpack.c.l.b16 %v1937
      %v1986 = vunpack.c.l.b16 %v1938
      %v1987 = vunpack.c.l.b16 %v1939
      %v1988 = vunpack.c.l.b16 %v1940
      %v1989 = vunpack.c.l.b16 %v1941
      %v1990 = vunpack.c.l.b16 %v1942
      %v1991 = vunpack.c.l.b16 %v1943
      %v1992 = vunpack.c.l.b16 %v1944
      %v1993 = vunpack.c.l.b16 %v1945
      %v1994 = vunpack.c.l.b16 %v1946
      %v1995 = vunpack.c.l.b16 %v1947
      %v1996 = vpack.c.b16 %v1981, %v1980
      %v1997 = vpack.c.b16 %v1983, %v1982
      %v1998 = vpack.c.b16 %v1985, %v1984
      %v1999 = vpack.c.b16 %v1987, %v1986
      %v2000 = vpack.c.b16 %v1989, %v1988
      %v2001 = vpack.c.b16 %v1991, %v1990
      %v2002 = vpack.c.b16 %v1993, %v1992
      %v2003 = vpack.c.b16 %v1995, %v1994
      %2012 = vmatprep.subr.bf16.mxu0 0
      %2013 = vmatpush1.bf16.msra.mxu0 %v1996
      %2014 = vmatprep.subr.bf16.mxu0 0
      %2015 = vmatpush1.bf16.msra.mxu0 %v1997
      %2016 = vmatprep.subr.bf16.mxu0 0
      %2017 = vmatpush1.bf16.msra.mxu0 %v1998
      %2018 = vmatprep.subr.bf16.mxu0 0
      %2019 = vmatpush1.bf16.msra.mxu0 %v1999
      %2020 = vmatprep.subr.bf16.mxu0 0
      %2021 = vmatpush1.bf16.msra.mxu0 %v2000
      %2022 = vmatprep.subr.bf16.mxu0 0
      %2023 = vmatpush1.bf16.msra.mxu0 %v2001
      %2024 = vmatprep.subr.bf16.mxu0 0
      %2025 = vmatpush1.bf16.msra.mxu0 %v2002
      %2026 = vmatprep.subr.bf16.mxu0 0
      %2027 = vmatpush1.bf16.msra.mxu0 %v2003
      %2028 = vmatprep.subr.bf16.mxu0 0
      %2029 = vmatpush1.bf16.msra.mxu0 0
      %2030 = vmatprep.subr.bf16.mxu0 0
      %2031 = vmatpush1.bf16.msra.mxu0 0
      %2032 = vmatprep.subr.bf16.mxu0 0
      %2033 = vmatpush1.bf16.msra.mxu0 0
      %2034 = vmatprep.subr.bf16.mxu0 0
      %2035 = vmatpush1.bf16.msra.mxu0 0
      %2036 = vmatprep.subr.bf16.mxu0 0
      %2037 = vmatpush1.bf16.msra.mxu0 0
      %2038 = vmatprep.subr.bf16.mxu0 0
      %2039 = vmatpush1.bf16.msra.mxu0 0
      %2040 = vmatprep.subr.bf16.mxu0 0
      %2041 = vmatpush1.bf16.msra.mxu0 0
      %2042 = vmatprep.subr.bf16.mxu0 0
      %2043 = vmatpush1.bf16.msra.mxu0 0
      %2044 = vmatprep.mubr.bf16.mxu0 0
      %2045 = vmatmul.mubr.bf16.gmra.mrb[0].mxu0 %v1956
      %v2046 = vpop.f32.mrb[0].mxu0
      %v2047 = vadd.f32 0.0, %v2046
      %v2048 = vpop.f32.mrb[0].mxu0
      %v2049 = vpop.f32.mrb[0].mxu0
      %v2050 = vadd.f32 0.0, %v2049
      %v2051 = vpop.f32.mrb[0].mxu0
      %2052 = vmatprep.mubr.bf16.mxu0 0
      %2053 = vmatmul.mubr.bf16.gmra.mrb[0].mxu0 %v1957
      %v2054 = vpop.f32.mrb[0].mxu0
      %v2055 = vadd.f32 0.0, %v2054
      %v2056 = vpop.f32.mrb[0].mxu0
      %v2057 = vpop.f32.mrb[0].mxu0
      %v2058 = vadd.f32 0.0, %v2057
      %v2059 = vpop.f32.mrb[0].mxu0
      %2060 = vmatprep.mubr.bf16.mxu0 0
      %2061 = vmatmul.mubr.bf16.gmra.mrb[0].mxu0 %v1958
      %v2062 = vpop.f32.mrb[0].mxu0
      %v2063 = vadd.f32 0.0, %v2062
      %v2064 = vpop.f32.mrb[0].mxu0
      %v2065 = vpop.f32.mrb[0].mxu0
      %v2066 = vadd.f32 0.0, %v2065
      %v2067 = vpop.f32.mrb[0].mxu0
      %2068 = vmatprep.mubr.bf16.mxu0 0
      %2069 = vmatmul.mubr.bf16.gmra.mrb[0].mxu0 %v1959
      %v2070 = vpop.f32.mrb[0].mxu0
      %v2071 = vadd.f32 0.0, %v2070
      %v2072 = vpop.f32.mrb[0].mxu0
      %v2073 = vpop.f32.mrb[0].mxu0
      %v2074 = vadd.f32 0.0, %v2073
      %v2075 = vpop.f32.mrb[0].mxu0
      %2076 = vdwg.mxu0
      %v2077 = vadd.f32 %v1795, %v2047
      %v2078 = vadd.f32 %v1796, %v2050
      %v2079 = vadd.f32 %v1797, %v2055
      %v2080 = vadd.f32 %v1798, %v2058
      %v2081 = vadd.f32 %v1799, %v2063
      %v2082 = vadd.f32 %v1800, %v2066
      %v2083 = vadd.f32 %v1801, %v2071
      %v2084 = vadd.f32 %v1802, %v2074
      %v2085 = vld [vmem:[%s218] sm:$0x1]
      %v2087 = vlaneseq
      %v2088 = vshrl.u32 %v2087, 7
      %v2089 = vsub.s32 0, %v2088
      %v2090 = vrot.slane %v2085, %v2089
      %v2092 = vadd.f32 %v2077, %v2090
      %v2093 = vadd.f32 %v2078, %v2090
      %v2094 = vadd.f32 %v2079, %v2090
      %v2095 = vadd.f32 %v2080, %v2090
      %v2096 = vadd.f32 %v2081, %v2090
      %v2097 = vadd.f32 %v2082, %v2090
      %v2098 = vadd.f32 %v2083, %v2090
      %v2099 = vadd.f32 %v2084, %v2090
      %v2100 = vmax.f32 %v2092, 0.0
      %v2101 = vmax.f32 %v2093, 0.0
      %v2102 = vmax.f32 %v2094, 0.0
      %v2103 = vmax.f32 %v2095, 0.0
      %v2104 = vmax.f32 %v2096, 0.0
      %v2105 = vmax.f32 %v2097, 0.0
      %v2106 = vmax.f32 %v2098, 0.0
      %v2107 = vmax.f32 %v2099, 0.0
      %v2108 = vpack.c.bf16 %v2101, %v2100
      %v2109 = vpack.c.bf16 %v2103, %v2102
      %v2110 = vpack.c.bf16 %v2105, %v2104
      %v2111 = vpack.c.bf16 %v2107, %v2106
      %v2116 = vunpack.c.l.b16 %v2108
      %v2117 = vunpack.c.h.b16 %v2108
      %v2118 = vunpack.c.l.b16 %v2109
      %v2119 = vunpack.c.h.b16 %v2109
      %v2120 = vunpack.c.l.b16 %v2110
      %v2121 = vunpack.c.h.b16 %v2110
      %v2122 = vunpack.c.l.b16 %v2111
      %v2123 = vunpack.c.h.b16 %v2111
      %v2124 = vpack.c.b16 %v2116, %v2116
      %v2125 = vpack.c.b16 %v2117, %v2117
      %v2126 = vpack.c.b16 %v2118, %v2118
      %v2127 = vpack.c.b16 %v2119, %v2119
      %v2128 = vpack.c.b16 %v2120, %v2120
      %v2129 = vpack.c.b16 %v2121, %v2121
      %v2130 = vpack.c.b16 %v2122, %v2122
      %v2131 = vpack.c.b16 %v2123, %v2123
      %2140 = vst [vmem:[%s226] sm:$0xf] %v2124
      %2141 = vst [vmem:[%s226 + $0x4] sm:$0xf] %v2125
      %2142 = vst [vmem:[%s226 + $0x8] sm:$0xf] %v2126
      %2143 = vst [vmem:[%s226 + $0xc] sm:$0xf] %v2127
      %2144 = vst [vmem:[%s226 + $0x10] sm:$0xf] %v2128
      %2145 = vst [vmem:[%s226 + $0x14] sm:$0xf] %v2129
      %2146 = vst [vmem:[%s226 + $0x18] sm:$0xf] %v2130
      %2147 = vst [vmem:[%s226 + $0x1c] sm:$0xf] %v2131
      %p2148 = scmp.lt.s32.totalorder %s18, 1
      %s2149 = scalar_select %p2148, %s18, 1
      %p2150 = scmp.lt.s32.totalorder %s19, 0
      %s2151 = scalar_select %p2150, %s19, 0
      %s2152 = smul.addr %s2149, 8
      %s2153 = sadd.s32 %s2151, %s2152
      %s2154 = smul.addr %s2153, 4
      %s2155 = scalar_lea.vmem %s3, %s2154
      // Predicated region
      $region33: #{bottleneck_forward.4} parent=31 // pred_check
        %p2156 = pneg %p124
      $region34: #{bottleneck_forward.4} parent=31 // pred_check_branch
        %2158 = sbr.rel (%p2156) target = $region36
      $region35: #{bottleneck_forward.4} parent=31 // pred_region
        _
      $region36: #{bottleneck_forward.4} parent=31 // pred_fallthru
        _
    $region32: #{bottleneck_forward.4} parent=5 // pred_fallthru
      _
    %p2159 = scmp.le.s32.totalorder 2, %s9
    // Predicated region
    $region37: #{bottleneck_forward.4} parent=5 // pred_check
      %p2160 = pneg %p2159
    $region38: #{bottleneck_forward.4} parent=5 // pred_check_branch
      %2162 = sbr.rel (%p2160) target = $region40
    $region39: #{bottleneck_forward.4} parent=5 // pred_region
      %s2163 = ssub.s32 %s9, 2
      // Predicated region
      $region41: #{bottleneck_forward.4} parent=39 // pred_check
        %p2164 = pneg %p130
      $region42: #{bottleneck_forward.4} parent=39 // pred_check_branch
        %2166 = sbr.rel (%p2164) target = $region44
      $region43: #{bottleneck_forward.4} parent=39 // pred_region
        %p2167 = scmp.lt.s32.totalorder %s20, 1
        %s2168 = scalar_select %p2167, %s20, 1
        %p2169 = scmp.lt.s32.totalorder %s21, 0
        %s2170 = scalar_select %p2169, %s21, 0
        %s2171 = smul.addr %s2168, 8
        %s2172 = sadd.s32 %s2170, %s2171
        %s2173 = smul.addr %s2172, 4
        %s2174 = scalar_lea.vmem %s3, %s2173
      $region44: #{bottleneck_forward.4} parent=39 // pred_fallthru
        _
    $region40: #{bottleneck_forward.4} parent=5 // pred_fallthru
      _
  $region6: #{bottleneck_forward.4} parent=0 // loop_footer
    %s13 = sadd.s32 1, %s9
  $region7: #{bottleneck_forward.4} parent=0 // loop_footer_branch
    %8 = sbr.rel target = $region3
  $region8: #{bottleneck_forward.4} parent=0 // loop_exit
    _

</llo_original>
